<compile_context>
chip_gen: v5e
topology: v5e:2x2
jax: 0.10.0
libtpu: 0.0.40
codegen_flags: <defaults>
</compile_context>

<pallas_src>
from functools import partial

import numpy as np
import jax
import jax.numpy as jnp
from jax import lax
from jax.experimental import pallas as pl
from jax.experimental.pallas import tpu as pltpu

LANE = 128


def _round_up(x, m):
    return (x + m - 1) // m * m


def _pad_last(a, n):
    if a.shape[-1] == n:
        return a
    pads = [(0, 0)] * (a.ndim - 1) + [(0, n - a.shape[-1])]
    return jnp.pad(a, pads)


# ----------------------------------------------------------------------------
# Fused bottleneck kernel.
#   grid = (N, D+1); axis 0 "parallel" (independent samples), axis 1
#   "arbitrary" (rotating conv2 accumulators are carried across depth steps).
#
#   Step s (< D): conv1+bn1+relu on input depth slab s, write it into the
#   halo-padded VMEM slab, then scatter its kd = 0/1/2 taps into the
#   accumulators of output slabs s+1 / s / s-1 (masked at depth boundaries).
#   Step s (>= 1): output slab s-1 is complete -> bn2+relu, conv3+bn3,
#   +residual, relu, store (bf16, lane dense).
# ----------------------------------------------------------------------------
def _bottleneck_kernel(x_ref, w1_ref, s1_ref, b1_ref,
                       w2_ref, s2_ref, b2_ref,
                       w3_ref, s3_ref, b3_ref,
                       res_ref, o_ref,
                       acc_ref, xs_ref,
                       *, H, W, D, Pp, mxu_dtype):
    s = pl.program_id(1)
    HW = H * W

    # ---- once per sample: zero the halo slab (borders stay zero afterwards)
    #      and the accumulator of output slab 0 -------------------------------
    @pl.when(s == 0)
    def _():
        xs_ref[...] = jnp.zeros(xs_ref.shape, xs_ref.dtype)
        acc_ref[0] = jnp.zeros((HW, Pp), jnp.float32)

    # ---- output slab s+1 receives its first (kd=0) contribution this step --
    @pl.when(s + 1 < D)
    def _():
        acc_ref[lax.rem(s + 1, 3)] = jnp.zeros((HW, Pp), jnp.float32)

    # ---- process input depth slab j = s -------------------------------------
    @pl.when(s < D)
    def _():
        # conv1 (1x1x1) + bn1 + relu on this slab (computed exactly once).
        xin = x_ref[0, 0].reshape(HW, -1)                      # (HW, C) bf16
        a1 = jnp.dot(xin, w1_ref[...], preferred_element_type=jnp.float32)
        a1 = jnp.maximum(a1 * s1_ref[...] + b1_ref[...], 0.0).astype(mxu_dtype)
        # Place it in the interior of the halo-padded scratch slab.
        xs_ref[pl.ds(1, H), pl.ds(1, W), :] = a1.reshape(H, W, Pp)

        # Build the three kh row-slabs with the kw taps concatenated along
        # channels (K = 3*Pp).  Shared by all valid kd taps below.
        xcat = []
        for kh in range(3):
            parts = [xs_ref[pl.ds(kh, H), pl.ds(kw, W), :] for kw in range(3)]
            xcat.append(jnp.concatenate(parts, axis=-1).reshape(HW, 3 * Pp))

        # Scatter: input slab s contributes tap kd to output slab s + 1 - kd.
        for kd in range(3):
            d_out = s + 1 - kd

            @pl.when((d_out >= 0) & (d_out < D))
            def _(kd=kd, d_out=d_out):
                part = None
                for kh in range(3):
                    c = jnp.dot(xcat[kh], w2_ref[kd, kh],
                                preferred_element_type=jnp.float32)
                    part = c if part is None else part + c
                slot = lax.rem(d_out, 3)
                acc_ref[slot] = acc_ref[slot] + part

    # ---- output slab d = s-1 is complete: fused epilogue --------------------
    @pl.when(s >= 1)
    def _():
        slot = lax.rem(s - 1, 3)
        a2 = jnp.maximum(acc_ref[slot] * s2_ref[...] + b2_ref[...], 0.0)
        y = jnp.dot(a2.astype(mxu_dtype), w3_ref[...],
                    preferred_element_type=jnp.float32)
        y = y * s3_ref[...] + b3_ref[...]
        y = y + res_ref[...].reshape(HW, -1).astype(jnp.float32)
        y = jnp.maximum(y, 0.0)
        o_ref[...] = y.reshape(o_ref.shape).astype(o_ref.dtype)


# ----------------------------------------------------------------------------
# Bottleneck3D forward (stride=1, downsample=None => in_planes == 4*planes)
# ----------------------------------------------------------------------------
def bottleneck3d_forward(x_ncdhw, params, compute_dtype=jnp.bfloat16):
    N, C, D, H, W = x_ncdhw.shape
    P = params["w1"].shape[1]
    C4 = params["w3"].shape[1]
    assert C4 == C, "no-downsample bottleneck requires in_planes == 4*planes"

    Pp = _round_up(P, LANE)        # lane-dense planes
    C4p = _round_up(C4, LANE)      # lane-dense output channels
    HW = H * W
    M = N * D * HW

    # One NCDHW -> NDHWC transpose at entry (module contract is NCDHW).
    x_ndhwc = jnp.transpose(x_ncdhw, (0, 2, 3, 4, 1))          # (N,D,H,W,C)

    # ---- fold / zero-pad parameters (padded channels stay exactly zero) ----
    w1 = _pad_last(params["w1"], Pp).astype(compute_dtype)               # (C, Pp)
    s1 = _pad_last(params["s1"].reshape(1, P), Pp).astype(jnp.float32)
    b1 = _pad_last(params["b1"].reshape(1, P), Pp).astype(jnp.float32)

    w2 = params["w2"].reshape(3, 3, 3, P, P)                   # (kd,kh,kw,ci,co)
    w2p = jnp.zeros((3, 3, 3, Pp, Pp), params["w2"].dtype).at[..., :P, :P].set(w2)
    # rows of the contraction dim are ordered kw*Pp + ci (matches the kw-concat)
    w2cat = w2p.reshape(3, 3, 3 * Pp, Pp).astype(compute_dtype)
    s2 = _pad_last(params["s2"].reshape(1, P), Pp).astype(jnp.float32)
    b2 = _pad_last(params["b2"].reshape(1, P), Pp).astype(jnp.float32)

    w3 = jnp.zeros((Pp, C4p), params["w3"].dtype).at[:P, :C4].set(params["w3"])
    w3 = w3.astype(compute_dtype)
    s3 = _pad_last(params["s3"].reshape(1, C4), C4p).astype(jnp.float32)
    b3 = _pad_last(params["b3"].reshape(1, C4), C4p).astype(jnp.float32)

    # bf16 activation streams: conv1 input and (lane-dense) residual.
    x_in = x_ndhwc.astype(compute_dtype)                       # (N,D,H,W,C)
    res = _pad_last(x_in, C4p)                                 # (N,D,H,W,C4p)

    kernel = partial(_bottleneck_kernel, H=H, W=W, D=D, Pp=Pp,
                     mxu_dtype=compute_dtype)

    flops = 2 * M * (C * Pp + 27 * Pp * Pp + Pp * C4p)
    bytes_accessed = 2 * (M * C + 2 * M * C4p                   # x, res, out
                          + C * Pp + 27 * Pp * Pp + Pp * C4p)   # weights

    out = pl.pallas_call(
        kernel,
        out_shape=jax.ShapeDtypeStruct((N, D, H, W, C4p), compute_dtype),
        grid=(N, D + 1),
        in_specs=[
            # conv1 input: depth slab s (clamped; the s == D fetch is unused)
            pl.BlockSpec((1, 1, H, W, C),
                         lambda n, s: (n, jnp.minimum(s, D - 1), 0, 0, 0)),
            pl.BlockSpec((C, Pp), lambda n, s: (0, 0)),
            pl.BlockSpec((1, Pp), lambda n, s: (0, 0)),
            pl.BlockSpec((1, Pp), lambda n, s: (0, 0)),
            # conv2 weights: constant index_map -> fetched once, kept resident
            pl.BlockSpec((3, 3, 3 * Pp, Pp), lambda n, s: (0, 0, 0, 0)),
            pl.BlockSpec((1, Pp), lambda n, s: (0, 0)),
            pl.BlockSpec((1, Pp), lambda n, s: (0, 0)),
            pl.BlockSpec((Pp, C4p), lambda n, s: (0, 0)),
            pl.BlockSpec((1, C4p), lambda n, s: (0, 0)),
            pl.BlockSpec((1, C4p), lambda n, s: (0, 0)),
            # residual slab for the output finalized this step (depth s-1)
            pl.BlockSpec((1, 1, H, W, C4p),
                         lambda n, s: (n, jnp.maximum(s - 1, 0), 0, 0, 0)),
        ],
        out_specs=pl.BlockSpec((1, 1, H, W, C4p),
                               lambda n, s: (n, jnp.maximum(s - 1, 0), 0, 0, 0)),
        scratch_shapes=[
            pltpu.VMEM((3, HW, Pp), jnp.float32),             # rotating conv2 accumulators
            pltpu.VMEM((H + 2, W + 2, Pp), compute_dtype),    # halo-padded conv1 slab
        ],
        compiler_params=pltpu.CompilerParams(
            dimension_semantics=("parallel", "arbitrary"),
            vmem_limit_bytes=64 * 1024 * 1024),
        cost_estimate=pl.CostEstimate(flops=int(flops), transcendentals=0,
                                      bytes_accessed=int(bytes_accessed)),
    )(x_in, w1, s1, b1, w2cat, s2, b2, w3, s3, b3, res)

    out = out[..., :C4]
    return jnp.transpose(out, (0, 4, 1, 2, 3)).astype(jnp.float32)


# ----------------------------------------------------------------------------
# Pure-JAX reference (mirrors PyTorch NCDHW Conv3d semantics) for verification
# ----------------------------------------------------------------------------
def reference_forward(x, params, planes):
    Cin = x.shape[1]

    def bn(y, s, b):
        return y * s[None, :, None, None, None] + b[None, :, None, None, None]

    dn = ("NCDHW", "OIDHW", "NCDHW")
    w1 = jnp.transpose(params["w1"], (1, 0)).reshape(planes, Cin, 1, 1, 1)
    out = lax.conv_general_dilated(x, w1, (1, 1, 1), [(0, 0)] * 3,
                                   dimension_numbers=dn)
    out = jnp.maximum(bn(out, params["s1"], params["b1"]), 0.0)

    w2 = jnp.transpose(params["w2"].reshape(3, 3, 3, planes, planes), (4, 3, 0, 1, 2))
    out = lax.conv_general_dilated(out, w2, (1, 1, 1), [(1, 1)] * 3,
                                   dimension_numbers=dn)
    out = jnp.maximum(bn(out, params["s2"], params["b2"]), 0.0)

    w3 = jnp.transpose(params["w3"], (1, 0)).reshape(Cin, planes, 1, 1, 1)
    out = lax.conv_general_dilated(out, w3, (1, 1, 1), [(0, 0)] * 3,
                                   dimension_numbers=dn)
    out = bn(out, params["s3"], params["b3"]) + x
    return jnp.maximum(out, 0.0)


def make_bn_fold(kg, kb, km, kv, c, eps=1e-5):
    gamma = jax.random.uniform(kg, (c,), jnp.float32, 0.5, 1.5)
    beta = jax.random.normal(kb, (c,), jnp.float32) * 0.1
    mean = jax.random.normal(km, (c,), jnp.float32) * 0.1
    var = jax.random.uniform(kv, (c,), jnp.float32, 0.5, 1.5)
    scale = gamma / jnp.sqrt(var + eps)
    bias = beta - mean * scale
    return scale, bias


if __name__ == "__main__":
    key = jax.random.PRNGKey(0)
    N, D, H, W = 2, 4, 8, 8
    planes = 4
    in_planes = planes * 4          # expansion=4; residual add requires this

    ks = jax.random.split(key, 20)
    x = jax.random.normal(ks[0], (N, in_planes, D, H, W), jnp.float32)

    params = {}
    params["w1"] = jax.random.normal(ks[1], (in_planes, planes), jnp.float32) * 0.1
    params["w2"] = jax.random.normal(ks[2], (27 * planes, planes), jnp.float32) * 0.1
    params["w3"] = jax.random.normal(ks[3], (planes, in_planes), jnp.float32) * 0.1
    params["s1"], params["b1"] = make_bn_fold(ks[4], ks[5], ks[6], ks[7], planes)
    params["s2"], params["b2"] = make_bn_fold(ks[8], ks[9], ks[10], ks[11], planes)
    params["s3"], params["b3"] = make_bn_fold(ks[12], ks[13], ks[14], ks[15], in_planes)

    out = bottleneck3d_forward(x, params)           # bf16 compute, f32 epilogues
    out = jax.block_until_ready(out)

    ref = jax.block_until_ready(reference_forward(x, params, planes))
    np.testing.assert_allclose(np.asarray(out), np.asarray(ref),
                               rtol=3e-2, atol=3e-2)

    print("KERNEL_OK")
</pallas_src>

<mosaic_0001>
module attributes {stable_mosaic.version = 11 : i64} {
  func.func @_bottleneck_kernel(%arg0: i32, %arg1: i32, %arg2: memref<1x1x8x8x16xbf16, #tpu.memory_space<vmem>>, %arg3: memref<16x128xbf16, #tpu.memory_space<vmem>>, %arg4: memref<1x128xf32, #tpu.memory_space<vmem>>, %arg5: memref<1x128xf32, #tpu.memory_space<vmem>>, %arg6: memref<3x3x384x128xbf16, #tpu.memory_space<vmem>>, %arg7: memref<1x128xf32, #tpu.memory_space<vmem>>, %arg8: memref<1x128xf32, #tpu.memory_space<vmem>>, %arg9: memref<128x128xbf16, #tpu.memory_space<vmem>>, %arg10: memref<1x128xf32, #tpu.memory_space<vmem>>, %arg11: memref<1x128xf32, #tpu.memory_space<vmem>>, %arg12: memref<1x1x8x8x128xbf16, #tpu.memory_space<vmem>>, %arg13: memref<1x1x8x8x128xbf16, #tpu.memory_space<vmem>>, %arg14: memref<3x64x128xf32, #tpu.memory_space<vmem>>, %arg15: memref<10x10x128xbf16, #tpu.memory_space<vmem>>) attributes {dimension_semantics = [#tpu.dimension_semantics<parallel>, #tpu.dimension_semantics<arbitrary>], iteration_bounds = array<i64: 2, 5>, scalar_prefetch = 0 : i64, scratch_operands = 2 : i64, tpu.core_type = #tpu.core_type<tc>, window_params = [{transform_indices = @transform_0, window_bounds = array<i64: 1, 1, 8, 8, 16>}, {pipeline_mode = #tpu.pipeline_mode<synchronous>, transform_indices = @transform_1, window_bounds = array<i64: 16, 128>}, {pipeline_mode = #tpu.pipeline_mode<synchronous>, transform_indices = @transform_2, window_bounds = array<i64: 1, 128>}, {pipeline_mode = #tpu.pipeline_mode<synchronous>, transform_indices = @transform_3, window_bounds = array<i64: 1, 128>}, {pipeline_mode = #tpu.pipeline_mode<synchronous>, transform_indices = @transform_4, window_bounds = array<i64: 3, 3, 384, 128>}, {pipeline_mode = #tpu.pipeline_mode<synchronous>, transform_indices = @transform_5, window_bounds = array<i64: 1, 128>}, {pipeline_mode = #tpu.pipeline_mode<synchronous>, transform_indices = @transform_6, window_bounds = array<i64: 1, 128>}, {pipeline_mode = #tpu.pipeline_mode<synchronous>, transform_indices = @transform_7, window_bounds = array<i64: 128, 128>}, {pipeline_mode = #tpu.pipeline_mode<synchronous>, transform_indices = @transform_8, window_bounds = array<i64: 1, 128>}, {pipeline_mode = #tpu.pipeline_mode<synchronous>, transform_indices = @transform_9, window_bounds = array<i64: 1, 128>}, {transform_indices = @transform_10, window_bounds = array<i64: 1, 1, 8, 8, 128>}, {transform_indices = @transform_11, window_bounds = array<i64: 1, 1, 8, 8, 128>}]} {
    %c0_i32 = arith.constant 0 : i32
    %0 = arith.cmpi eq, %arg1, %c0_i32 : i32
    %1 = arith.extui %0 : i1 to i32
    %c0_i32_0 = arith.constant 0 : i32
    %2 = arith.cmpi ne, %1, %c0_i32_0 : i32
    scf.if %2 {
      %cst = arith.constant 0.000000e+00 : bf16
      %13 = vector.broadcast %cst : bf16 to vector<10x10x128xbf16>
      %c0 = arith.constant 0 : index
      %c0_6 = arith.constant 0 : index
      %c0_7 = arith.constant 0 : index
      %14 = vector.load %arg15[%c0, %c0_6, %c0_7] : memref<10x10x128xbf16, #tpu.memory_space<vmem>>, vector<10x10x128xbf16>
      tpu.vector_store %arg15[%c0, %c0_6, %c0_7], %13 {strides = array<i32>} : memref<10x10x128xbf16, #tpu.memory_space<vmem>>, vector<10x10x128xbf16>,
      %cst_8 = arith.constant 0.000000e+00 : f32
      %15 = vector.broadcast %cst_8 : f32 to vector<64x128xf32>
      %c0_9 = arith.constant 0 : index
      %c0_10 = arith.constant 0 : index
      %c0_11 = arith.constant 0 : index
      %16 = vector.load %arg14[%c0_9, %c0_10, %c0_11] : memref<3x64x128xf32, #tpu.memory_space<vmem>>, vector<1x64x128xf32>
      %17 = vector.shape_cast %16 : vector<1x64x128xf32> to vector<64x128xf32>
      %18 = vector.shape_cast %15 : vector<64x128xf32> to vector<1x64x128xf32>
      tpu.vector_store %arg14[%c0_9, %c0_10, %c0_11], %18 {strides = array<i32>} : memref<3x64x128xf32, #tpu.memory_space<vmem>>, vector<1x64x128xf32>,
    } else {
    }
    %c1_i32 = arith.constant 1 : i32
    %3 = arith.addi %arg1, %c1_i32 : i32
    %c4_i32 = arith.constant 4 : i32
    %4 = arith.cmpi slt, %3, %c4_i32 : i32
    %5 = arith.extui %4 : i1 to i32
    %c0_i32_1 = arith.constant 0 : i32
    %6 = arith.cmpi ne, %5, %c0_i32_1 : i32
    scf.if %6 {
      %cst = arith.constant 0.000000e+00 : f32
      %13 = vector.broadcast %cst : f32 to vector<64x128xf32>
      %c1_i32_6 = arith.constant 1 : i32
      %14 = arith.addi %arg1, %c1_i32_6 : i32
      %c3_i32 = arith.constant 3 : i32
      %15 = arith.remsi %14, %c3_i32 : i32
      %16 = arith.index_cast %15 : i32 to index
      %c0 = arith.constant 0 : index
      %c0_7 = arith.constant 0 : index
      %17 = vector.load %arg14[%16, %c0, %c0_7] : memref<3x64x128xf32, #tpu.memory_space<vmem>>, vector<1x64x128xf32>
      %18 = vector.shape_cast %17 : vector<1x64x128xf32> to vector<64x128xf32>
      %19 = vector.shape_cast %13 : vector<64x128xf32> to vector<1x64x128xf32>
      tpu.vector_store %arg14[%16, %c0, %c0_7], %19 {strides = array<i32>} : memref<3x64x128xf32, #tpu.memory_space<vmem>>, vector<1x64x128xf32>,
    } else {
    }
    %c4_i32_2 = arith.constant 4 : i32
    %7 = arith.cmpi slt, %arg1, %c4_i32_2 : i32
    %8 = arith.extui %7 : i1 to i32
    %c0_i32_3 = arith.constant 0 : i32
    %9 = arith.cmpi ne, %8, %c0_i32_3 : i32
    scf.if %9 {
      %c0 = arith.constant 0 : index
      %c0_6 = arith.constant 0 : index
      %c0_7 = arith.constant 0 : index
      %c0_8 = arith.constant 0 : index
      %c0_9 = arith.constant 0 : index
      %13 = vector.load %arg2[%c0, %c0_6, %c0_7, %c0_8, %c0_9] : memref<1x1x8x8x16xbf16, #tpu.memory_space<vmem>>, vector<1x1x8x8x16xbf16>
      %14 = vector.shape_cast %13 : vector<1x1x8x8x16xbf16> to vector<8x8x16xbf16>
      %15 = vector.shape_cast %14 : vector<8x8x16xbf16> to vector<64x16xbf16>
      %c0_10 = arith.constant 0 : index
      %c0_11 = arith.constant 0 : index
      %16 = vector.load %arg3[%c0_10, %c0_11] : memref<16x128xbf16, #tpu.memory_space<vmem>>, vector<16x128xbf16>
      %cst = arith.constant dense<0.000000e+00> : vector<64x128xf32>
      %17 = tpu.matmul %15, %16, %cst {dimension_numbers = #tpu.dot_dimension_numbers<[1], [0], [0], [1], [0, 0, 1, 1], [], []>} : vector<64x16xbf16>, vector<16x128xbf16>, vector<64x128xf32> -> vector<64x128xf32>
      %c0_12 = arith.constant 0 : index
      %c0_13 = arith.constant 0 : index
      %18 = vector.load %arg4[%c0_12, %c0_13] : memref<1x128xf32, #tpu.memory_space<vmem>>, vector<1x128xf32>
      %19 = vector.broadcast %18 : vector<1x128xf32> to vector<64x128xf32>
      %20 = arith.mulf %17, %19 : vector<64x128xf32>
      %c0_14 = arith.constant 0 : index
      %c0_15 = arith.constant 0 : index
      %21 = vector.load %arg5[%c0_14, %c0_15] : memref<1x128xf32, #tpu.memory_space<vmem>>, vector<1x128xf32>
      %22 = vector.broadcast %21 : vector<1x128xf32> to vector<64x128xf32>
      %23 = arith.addf %20, %22 : vector<64x128xf32>
      %cst_16 = arith.constant 0.000000e+00 : f32
      %24 = vector.broadcast %cst_16 : f32 to vector<64x128xf32>
      %25 = arith.maximumf %23, %24 : vector<64x128xf32>
      %26 = arith.truncf %25 : vector<64x128xf32> to vector<64x128xbf16>
      %27 = vector.shape_cast %26 : vector<64x128xbf16> to vector<8x8x128xbf16>
      %c1 = arith.constant 1 : index
      %c1_17 = arith.constant 1 : index
      %c0_18 = arith.constant 0 : index
      %28 = vector.load %arg15[%c1, %c1_17, %c0_18] : memref<10x10x128xbf16, #tpu.memory_space<vmem>>, vector<8x8x128xbf16>
      tpu.vector_store %arg15[%c1, %c1_17, %c0_18], %27 {strides = array<i32>} : memref<10x10x128xbf16, #tpu.memory_space<vmem>>, vector<8x8x128xbf16>,
      %c0_19 = arith.constant 0 : index
      %c0_20 = arith.constant 0 : index
      %c0_21 = arith.constant 0 : index
      %29 = vector.load %arg15[%c0_19, %c0_20, %c0_21] : memref<10x10x128xbf16, #tpu.memory_space<vmem>>, vector<8x8x128xbf16>
      %c0_22 = arith.constant 0 : index
      %c1_23 = arith.constant 1 : index
      %c0_24 = arith.constant 0 : index
      %30 = vector.load %arg15[%c0_22, %c1_23, %c0_24] : memref<10x10x128xbf16, #tpu.memory_space<vmem>>, vector<8x8x128xbf16>
      %c0_25 = arith.constant 0 : index
      %c2 = arith.constant 2 : index
      %c0_26 = arith.constant 0 : index
      %31 = vector.load %arg15[%c0_25, %c2, %c0_26] : memref<10x10x128xbf16, #tpu.memory_space<vmem>>, vector<8x8x128xbf16>
      %32 = tpu.concatenate %29, %30, %31 in 2 : vector<8x8x128xbf16>, vector<8x8x128xbf16>, vector<8x8x128xbf16> -> vector<8x8x384xbf16>
      %33 = vector.shape_cast %32 : vector<8x8x384xbf16> to vector<64x384xbf16>
      %c1_27 = arith.constant 1 : index
      %c0_28 = arith.constant 0 : index
      %c0_29 = arith.constant 0 : index
      %34 = vector.load %arg15[%c1_27, %c0_28, %c0_29] : memref<10x10x128xbf16, #tpu.memory_space<vmem>>, vector<8x8x128xbf16>
      %c1_30 = arith.constant 1 : index
      %c1_31 = arith.constant 1 : index
      %c0_32 = arith.constant 0 : index
      %35 = vector.load %arg15[%c1_30, %c1_31, %c0_32] : memref<10x10x128xbf16, #tpu.memory_space<vmem>>, vector<8x8x128xbf16>
      %c1_33 = arith.constant 1 : index
      %c2_34 = arith.constant 2 : index
      %c0_35 = arith.constant 0 : index
      %36 = vector.load %arg15[%c1_33, %c2_34, %c0_35] : memref<10x10x128xbf16, #tpu.memory_space<vmem>>, vector<8x8x128xbf16>
      %37 = tpu.concatenate %34, %35, %36 in 2 : vector<8x8x128xbf16>, vector<8x8x128xbf16>, vector<8x8x128xbf16> -> vector<8x8x384xbf16>
      %38 = vector.shape_cast %37 : vector<8x8x384xbf16> to vector<64x384xbf16>
      %c2_36 = arith.constant 2 : index
      %c0_37 = arith.constant 0 : index
      %c0_38 = arith.constant 0 : index
      %39 = vector.load %arg15[%c2_36, %c0_37, %c0_38] : memref<10x10x128xbf16, #tpu.memory_space<vmem>>, vector<8x8x128xbf16>
      %c2_39 = arith.constant 2 : index
      %c1_40 = arith.constant 1 : index
      %c0_41 = arith.constant 0 : index
      %40 = vector.load %arg15[%c2_39, %c1_40, %c0_41] : memref<10x10x128xbf16, #tpu.memory_space<vmem>>, vector<8x8x128xbf16>
      %c2_42 = arith.constant 2 : index
      %c2_43 = arith.constant 2 : index
      %c0_44 = arith.constant 0 : index
      %41 = vector.load %arg15[%c2_42, %c2_43, %c0_44] : memref<10x10x128xbf16, #tpu.memory_space<vmem>>, vector<8x8x128xbf16>
      %42 = tpu.concatenate %39, %40, %41 in 2 : vector<8x8x128xbf16>, vector<8x8x128xbf16>, vector<8x8x128xbf16> -> vector<8x8x384xbf16>
      %43 = vector.shape_cast %42 : vector<8x8x384xbf16> to vector<64x384xbf16>
      %c1_i32_45 = arith.constant 1 : i32
      %44 = arith.addi %arg1, %c1_i32_45 : i32
      %c0_i32_46 = arith.constant 0 : i32
      %45 = arith.subi %44, %c0_i32_46 : i32
      %c0_i32_47 = arith.constant 0 : i32
      %46 = arith.cmpi sge, %45, %c0_i32_47 : i32
      %c4_i32_48 = arith.constant 4 : i32
      %47 = arith.cmpi slt, %45, %c4_i32_48 : i32
      %48 = arith.andi %46, %47 : i1
      %49 = arith.extui %48 : i1 to i32
      %c0_i32_49 = arith.constant 0 : i32
      %50 = arith.cmpi ne, %49, %c0_i32_49 : i32
      scf.if %50 {
        %c0_59 = arith.constant 0 : index
        %c0_60 = arith.constant 0 : index
        %c0_61 = arith.constant 0 : index
        %c0_62 = arith.constant 0 : index
        %65 = vector.load %arg6[%c0_59, %c0_60, %c0_61, %c0_62] : memref<3x3x384x128xbf16, #tpu.memory_space<vmem>>, vector<1x1x384x128xbf16>
        %66 = vector.shape_cast %65 : vector<1x1x384x128xbf16> to vector<384x128xbf16>
        %cst_63 = arith.constant dense<0.000000e+00> : vector<64x128xf32>
        %67 = tpu.matmul %33, %66, %cst_63 {dimension_numbers = #tpu.dot_dimension_numbers<[1], [0], [0], [1], [0, 0, 1, 1], [], []>} : vector<64x384xbf16>, vector<384x128xbf16>, vector<64x128xf32> -> vector<64x128xf32>
        %c0_64 = arith.constant 0 : index
        %c1_65 = arith.constant 1 : index
        %c0_66 = arith.constant 0 : index
        %c0_67 = arith.constant 0 : index
        %68 = vector.load %arg6[%c0_64, %c1_65, %c0_66, %c0_67] : memref<3x3x384x128xbf16, #tpu.memory_space<vmem>>, vector<1x1x384x128xbf16>
        %69 = vector.shape_cast %68 : vector<1x1x384x128xbf16> to vector<384x128xbf16>
        %cst_68 = arith.constant dense<0.000000e+00> : vector<64x128xf32>
        %70 = tpu.matmul %38, %69, %cst_68 {dimension_numbers = #tpu.dot_dimension_numbers<[1], [0], [0], [1], [0, 0, 1, 1], [], []>} : vector<64x384xbf16>, vector<384x128xbf16>, vector<64x128xf32> -> vector<64x128xf32>
        %71 = arith.addf %67, %70 : vector<64x128xf32>
        %c0_69 = arith.constant 0 : index
        %c2_70 = arith.constant 2 : index
        %c0_71 = arith.constant 0 : index
        %c0_72 = arith.constant 0 : index
        %72 = vector.load %arg6[%c0_69, %c2_70, %c0_71, %c0_72] : memref<3x3x384x128xbf16, #tpu.memory_space<vmem>>, vector<1x1x384x128xbf16>
        %73 = vector.shape_cast %72 : vector<1x1x384x128xbf16> to vector<384x128xbf16>
        %cst_73 = arith.constant dense<0.000000e+00> : vector<64x128xf32>
        %74 = tpu.matmul %43, %73, %cst_73 {dimension_numbers = #tpu.dot_dimension_numbers<[1], [0], [0], [1], [0, 0, 1, 1], [], []>} : vector<64x384xbf16>, vector<384x128xbf16>, vector<64x128xf32> -> vector<64x128xf32>
        %75 = arith.addf %71, %74 : vector<64x128xf32>
        %c3_i32 = arith.constant 3 : i32
        %76 = arith.remsi %45, %c3_i32 : i32
        %77 = arith.index_cast %76 : i32 to index
        %c0_74 = arith.constant 0 : index
        %c0_75 = arith.constant 0 : index
        %78 = vector.load %arg14[%77, %c0_74, %c0_75] : memref<3x64x128xf32, #tpu.memory_space<vmem>>, vector<1x64x128xf32>
        %79 = vector.shape_cast %78 : vector<1x64x128xf32> to vector<64x128xf32>
        %80 = arith.addf %79, %75 : vector<64x128xf32>
        %81 = arith.index_cast %76 : i32 to index
        %c0_76 = arith.constant 0 : index
        %c0_77 = arith.constant 0 : index
        %82 = vector.load %arg14[%81, %c0_76, %c0_77] : memref<3x64x128xf32, #tpu.memory_space<vmem>>, vector<1x64x128xf32>
        %83 = vector.shape_cast %82 : vector<1x64x128xf32> to vector<64x128xf32>
        %84 = vector.shape_cast %80 : vector<64x128xf32> to vector<1x64x128xf32>
        tpu.vector_store %arg14[%81, %c0_76, %c0_77], %84 {strides = array<i32>} : memref<3x64x128xf32, #tpu.memory_space<vmem>>, vector<1x64x128xf32>,
      } else {
      }
      %c1_i32_50 = arith.constant 1 : i32
      %51 = arith.addi %arg1, %c1_i32_50 : i32
      %c1_i32_51 = arith.constant 1 : i32
      %52 = arith.subi %51, %c1_i32_51 : i32
      %c0_i32_52 = arith.constant 0 : i32
      %53 = arith.cmpi sge, %52, %c0_i32_52 : i32
      %c4_i32_53 = arith.constant 4 : i32
      %54 = arith.cmpi slt, %52, %c4_i32_53 : i32
      %55 = arith.andi %53, %54 : i1
      %56 = arith.extui %55 : i1 to i32
      %c0_i32_54 = arith.constant 0 : i32
      %57 = arith.cmpi ne, %56, %c0_i32_54 : i32
      scf.if %57 {
        %c1_59 = arith.constant 1 : index
        %c0_60 = arith.constant 0 : index
        %c0_61 = arith.constant 0 : index
        %c0_62 = arith.constant 0 : index
        %65 = vector.load %arg6[%c1_59, %c0_60, %c0_61, %c0_62] : memref<3x3x384x128xbf16, #tpu.memory_space<vmem>>, vector<1x1x384x128xbf16>
        %66 = vector.shape_cast %65 : vector<1x1x384x128xbf16> to vector<384x128xbf16>
        %cst_63 = arith.constant dense<0.000000e+00> : vector<64x128xf32>
        %67 = tpu.matmul %33, %66, %cst_63 {dimension_numbers = #tpu.dot_dimension_numbers<[1], [0], [0], [1], [0, 0, 1, 1], [], []>} : vector<64x384xbf16>, vector<384x128xbf16>, vector<64x128xf32> -> vector<64x128xf32>
        %c1_64 = arith.constant 1 : index
        %c1_65 = arith.constant 1 : index
        %c0_66 = arith.constant 0 : index
        %c0_67 = arith.constant 0 : index
        %68 = vector.load %arg6[%c1_64, %c1_65, %c0_66, %c0_67] : memref<3x3x384x128xbf16, #tpu.memory_space<vmem>>, vector<1x1x384x128xbf16>
        %69 = vector.shape_cast %68 : vector<1x1x384x128xbf16> to vector<384x128xbf16>
        %cst_68 = arith.constant dense<0.000000e+00> : vector<64x128xf32>
        %70 = tpu.matmul %38, %69, %cst_68 {dimension_numbers = #tpu.dot_dimension_numbers<[1], [0], [0], [1], [0, 0, 1, 1], [], []>} : vector<64x384xbf16>, vector<384x128xbf16>, vector<64x128xf32> -> vector<64x128xf32>
        %71 = arith.addf %67, %70 : vector<64x128xf32>
        %c1_69 = arith.constant 1 : index
        %c2_70 = arith.constant 2 : index
        %c0_71 = arith.constant 0 : index
        %c0_72 = arith.constant 0 : index
        %72 = vector.load %arg6[%c1_69, %c2_70, %c0_71, %c0_72] : memref<3x3x384x128xbf16, #tpu.memory_space<vmem>>, vector<1x1x384x128xbf16>
        %73 = vector.shape_cast %72 : vector<1x1x384x128xbf16> to vector<384x128xbf16>
        %cst_73 = arith.constant dense<0.000000e+00> : vector<64x128xf32>
        %74 = tpu.matmul %43, %73, %cst_73 {dimension_numbers = #tpu.dot_dimension_numbers<[1], [0], [0], [1], [0, 0, 1, 1], [], []>} : vector<64x384xbf16>, vector<384x128xbf16>, vector<64x128xf32> -> vector<64x128xf32>
        %75 = arith.addf %71, %74 : vector<64x128xf32>
        %c3_i32 = arith.constant 3 : i32
        %76 = arith.remsi %52, %c3_i32 : i32
        %77 = arith.index_cast %76 : i32 to index
        %c0_74 = arith.constant 0 : index
        %c0_75 = arith.constant 0 : index
        %78 = vector.load %arg14[%77, %c0_74, %c0_75] : memref<3x64x128xf32, #tpu.memory_space<vmem>>, vector<1x64x128xf32>
        %79 = vector.shape_cast %78 : vector<1x64x128xf32> to vector<64x128xf32>
        %80 = arith.addf %79, %75 : vector<64x128xf32>
        %81 = arith.index_cast %76 : i32 to index
        %c0_76 = arith.constant 0 : index
        %c0_77 = arith.constant 0 : index
        %82 = vector.load %arg14[%81, %c0_76, %c0_77] : memref<3x64x128xf32, #tpu.memory_space<vmem>>, vector<1x64x128xf32>
        %83 = vector.shape_cast %82 : vector<1x64x128xf32> to vector<64x128xf32>
        %84 = vector.shape_cast %80 : vector<64x128xf32> to vector<1x64x128xf32>
        tpu.vector_store %arg14[%81, %c0_76, %c0_77], %84 {strides = array<i32>} : memref<3x64x128xf32, #tpu.memory_space<vmem>>, vector<1x64x128xf32>,
      } else {
      }
      %c1_i32_55 = arith.constant 1 : i32
      %58 = arith.addi %arg1, %c1_i32_55 : i32
      %c2_i32 = arith.constant 2 : i32
      %59 = arith.subi %58, %c2_i32 : i32
      %c0_i32_56 = arith.constant 0 : i32
      %60 = arith.cmpi sge, %59, %c0_i32_56 : i32
      %c4_i32_57 = arith.constant 4 : i32
      %61 = arith.cmpi slt, %59, %c4_i32_57 : i32
      %62 = arith.andi %60, %61 : i1
      %63 = arith.extui %62 : i1 to i32
      %c0_i32_58 = arith.constant 0 : i32
      %64 = arith.cmpi ne, %63, %c0_i32_58 : i32
      scf.if %64 {
        %c2_59 = arith.constant 2 : index
        %c0_60 = arith.constant 0 : index
        %c0_61 = arith.constant 0 : index
        %c0_62 = arith.constant 0 : index
        %65 = vector.load %arg6[%c2_59, %c0_60, %c0_61, %c0_62] : memref<3x3x384x128xbf16, #tpu.memory_space<vmem>>, vector<1x1x384x128xbf16>
        %66 = vector.shape_cast %65 : vector<1x1x384x128xbf16> to vector<384x128xbf16>
        %cst_63 = arith.constant dense<0.000000e+00> : vector<64x128xf32>
        %67 = tpu.matmul %33, %66, %cst_63 {dimension_numbers = #tpu.dot_dimension_numbers<[1], [0], [0], [1], [0, 0, 1, 1], [], []>} : vector<64x384xbf16>, vector<384x128xbf16>, vector<64x128xf32> -> vector<64x128xf32>
        %c2_64 = arith.constant 2 : index
        %c1_65 = arith.constant 1 : index
        %c0_66 = arith.constant 0 : index
        %c0_67 = arith.constant 0 : index
        %68 = vector.load %arg6[%c2_64, %c1_65, %c0_66, %c0_67] : memref<3x3x384x128xbf16, #tpu.memory_space<vmem>>, vector<1x1x384x128xbf16>
        %69 = vector.shape_cast %68 : vector<1x1x384x128xbf16> to vector<384x128xbf16>
        %cst_68 = arith.constant dense<0.000000e+00> : vector<64x128xf32>
        %70 = tpu.matmul %38, %69, %cst_68 {dimension_numbers = #tpu.dot_dimension_numbers<[1], [0], [0], [1], [0, 0, 1, 1], [], []>} : vector<64x384xbf16>, vector<384x128xbf16>, vector<64x128xf32> -> vector<64x128xf32>
        %71 = arith.addf %67, %70 : vector<64x128xf32>
        %c2_69 = arith.constant 2 : index
        %c2_70 = arith.constant 2 : index
        %c0_71 = arith.constant 0 : index
        %c0_72 = arith.constant 0 : index
        %72 = vector.load %arg6[%c2_69, %c2_70, %c0_71, %c0_72] : memref<3x3x384x128xbf16, #tpu.memory_space<vmem>>, vector<1x1x384x128xbf16>
        %73 = vector.shape_cast %72 : vector<1x1x384x128xbf16> to vector<384x128xbf16>
        %cst_73 = arith.constant dense<0.000000e+00> : vector<64x128xf32>
        %74 = tpu.matmul %43, %73, %cst_73 {dimension_numbers = #tpu.dot_dimension_numbers<[1], [0], [0], [1], [0, 0, 1, 1], [], []>} : vector<64x384xbf16>, vector<384x128xbf16>, vector<64x128xf32> -> vector<64x128xf32>
        %75 = arith.addf %71, %74 : vector<64x128xf32>
        %c3_i32 = arith.constant 3 : i32
        %76 = arith.remsi %59, %c3_i32 : i32
        %77 = arith.index_cast %76 : i32 to index
        %c0_74 = arith.constant 0 : index
        %c0_75 = arith.constant 0 : index
        %78 = vector.load %arg14[%77, %c0_74, %c0_75] : memref<3x64x128xf32, #tpu.memory_space<vmem>>, vector<1x64x128xf32>
        %79 = vector.shape_cast %78 : vector<1x64x128xf32> to vector<64x128xf32>
        %80 = arith.addf %79, %75 : vector<64x128xf32>
        %81 = arith.index_cast %76 : i32 to index
        %c0_76 = arith.constant 0 : index
        %c0_77 = arith.constant 0 : index
        %82 = vector.load %arg14[%81, %c0_76, %c0_77] : memref<3x64x128xf32, #tpu.memory_space<vmem>>, vector<1x64x128xf32>
        %83 = vector.shape_cast %82 : vector<1x64x128xf32> to vector<64x128xf32>
        %84 = vector.shape_cast %80 : vector<64x128xf32> to vector<1x64x128xf32>
        tpu.vector_store %arg14[%81, %c0_76, %c0_77], %84 {strides = array<i32>} : memref<3x64x128xf32, #tpu.memory_space<vmem>>, vector<1x64x128xf32>,
      } else {
      }
    } else {
    }
    %c1_i32_4 = arith.constant 1 : i32
    %10 = arith.cmpi sge, %arg1, %c1_i32_4 : i32
    %11 = arith.extui %10 : i1 to i32
    %c0_i32_5 = arith.constant 0 : i32
    %12 = arith.cmpi ne, %11, %c0_i32_5 : i32
    scf.if %12 {
      %c1_i32_6 = arith.constant 1 : i32
      %13 = arith.subi %arg1, %c1_i32_6 : i32
      %c3_i32 = arith.constant 3 : i32
      %14 = arith.remsi %13, %c3_i32 : i32
      %15 = arith.index_cast %14 : i32 to index
      %c0 = arith.constant 0 : index
      %c0_7 = arith.constant 0 : index
      %16 = vector.load %arg14[%15, %c0, %c0_7] : memref<3x64x128xf32, #tpu.memory_space<vmem>>, vector<1x64x128xf32>
      %17 = vector.shape_cast %16 : vector<1x64x128xf32> to vector<64x128xf32>
      %c0_8 = arith.constant 0 : index
      %c0_9 = arith.constant 0 : index
      %18 = vector.load %arg7[%c0_8, %c0_9] : memref<1x128xf32, #tpu.memory_space<vmem>>, vector<1x128xf32>
      %19 = vector.broadcast %18 : vector<1x128xf32> to vector<64x128xf32>
      %20 = arith.mulf %17, %19 : vector<64x128xf32>
      %c0_10 = arith.constant 0 : index
      %c0_11 = arith.constant 0 : index
      %21 = vector.load %arg8[%c0_10, %c0_11] : memref<1x128xf32, #tpu.memory_space<vmem>>, vector<1x128xf32>
      %22 = vector.broadcast %21 : vector<1x128xf32> to vector<64x128xf32>
      %23 = arith.addf %20, %22 : vector<64x128xf32>
      %cst = arith.constant 0.000000e+00 : f32
      %24 = vector.broadcast %cst : f32 to vector<64x128xf32>
      %25 = arith.maximumf %23, %24 : vector<64x128xf32>
      %26 = arith.truncf %25 : vector<64x128xf32> to vector<64x128xbf16>
      %c0_12 = arith.constant 0 : index
      %c0_13 = arith.constant 0 : index
      %27 = vector.load %arg9[%c0_12, %c0_13] : memref<128x128xbf16, #tpu.memory_space<vmem>>, vector<128x128xbf16>
      %cst_14 = arith.constant dense<0.000000e+00> : vector<64x128xf32>
      %28 = tpu.matmul %26, %27, %cst_14 {dimension_numbers = #tpu.dot_dimension_numbers<[1], [0], [0], [1], [0, 0, 1, 1], [], []>} : vector<64x128xbf16>, vector<128x128xbf16>, vector<64x128xf32> -> vector<64x128xf32>
      %c0_15 = arith.constant 0 : index
      %c0_16 = arith.constant 0 : index
      %29 = vector.load %arg10[%c0_15, %c0_16] : memref<1x128xf32, #tpu.memory_space<vmem>>, vector<1x128xf32>
      %30 = vector.broadcast %29 : vector<1x128xf32> to vector<64x128xf32>
      %31 = arith.mulf %28, %30 : vector<64x128xf32>
      %c0_17 = arith.constant 0 : index
      %c0_18 = arith.constant 0 : index
      %32 = vector.load %arg11[%c0_17, %c0_18] : memref<1x128xf32, #tpu.memory_space<vmem>>, vector<1x128xf32>
      %33 = vector.broadcast %32 : vector<1x128xf32> to vector<64x128xf32>
      %34 = arith.addf %31, %33 : vector<64x128xf32>
      %c0_19 = arith.constant 0 : index
      %c0_20 = arith.constant 0 : index
      %c0_21 = arith.constant 0 : index
      %c0_22 = arith.constant 0 : index
      %c0_23 = arith.constant 0 : index
      %35 = vector.load %arg12[%c0_19, %c0_20, %c0_21, %c0_22, %c0_23] : memref<1x1x8x8x128xbf16, #tpu.memory_space<vmem>>, vector<1x1x8x8x128xbf16>
      %36 = vector.shape_cast %35 : vector<1x1x8x8x128xbf16> to vector<64x128xbf16>
      %37 = arith.extf %36 : vector<64x128xbf16> to vector<64x128xf32>
      %38 = arith.addf %34, %37 : vector<64x128xf32>
      %cst_24 = arith.constant 0.000000e+00 : f32
      %39 = vector.broadcast %cst_24 : f32 to vector<64x128xf32>
      %40 = arith.maximumf %38, %39 : vector<64x128xf32>
      %41 = vector.shape_cast %40 : vector<64x128xf32> to vector<1x1x8x8x128xf32>
      %42 = arith.truncf %41 : vector<1x1x8x8x128xf32> to vector<1x1x8x8x128xbf16>
      %c0_25 = arith.constant 0 : index
      %c0_26 = arith.constant 0 : index
      %c0_27 = arith.constant 0 : index
      %c0_28 = arith.constant 0 : index
      %c0_29 = arith.constant 0 : index
      %43 = vector.load %arg13[%c0_25, %c0_26, %c0_27, %c0_28, %c0_29] : memref<1x1x8x8x128xbf16, #tpu.memory_space<vmem>>, vector<1x1x8x8x128xbf16>
      tpu.vector_store %arg13[%c0_25, %c0_26, %c0_27, %c0_28, %c0_29], %42 {strides = array<i32>} : memref<1x1x8x8x128xbf16, #tpu.memory_space<vmem>>, vector<1x1x8x8x128xbf16>,
    } else {
    }
    return
  }
  func.func @transform_0(%arg0: i32, %arg1: i32) -> (i32, i32, i32, i32, i32) {
    %c3_i32 = arith.constant 3 : i32
    %0 = arith.minsi %arg1, %c3_i32 : i32
    %c0_i32 = arith.constant 0 : i32
    %c0_i32_0 = arith.constant 0 : i32
    %c0_i32_1 = arith.constant 0 : i32
    %c0_i32_2 = arith.constant 0 : i32
    return %arg0, %0, %c0_i32, %c0_i32_0, %c0_i32_1 : i32, i32, i32, i32, i32
  }
  func.func @transform_1(%arg0: i32, %arg1: i32) -> (i32, i32) {
    %c0_i32 = arith.constant 0 : i32
    %c0_i32_0 = arith.constant 0 : i32
    %c0_i32_1 = arith.constant 0 : i32
    return %c0_i32, %c0_i32_0 : i32, i32
  }
  func.func @transform_2(%arg0: i32, %arg1: i32) -> (i32, i32) {
    %c0_i32 = arith.constant 0 : i32
    %c0_i32_0 = arith.constant 0 : i32
    %c0_i32_1 = arith.constant 0 : i32
    return %c0_i32, %c0_i32_0 : i32, i32
  }
  func.func @transform_3(%arg0: i32, %arg1: i32) -> (i32, i32) {
    %c0_i32 = arith.constant 0 : i32
    %c0_i32_0 = arith.constant 0 : i32
    %c0_i32_1 = arith.constant 0 : i32
    return %c0_i32, %c0_i32_0 : i32, i32
  }
  func.func @transform_4(%arg0: i32, %arg1: i32) -> (i32, i32, i32, i32) {
    %c0_i32 = arith.constant 0 : i32
    %c0_i32_0 = arith.constant 0 : i32
    %c0_i32_1 = arith.constant 0 : i32
    %c0_i32_2 = arith.constant 0 : i32
    %c0_i32_3 = arith.constant 0 : i32
    return %c0_i32, %c0_i32_0, %c0_i32_1, %c0_i32_2 : i32, i32, i32, i32
  }
  func.func @transform_5(%arg0: i32, %arg1: i32) -> (i32, i32) {
    %c0_i32 = arith.constant 0 : i32
    %c0_i32_0 = arith.constant 0 : i32
    %c0_i32_1 = arith.constant 0 : i32
    return %c0_i32, %c0_i32_0 : i32, i32
  }
  func.func @transform_6(%arg0: i32, %arg1: i32) -> (i32, i32) {
    %c0_i32 = arith.constant 0 : i32
    %c0_i32_0 = arith.constant 0 : i32
    %c0_i32_1 = arith.constant 0 : i32
    return %c0_i32, %c0_i32_0 : i32, i32
  }
  func.func @transform_7(%arg0: i32, %arg1: i32) -> (i32, i32) {
    %c0_i32 = arith.constant 0 : i32
    %c0_i32_0 = arith.constant 0 : i32
    %c0_i32_1 = arith.constant 0 : i32
    return %c0_i32, %c0_i32_0 : i32, i32
  }
  func.func @transform_8(%arg0: i32, %arg1: i32) -> (i32, i32) {
    %c0_i32 = arith.constant 0 : i32
    %c0_i32_0 = arith.constant 0 : i32
    %c0_i32_1 = arith.constant 0 : i32
    return %c0_i32, %c0_i32_0 : i32, i32
  }
  func.func @transform_9(%arg0: i32, %arg1: i32) -> (i32, i32) {
    %c0_i32 = arith.constant 0 : i32
    %c0_i32_0 = arith.constant 0 : i32
    %c0_i32_1 = arith.constant 0 : i32
    return %c0_i32, %c0_i32_0 : i32, i32
  }
  func.func @transform_10(%arg0: i32, %arg1: i32) -> (i32, i32, i32, i32, i32) {
    %c1_i32 = arith.constant 1 : i32
    %0 = arith.subi %arg1, %c1_i32 : i32
    %c0_i32 = arith.constant 0 : i32
    %1 = arith.maxsi %0, %c0_i32 : i32
    %c0_i32_0 = arith.constant 0 : i32
    %c0_i32_1 = arith.constant 0 : i32
    %c0_i32_2 = arith.constant 0 : i32
    %c0_i32_3 = arith.constant 0 : i32
    return %arg0, %1, %c0_i32_0, %c0_i32_1, %c0_i32_2 : i32, i32, i32, i32, i32
  }
  func.func @transform_11(%arg0: i32, %arg1: i32) -> (i32, i32, i32, i32, i32) {
    %c1_i32 = arith.constant 1 : i32
    %0 = arith.subi %arg1, %c1_i32 : i32
    %c0_i32 = arith.constant 0 : i32
    %1 = arith.maxsi %0, %c0_i32 : i32
    %c0_i32_0 = arith.constant 0 : i32
    %c0_i32_1 = arith.constant 0 : i32
    %c0_i32_2 = arith.constant 0 : i32
    %c0_i32_3 = arith.constant 0 : i32
    return %arg0, %1, %c0_i32_0, %c0_i32_1, %c0_i32_2 : i32, i32, i32, i32, i32
  }
}

</mosaic_0001>

<llo_original>
// kernel: tpu_custom_call.1
$region0: #{tpu_custom_call.1}
  #allocation0 [shape = 'u32[]', space=smem, size = 0x4, offset = 0x4, fixed_abs, tag = 'smem constant byte address 0x4 - core index']
  #allocation1 [shape = 'u32[72,128]{1,0:T(1,128)}', space=vmem, size = 0x9000, scoped, tag = 'internal scratch']
  #allocation2 [shape = 'f32[3,64,128]{2,1,0:T(8,128)}', space=vmem, size = 0x18000, scoped, tag = 'scratch operand']
  #allocation3 [shape = 'bf16[10,10,128]{2,1,0:T(8,128)(2,1)}', space=vmem, size = 0xa000, scoped, tag = 'scratch operand']
  %s0 = inlined_call_operand.hbm [shape: bf16[2,4,8,8,16], index: 0, kind: input, shape index: {}]
  %s1 = inlined_call_operand.hbm [shape: bf16[16,128], index: 1, kind: input, shape index: {}]
  %s2 = inlined_call_operand.vmem [shape: f32[1,128], index: 2, kind: input, shape index: {}]
  %s3 = inlined_call_operand.vmem [shape: f32[1,128], index: 3, kind: input, shape index: {}]
  %s4 = inlined_call_operand.hbm [shape: bf16[3,3,384,128], index: 4, kind: input, shape index: {}]
  %s5 = inlined_call_operand.vmem [shape: f32[1,128], index: 5, kind: input, shape index: {}]
  %s6 = inlined_call_operand.vmem [shape: f32[1,128], index: 6, kind: input, shape index: {}]
  %s7 = inlined_call_operand.hbm [shape: bf16[128,128], index: 7, kind: input, shape index: {}]
  %s8 = inlined_call_operand.vmem [shape: f32[1,128], index: 8, kind: input, shape index: {}]
  %s9 = inlined_call_operand.vmem [shape: f32[1,128], index: 9, kind: input, shape index: {}]
  %s10 = inlined_call_operand.hbm [shape: bf16[2,4,8,8,128], index: 10, kind: input, shape index: {}]
  %s11 = inlined_call_operand.hbm [shape: bf16[2,4,8,8,128], index: 11, kind: output, shape index: {}]
  %s12 = sld [smem:[#allocation0]]
  $region125: #{tpu_custom_call.1} parent=0
    _
  %s14 = ssub.s32 1, %s12
  %s15 = scalar_select 0, %s14, %s12
  $region1: #{tpu_custom_call.1} parent=0
    #allocation4 [shape = 'u8[32768]{0}', space=vmem, size = 0x8000, scoped, tag = 'input window, operand 0']
    #allocation5 [shape = 's32[2]{0}', space=sflag, size = 0x8, scoped, tag = 'scoped memory for tpu_custom_call.1']
    #allocation6 [shape = 's32[2]{0}', space=sflag, size = 0x8, scoped, tag = 'scoped memory for tpu_custom_call.1']
    #allocation7 [shape = 'u8[4096]{0}', space=vmem, size = 0x1000, scoped, tag = 'input window, operand 1, single buffered']
    #allocation8 [shape = 's32[1]{0}', space=sflag, size = 0x4, scoped, tag = 'scoped memory for tpu_custom_call.1']
    #allocation9 [shape = 'u8[884736]{0}', space=vmem, size = 0xd8000, scoped, tag = 'input window, operand 4, single buffered']
    #allocation10 [shape = 'u8[32768]{0}', space=vmem, size = 0x8000, scoped, tag = 'input window, operand 7, single buffered']
    #allocation11 [shape = 's32[1]{0}', space=sflag, size = 0x4, scoped, tag = 'scoped memory for tpu_custom_call.1']
    #allocation12 [shape = 'u8[32768]{0}', space=vmem, size = 0x8000, scoped, tag = 'input window, operand 10']
    #allocation13 [shape = 'u8[32768]{0}', space=vmem, size = 0x8000, scoped, tag = 'output window, operand 0']
    %16 = vsyncpa [#allocation5], 0
    %s17 = scalar_lea.sflag [#allocation5], 1
    %18 = vsyncpa %s17, 0
    %19 = vsyncpa [#allocation8], 0
    %20 = vsyncpa [#allocation11], 0
    %21 = vsyncpa [#allocation6], 0
    %s22 = scalar_lea.sflag [#allocation6], 1
    %23 = vsyncpa %s22, 0
    loop: start=0, step=1, limit=12
    $region2: #{tpu_custom_call.1} parent=1 // loop_pre_header
      _
    $region3: #{tpu_custom_call.1} parent=1 // loop_header
      %s25 = sphi 0, %s29
      %p26 = scmp.ge.s32.totalorder %s25, 12
      %s32 = sphi 0, %s44
      %s33 = sphi 0, %s40
      %s34 = sphi 0, %s32
      %s35 = sphi 0, %s33
      %s36 = sphi 0, %s34
      %s37 = sphi 0, %s35
      %s53 = sphi 0, %s55
      %s56 = sphi 0, %s53
      %s57 = sphi 0, %s56
      %s73 = sphi 0, %s57
      %s77 = sphi 0, %s77
      %s79 = sphi 0, %s77
      %s80 = sphi 0, %s79
      %s94 = sphi 0, %s80
      %s98 = sphi 0, %s98
      %s100 = sphi 0, %s98
      %s101 = sphi 0, %s100
      %s115 = sphi 0, %s101
      %s119 = sphi 0, %s119
      %s121 = sphi 0, %s119
      %s122 = sphi 0, %s121
      %s136 = sphi 0, %s122
      %s140 = sphi 0, %s140
      %s142 = sphi 0, %s140
      %s143 = sphi 0, %s142
      %s157 = sphi 0, %s143
      %s161 = sphi 0, %s161
      %s163 = sphi 0, %s161
      %s164 = sphi 0, %s163
      %s178 = sphi 0, %s164
      %s182 = sphi 0, %s182
      %s184 = sphi 0, %s182
      %s185 = sphi 0, %s184
      %s199 = sphi 0, %s185
      %s203 = sphi 0, %s203
      %s205 = sphi 0, %s203
      %s206 = sphi 0, %s205
      %s220 = sphi 0, %s206
      %s224 = sphi 0, %s224
      %s226 = sphi 0, %s224
      %s227 = sphi 0, %s226
      %s241 = sphi 0, %s227
      %s245 = sphi 0, %s245
      %s247 = sphi 0, %s245
      %s248 = sphi 0, %s247
      %s262 = sphi 0, %s248
      %s276 = sphi 0, %s278
      %s279 = sphi 0, %s276
      %s280 = sphi 0, %s279
      %s296 = sphi 0, %s280
      %s310 = sphi 0, %s312
      %s313 = sphi 0, %s310
      %s314 = sphi 0, %s313
      %s330 = sphi 0, %s314
    $region4: #{tpu_custom_call.1} parent=1 // loop_header_branch
      %28 = sbr.rel (%p26) target = $region8
    $region5: #{tpu_custom_call.1} parent=1 // loop_body
      %s30 = ssub.s32 %s25, 1
      %s31 = ssub.s32 %s25, 2
      %s38 = sadd.s32 1, %s33
      %p39 = scmp.ge.s32.totalorder %s38, 5
      %s40 = scalar_select %p39, 0, %s38
      %s41 = sadd.s32 1, %s32
      %s42 = scalar_select %p39, %s41, %s32
      %p43 = scmp.ge.s32.totalorder %s42, 2
      %s44 = scalar_select %p43, 0, %s42
      %p45 = scmp.lt.s32.totalorder %s33, 3
      %s46 = scalar_select %p45, %s33, 3
      %p47 = scmp.lt.s32.totalorder %s40, 3
      %s48 = scalar_select %p47, %s40, 3
      %s49 = ssub.s32 %s32, %s44
      %s50 = ssub.s32 %s46, %s48
      %s51 = sor.u32 %s49, %s50
      %p52 = scmp.eq.s32.totalorder %s51, 0
      %s54 = sadd.s32 %s53, 1
      %s55 = scalar_select %p52, %s53, %s54
      %p58 = pneg %p52
      %p59 = scmp.eq.s32.totalorder %s25, 9
      %p60 = por %p58, %p59
      %p61 = scmp.ne.s32.totalorder %s53, %s56
      %p62 = scmp.eq.s32.totalorder %s25, 0
      %p63 = por %p61, %p62
      %p64 = scmp.ne.s32.totalorder %s53, %s56
      %p65 = scmp.eq.s32.totalorder %s30, 9
      %p66 = por %p64, %p65
      %p67 = scmp.ne.s32.totalorder %s56, %s57
      %p68 = scmp.eq.s32.totalorder %s30, 0
      %p69 = por %p67, %p68
      %p70 = scmp.ne.s32.totalorder %s56, %s57
      %p71 = scmp.eq.s32.totalorder %s31, 9
      %p72 = por %p70, %p71
      %p74 = scmp.ne.s32.totalorder %s57, %s73
      %p75 = scmp.eq.s32.totalorder %s31, 0
      %p76 = por %p74, %p75
      %s78 = sadd.s32 %s77, 1
      %p81 = scmp.eq.s32.totalorder %s25, 9
      %p82 = scmp.ne.s32.totalorder %s77, %s79
      %p83 = scmp.eq.s32.totalorder %s25, 0
      %p84 = por %p82, %p83
      %p85 = scmp.ne.s32.totalorder %s77, %s79
      %p86 = scmp.eq.s32.totalorder %s30, 9
      %p87 = por %p85, %p86
      %p88 = scmp.ne.s32.totalorder %s79, %s80
      %p89 = scmp.eq.s32.totalorder %s30, 0
      %p90 = por %p88, %p89
      %p91 = scmp.ne.s32.totalorder %s79, %s80
      %p92 = scmp.eq.s32.totalorder %s31, 9
      %p93 = por %p91, %p92
      %p95 = scmp.ne.s32.totalorder %s80, %s94
      %p96 = scmp.eq.s32.totalorder %s31, 0
      %p97 = por %p95, %p96
      %s99 = sadd.s32 %s98, 1
      %p102 = scmp.eq.s32.totalorder %s25, 9
      %p103 = scmp.ne.s32.totalorder %s98, %s100
      %p104 = scmp.eq.s32.totalorder %s25, 0
      %p105 = por %p103, %p104
      %p106 = scmp.ne.s32.totalorder %s98, %s100
      %p107 = scmp.eq.s32.totalorder %s30, 9
      %p108 = por %p106, %p107
      %p109 = scmp.ne.s32.totalorder %s100, %s101
      %p110 = scmp.eq.s32.totalorder %s30, 0
      %p111 = por %p109, %p110
      %p112 = scmp.ne.s32.totalorder %s100, %s101
      %p113 = scmp.eq.s32.totalorder %s31, 9
      %p114 = por %p112, %p113
      %p116 = scmp.ne.s32.totalorder %s101, %s115
      %p117 = scmp.eq.s32.totalorder %s31, 0
      %p118 = por %p116, %p117
      %s120 = sadd.s32 %s119, 1
      %p123 = scmp.eq.s32.totalorder %s25, 9
      %p124 = scmp.ne.s32.totalorder %s119, %s121
      %p125 = scmp.eq.s32.totalorder %s25, 0
      %p126 = por %p124, %p125
      %p127 = scmp.ne.s32.totalorder %s119, %s121
      %p128 = scmp.eq.s32.totalorder %s30, 9
      %p129 = por %p127, %p128
      %p130 = scmp.ne.s32.totalorder %s121, %s122
      %p131 = scmp.eq.s32.totalorder %s30, 0
      %p132 = por %p130, %p131
      %p133 = scmp.ne.s32.totalorder %s121, %s122
      %p134 = scmp.eq.s32.totalorder %s31, 9
      %p135 = por %p133, %p134
      %p137 = scmp.ne.s32.totalorder %s122, %s136
      %p138 = scmp.eq.s32.totalorder %s31, 0
      %p139 = por %p137, %p138
      %s141 = sadd.s32 %s140, 1
      %p144 = scmp.eq.s32.totalorder %s25, 9
      %p145 = scmp.ne.s32.totalorder %s140, %s142
      %p146 = scmp.eq.s32.totalorder %s25, 0
      %p147 = por %p145, %p146
      %p148 = scmp.ne.s32.totalorder %s140, %s142
      %p149 = scmp.eq.s32.totalorder %s30, 9
      %p150 = por %p148, %p149
      %p151 = scmp.ne.s32.totalorder %s142, %s143
      %p152 = scmp.eq.s32.totalorder %s30, 0
      %p153 = por %p151, %p152
      %p154 = scmp.ne.s32.totalorder %s142, %s143
      %p155 = scmp.eq.s32.totalorder %s31, 9
      %p156 = por %p154, %p155
      %p158 = scmp.ne.s32.totalorder %s143, %s157
      %p159 = scmp.eq.s32.totalorder %s31, 0
      %p160 = por %p158, %p159
      %s162 = sadd.s32 %s161, 1
      %p165 = scmp.eq.s32.totalorder %s25, 9
      %p166 = scmp.ne.s32.totalorder %s161, %s163
      %p167 = scmp.eq.s32.totalorder %s25, 0
      %p168 = por %p166, %p167
      %p169 = scmp.ne.s32.totalorder %s161, %s163
      %p170 = scmp.eq.s32.totalorder %s30, 9
      %p171 = por %p169, %p170
      %p172 = scmp.ne.s32.totalorder %s163, %s164
      %p173 = scmp.eq.s32.totalorder %s30, 0
      %p174 = por %p172, %p173
      %p175 = scmp.ne.s32.totalorder %s163, %s164
      %p176 = scmp.eq.s32.totalorder %s31, 9
      %p177 = por %p175, %p176
      %p179 = scmp.ne.s32.totalorder %s164, %s178
      %p180 = scmp.eq.s32.totalorder %s31, 0
      %p181 = por %p179, %p180
      %s183 = sadd.s32 %s182, 1
      %p186 = scmp.eq.s32.totalorder %s25, 9
      %p187 = scmp.ne.s32.totalorder %s182, %s184
      %p188 = scmp.eq.s32.totalorder %s25, 0
      %p189 = por %p187, %p188
      %p190 = scmp.ne.s32.totalorder %s182, %s184
      %p191 = scmp.eq.s32.totalorder %s30, 9
      %p192 = por %p190, %p191
      %p193 = scmp.ne.s32.totalorder %s184, %s185
      %p194 = scmp.eq.s32.totalorder %s30, 0
      %p195 = por %p193, %p194
      %p196 = scmp.ne.s32.totalorder %s184, %s185
      %p197 = scmp.eq.s32.totalorder %s31, 9
      %p198 = por %p196, %p197
      %p200 = scmp.ne.s32.totalorder %s185, %s199
      %p201 = scmp.eq.s32.totalorder %s31, 0
      %p202 = por %p200, %p201
      %s204 = sadd.s32 %s203, 1
      %p207 = scmp.eq.s32.totalorder %s25, 9
      %p208 = scmp.ne.s32.totalorder %s203, %s205
      %p209 = scmp.eq.s32.totalorder %s25, 0
      %p210 = por %p208, %p209
      %p211 = scmp.ne.s32.totalorder %s203, %s205
      %p212 = scmp.eq.s32.totalorder %s30, 9
      %p213 = por %p211, %p212
      %p214 = scmp.ne.s32.totalorder %s205, %s206
      %p215 = scmp.eq.s32.totalorder %s30, 0
      %p216 = por %p214, %p215
      %p217 = scmp.ne.s32.totalorder %s205, %s206
      %p218 = scmp.eq.s32.totalorder %s31, 9
      %p219 = por %p217, %p218
      %p221 = scmp.ne.s32.totalorder %s206, %s220
      %p222 = scmp.eq.s32.totalorder %s31, 0
      %p223 = por %p221, %p222
      %s225 = sadd.s32 %s224, 1
      %p228 = scmp.eq.s32.totalorder %s25, 9
      %p229 = scmp.ne.s32.totalorder %s224, %s226
      %p230 = scmp.eq.s32.totalorder %s25, 0
      %p231 = por %p229, %p230
      %p232 = scmp.ne.s32.totalorder %s224, %s226
      %p233 = scmp.eq.s32.totalorder %s30, 9
      %p234 = por %p232, %p233
      %p235 = scmp.ne.s32.totalorder %s226, %s227
      %p236 = scmp.eq.s32.totalorder %s30, 0
      %p237 = por %p235, %p236
      %p238 = scmp.ne.s32.totalorder %s226, %s227
      %p239 = scmp.eq.s32.totalorder %s31, 9
      %p240 = por %p238, %p239
      %p242 = scmp.ne.s32.totalorder %s227, %s241
      %p243 = scmp.eq.s32.totalorder %s31, 0
      %p244 = por %p242, %p243
      %s246 = sadd.s32 %s245, 1
      %p249 = scmp.eq.s32.totalorder %s25, 9
      %p250 = scmp.ne.s32.totalorder %s245, %s247
      %p251 = scmp.eq.s32.totalorder %s25, 0
      %p252 = por %p250, %p251
      %p253 = scmp.ne.s32.totalorder %s245, %s247
      %p254 = scmp.eq.s32.totalorder %s30, 9
      %p255 = por %p253, %p254
      %p256 = scmp.ne.s32.totalorder %s247, %s248
      %p257 = scmp.eq.s32.totalorder %s30, 0
      %p258 = por %p256, %p257
      %p259 = scmp.ne.s32.totalorder %s247, %s248
      %p260 = scmp.eq.s32.totalorder %s31, 9
      %p261 = por %p259, %p260
      %p263 = scmp.ne.s32.totalorder %s248, %s262
      %p264 = scmp.eq.s32.totalorder %s31, 0
      %p265 = por %p263, %p264
      %s266 = ssub.s32 %s33, 1
      %p267 = scmp.gt.s32.totalorder %s266, 0
      %s268 = scalar_select %p267, %s266, 0
      %s269 = ssub.s32 %s40, 1
      %p270 = scmp.gt.s32.totalorder %s269, 0
      %s271 = scalar_select %p270, %s269, 0
      %s272 = ssub.s32 %s32, %s44
      %s273 = ssub.s32 %s268, %s271
      %s274 = sor.u32 %s272, %s273
      %p275 = scmp.eq.s32.totalorder %s274, 0
      %s277 = sadd.s32 %s276, 1
      %s278 = scalar_select %p275, %s276, %s277
      %p281 = pneg %p275
      %p282 = scmp.eq.s32.totalorder %s25, 9
      %p283 = por %p281, %p282
      %p284 = scmp.ne.s32.totalorder %s276, %s279
      %p285 = scmp.eq.s32.totalorder %s25, 0
      %p286 = por %p284, %p285
      %p287 = scmp.ne.s32.totalorder %s276, %s279
      %p288 = scmp.eq.s32.totalorder %s30, 9
      %p289 = por %p287, %p288
      %p290 = scmp.ne.s32.totalorder %s279, %s280
      %p291 = scmp.eq.s32.totalorder %s30, 0
      %p292 = por %p290, %p291
      %p293 = scmp.ne.s32.totalorder %s279, %s280
      %p294 = scmp.eq.s32.totalorder %s31, 9
      %p295 = por %p293, %p294
      %p297 = scmp.ne.s32.totalorder %s280, %s296
      %p298 = scmp.eq.s32.totalorder %s31, 0
      %p299 = por %p297, %p298
      %s300 = ssub.s32 %s33, 1
      %p301 = scmp.gt.s32.totalorder %s300, 0
      %s302 = scalar_select %p301, %s300, 0
      %s303 = ssub.s32 %s40, 1
      %p304 = scmp.gt.s32.totalorder %s303, 0
      %s305 = scalar_select %p304, %s303, 0
      %s306 = ssub.s32 %s32, %s44
      %s307 = ssub.s32 %s302, %s305
      %s308 = sor.u32 %s306, %s307
      %p309 = scmp.eq.s32.totalorder %s308, 0
      %s311 = sadd.s32 %s310, 1
      %s312 = scalar_select %p309, %s310, %s311
      %p315 = pneg %p309
      %p316 = scmp.eq.s32.totalorder %s25, 9
      %p317 = por %p315, %p316
      %p318 = scmp.ne.s32.totalorder %s310, %s313
      %p319 = scmp.eq.s32.totalorder %s25, 0
      %p320 = por %p318, %p319
      %p321 = scmp.ne.s32.totalorder %s310, %s313
      %p322 = scmp.eq.s32.totalorder %s30, 9
      %p323 = por %p321, %p322
      %p324 = scmp.ne.s32.totalorder %s313, %s314
      %p325 = scmp.eq.s32.totalorder %s30, 0
      %p326 = por %p324, %p325
      %p327 = scmp.ne.s32.totalorder %s313, %s314
      %p328 = scmp.eq.s32.totalorder %s31, 9
      %p329 = por %p327, %p328
      %p331 = scmp.ne.s32.totalorder %s314, %s330
      %p332 = scmp.eq.s32.totalorder %s31, 0
      %p333 = por %p331, %p332
      %p334 = scmp.le.s32.totalorder 1, %s25
      %p335 = scmp.lt.s32.totalorder %s25, 11
      %p336 = pnand %p334, %p335
      %p337 = pneg %p336
      // Predicated region
      $region9: #{tpu_custom_call.1} parent=5 // pred_check
        _
      $region10: #{tpu_custom_call.1} parent=5 // pred_check_branch
        %339 = sbr.rel (%p336) target = $region12
      $region11: #{tpu_custom_call.1} parent=5 // pred_region
        %s340 = ssub.s32 %s25, 1
        // Predicated region
        $region13: #{tpu_custom_call.1} parent=11 // pred_check
          %p341 = pneg %p90
        $region14: #{tpu_custom_call.1} parent=11 // pred_check_branch
          %343 = sbr.rel (%p341) target = $region16
        $region15: #{tpu_custom_call.1} parent=11 // pred_region
          %345 = vsyncadd [#allocation8], 0
          %s346 = sshll.u32 %s1, 4
          %s347 = int_to_ptr.hbm [resolvable:$true] %s346
          %s348 = sshll.u32 [#allocation7], 4
          %s349 = int_to_ptr.vmem [resolvable:$true] %s348
          %354 = dma.hbm_to_vmem [thread:$0]  %s347, 128, %s349, [#allocation8], 64, 64, 4
        $region16: #{tpu_custom_call.1} parent=11 // pred_fallthru
          _
        // Predicated region
        $region17: #{tpu_custom_call.1} parent=11 // pred_check
          %p355 = pneg %p111
        $region18: #{tpu_custom_call.1} parent=11 // pred_check_branch
          %357 = sbr.rel (%p355) target = $region20
        $region19: #{tpu_custom_call.1} parent=11 // pred_region
          _
        $region20: #{tpu_custom_call.1} parent=11 // pred_fallthru
          _
        // Predicated region
        $region21: #{tpu_custom_call.1} parent=11 // pred_check
          %p358 = pneg %p132
        $region22: #{tpu_custom_call.1} parent=11 // pred_check_branch
          %360 = sbr.rel (%p358) target = $region24
        $region23: #{tpu_custom_call.1} parent=11 // pred_region
          _
        $region24: #{tpu_custom_call.1} parent=11 // pred_fallthru
          _
        // Predicated region
        $region25: #{tpu_custom_call.1} parent=11 // pred_check
          %p361 = pneg %p153
        $region26: #{tpu_custom_call.1} parent=11 // pred_check_branch
          %363 = sbr.rel (%p361) target = $region28
        $region27: #{tpu_custom_call.1} parent=11 // pred_region
          %365 = vsyncadd [#allocation8], 0
          %s366 = sshll.u32 %s4, 4
          %s367 = int_to_ptr.hbm [resolvable:$true] %s366
          %s368 = sshll.u32 [#allocation9], 4
          %s369 = int_to_ptr.vmem [resolvable:$true] %s368
          %374 = dma.hbm_to_vmem [thread:$0]  %s367, 27648, %s369, [#allocation8], 64, 64, 4
        $region28: #{tpu_custom_call.1} parent=11 // pred_fallthru
          _
        // Predicated region
        $region29: #{tpu_custom_call.1} parent=11 // pred_check
          %p375 = pneg %p174
        $region30: #{tpu_custom_call.1} parent=11 // pred_check_branch
          %377 = sbr.rel (%p375) target = $region32
        $region31: #{tpu_custom_call.1} parent=11 // pred_region
          _
        $region32: #{tpu_custom_call.1} parent=11 // pred_fallthru
          _
        // Predicated region
        $region33: #{tpu_custom_call.1} parent=11 // pred_check
          %p378 = pneg %p195
        $region34: #{tpu_custom_call.1} parent=11 // pred_check_branch
          %380 = sbr.rel (%p378) target = $region36
        $region35: #{tpu_custom_call.1} parent=11 // pred_region
          _
        $region36: #{tpu_custom_call.1} parent=11 // pred_fallthru
          _
        // Predicated region
        $region37: #{tpu_custom_call.1} parent=11 // pred_check
          %p381 = pneg %p216
        $region38: #{tpu_custom_call.1} parent=11 // pred_check_branch
          %383 = sbr.rel (%p381) target = $region40
        $region39: #{tpu_custom_call.1} parent=11 // pred_region
          %385 = vsyncadd [#allocation11], 0
          %s386 = sshll.u32 %s7, 4
          %s387 = int_to_ptr.hbm [resolvable:$true] %s386
          %s388 = sshll.u32 [#allocation10], 4
          %s389 = int_to_ptr.vmem [resolvable:$true] %s388
          %394 = dma.hbm_to_vmem [thread:$0]  %s387, 1024, %s389, [#allocation11], 64, 64, 4
        $region40: #{tpu_custom_call.1} parent=11 // pred_fallthru
          _
        // Predicated region
        $region41: #{tpu_custom_call.1} parent=11 // pred_check
          %p395 = pneg %p237
        $region42: #{tpu_custom_call.1} parent=11 // pred_check_branch
          %397 = sbr.rel (%p395) target = $region44
        $region43: #{tpu_custom_call.1} parent=11 // pred_region
          _
        $region44: #{tpu_custom_call.1} parent=11 // pred_fallthru
          _
        // Predicated region
        $region45: #{tpu_custom_call.1} parent=11 // pred_check
          %p398 = pneg %p258
        $region46: #{tpu_custom_call.1} parent=11 // pred_check_branch
          %400 = sbr.rel (%p398) target = $region48
        $region47: #{tpu_custom_call.1} parent=11 // pred_region
          _
        $region48: #{tpu_custom_call.1} parent=11 // pred_fallthru
          _
      $region12: #{tpu_custom_call.1} parent=5 // pred_fallthru
        _
      %p401 = scmp.lt.s32.totalorder %s25, 10
      // Predicated region
      $region49: #{tpu_custom_call.1} parent=5 // pred_check
        %p402 = pneg %p401
      $region50: #{tpu_custom_call.1} parent=5 // pred_check_branch
        %404 = sbr.rel (%p402) target = $region52
      $region51: #{tpu_custom_call.1} parent=5 // pred_region
        // Predicated region
        $region53: #{tpu_custom_call.1} parent=51 // pred_check
          %p405 = pneg %p63
        $region54: #{tpu_custom_call.1} parent=51 // pred_check_branch
          %407 = sbr.rel (%p405) target = $region56
        $region55: #{tpu_custom_call.1} parent=51 // pred_region
          %s408 = sand.u32 %s25, 1
          %s409 = scalar_lea.sflag [#allocation5], %s408
          %s410 = sand.u32 %s53, 1
          %s411 = smul.addr %s410, 32
          %s412 = scalar_lea.vmem [#allocation4], %s411
          %p413 = scmp.lt.s32.totalorder %s33, 3
          %s414 = scalar_select %p413, %s33, 3
          %416 = vsyncadd %s409, 0
          %s417 = smul.addr %s414, 8
          %s418 = smul.addr %s32, 32
          %s419 = sadd.s32 %s417, %s418
          %s420 = smul.addr %s419, 4
          %s421 = scalar_lea.hbm %s0, %s420
          %s422 = sshll.u32 %s421, 4
          %s423 = int_to_ptr.hbm [resolvable:$true] %s422
          %s424 = sshll.u32 %s412, 4
          %s425 = int_to_ptr.vmem [resolvable:$true] %s424
          %430 = dma.hbm_to_vmem [thread:$0]  %s423, 512, %s425, %s409, 64, 64, 4
        $region56: #{tpu_custom_call.1} parent=51 // pred_fallthru
          _
        // Predicated region
        $region57: #{tpu_custom_call.1} parent=51 // pred_check
          %p431 = pneg %p286
        $region58: #{tpu_custom_call.1} parent=51 // pred_check_branch
          %433 = sbr.rel (%p431) target = $region60
        $region59: #{tpu_custom_call.1} parent=51 // pred_region
          %s434 = sand.u32 %s25, 1
          %s435 = scalar_lea.sflag [#allocation5], %s434
          %s436 = sand.u32 %s276, 1
          %s437 = smul.addr %s436, 32
          %s438 = scalar_lea.vmem [#allocation12], %s437
          %s439 = ssub.s32 %s33, 1
          %p440 = scmp.gt.s32.totalorder %s439, 0
          %s441 = scalar_select %p440, %s439, 0
          %443 = vsyncadd %s435, 0
          %s444 = smul.addr %s441, 8
          %s445 = smul.addr %s32, 32
          %s446 = sadd.s32 %s444, %s445
          %s447 = smul.addr %s446, 4
          %s448 = scalar_lea.hbm %s10, %s447
          %s449 = sshll.u32 %s448, 4
          %s450 = int_to_ptr.hbm [resolvable:$true] %s449
          %s451 = sshll.u32 %s438, 4
          %s452 = int_to_ptr.vmem [resolvable:$true] %s451
          %457 = dma.hbm_to_vmem [thread:$0]  %s450, 512, %s452, %s435, 64, 64, 4
        $region60: #{tpu_custom_call.1} parent=51 // pred_fallthru
          _
      $region52: #{tpu_custom_call.1} parent=5 // pred_fallthru
        _
      %p458 = scmp.le.s32.totalorder 1, %s25
      %p459 = scmp.lt.s32.totalorder %s25, 11
      %p460 = pnand %p458, %p459
      %p461 = pneg %p460
      // Predicated region
      $region61: #{tpu_custom_call.1} parent=5 // pred_check
        _
      $region62: #{tpu_custom_call.1} parent=5 // pred_check_branch
        %463 = sbr.rel (%p460) target = $region64
      $region63: #{tpu_custom_call.1} parent=5 // pred_region
        %s464 = ssub.s32 %s25, 1
        %s465 = sand.u32 %s30, 1
        %s466 = scalar_lea.sflag [#allocation5], %s465
        %s467 = sand.u32 %s56, 1
        %s468 = smul.addr %s467, 32
        %s469 = scalar_lea.vmem [#allocation4], %s468
        // Predicated region
        $region65: #{tpu_custom_call.1} parent=63 // pred_check
          %p470 = pneg %p69
        $region66: #{tpu_custom_call.1} parent=63 // pred_check_branch
          %472 = sbr.rel (%p470) target = $region68
        $region67: #{tpu_custom_call.1} parent=63 // pred_region
          %474 = dma.done %s466, 512
        $region68: #{tpu_custom_call.1} parent=63 // pred_fallthru
          _
        // Predicated region
        $region69: #{tpu_custom_call.1} parent=63 // pred_check
          %p475 = pneg %p90
        $region70: #{tpu_custom_call.1} parent=63 // pred_check_branch
          %477 = sbr.rel (%p475) target = $region72
        $region71: #{tpu_custom_call.1} parent=63 // pred_region
          %479 = dma.done [#allocation8], 128
        $region72: #{tpu_custom_call.1} parent=63 // pred_fallthru
          _
        // Predicated region
        $region73: #{tpu_custom_call.1} parent=63 // pred_check
          %p480 = pneg %p153
        $region74: #{tpu_custom_call.1} parent=63 // pred_check_branch
          %482 = sbr.rel (%p480) target = $region76
        $region75: #{tpu_custom_call.1} parent=63 // pred_region
          %484 = dma.done [#allocation8], 27648
        $region76: #{tpu_custom_call.1} parent=63 // pred_fallthru
          _
        // Predicated region
        $region77: #{tpu_custom_call.1} parent=63 // pred_check
          %p485 = pneg %p216
        $region78: #{tpu_custom_call.1} parent=63 // pred_check_branch
          %487 = sbr.rel (%p485) target = $region80
        $region79: #{tpu_custom_call.1} parent=63 // pred_region
          %489 = dma.done [#allocation11], 1024
        $region80: #{tpu_custom_call.1} parent=63 // pred_fallthru
          _
        %s490 = sand.u32 %s30, 1
        %s491 = scalar_lea.sflag [#allocation5], %s490
        %s492 = sand.u32 %s279, 1
        %s493 = smul.addr %s492, 32
        %s494 = scalar_lea.vmem [#allocation12], %s493
        // Predicated region
        $region81: #{tpu_custom_call.1} parent=63 // pred_check
          %p495 = pneg %p292
        $region82: #{tpu_custom_call.1} parent=63 // pred_check_branch
          %497 = sbr.rel (%p495) target = $region84
        $region83: #{tpu_custom_call.1} parent=63 // pred_region
          %499 = dma.done %s491, 512
        $region84: #{tpu_custom_call.1} parent=63 // pred_fallthru
          _
        %s500 = sand.u32 %s30, 1
        %s501 = scalar_lea.sflag [#allocation5], %s500
        %s502 = sand.u32 %s56, 1
        %s503 = smul.addr %s502, 32
        %s504 = scalar_lea.vmem [#allocation4], %s503
        %p505 = pneg %p69
        %p506 = pneg %p66
        %p507 = pneg %p90
        %p508 = pneg %p87
        %p509 = pneg %p111
        %p510 = pneg %p108
        %p511 = pneg %p132
        %p512 = pneg %p129
        %p513 = pneg %p153
        %p514 = pneg %p150
        %p515 = pneg %p174
        %p516 = pneg %p171
        %p517 = pneg %p195
        %p518 = pneg %p192
        %p519 = pneg %p216
        %p520 = pneg %p213
        %p521 = pneg %p237
        %p522 = pneg %p234
        %p523 = pneg %p258
        %p524 = pneg %p255
        %s525 = sand.u32 %s30, 1
        %s526 = scalar_lea.sflag [#allocation5], %s525
        %s527 = sand.u32 %s279, 1
        %s528 = smul.addr %s527, 32
        %s529 = scalar_lea.vmem [#allocation12], %s528
        %p530 = pneg %p292
        %p531 = pneg %p289
        %p532 = pneg %p326
        %p533 = pneg %p323
        %s534 = sand.u32 %s313, 1
        %s535 = scalar_lea.sflag [#allocation6], %s534
        %s536 = sand.u32 %s313, 1
        %s537 = smul.addr %s536, 32
        %s538 = scalar_lea.vmem [#allocation13], %s537
        %p539 = scmp.lt.s32.totalorder %s35, 3
        %s540 = scalar_select %p539, %s35, 3
        %s541 = ssub.s32 %s35, 1
        %p542 = scmp.gt.s32.totalorder %s541, 0
        %s543 = scalar_select %p542, %s541, 0
        %s544 = ssub.s32 %s35, 1
        %p545 = scmp.gt.s32.totalorder %s544, 0
        %s546 = scalar_select %p545, %s544, 0
        %p548 = scmp.eq.s32.totalorder %s35, 0
        // Predicated region
        $region85: #{tpu_custom_call.1} parent=63 // pred_check
          %p549 = pneg %p548
        $region86: #{tpu_custom_call.1} parent=63 // pred_check_branch
          %551 = sbr.rel (%p549) target = $region88
        $region87: #{tpu_custom_call.1} parent=63 // pred_region
          %552 = vst [vmem:[#allocation3] sm:$0xf] 0
          %553 = vst [vmem:[#allocation3 + $0x4] sm:$0x1] 0
          %554 = vst [vmem:[#allocation3 + $0x8] sm:$0xf] 0
          %555 = vst [vmem:[#allocation3 + $0xc] sm:$0x1] 0
          %556 = vst [vmem:[#allocation3 + $0x10] sm:$0xf] 0
          %557 = vst [vmem:[#allocation3 + $0x14] sm:$0x1] 0
          %558 = vst [vmem:[#allocation3 + $0x18] sm:$0xf] 0
          %559 = vst [vmem:[#allocation3 + $0x1c] sm:$0x1] 0
          %560 = vst [vmem:[#allocation3 + $0x20] sm:$0xf] 0
          %561 = vst [vmem:[#allocation3 + $0x24] sm:$0x1] 0
          %562 = vst [vmem:[#allocation3 + $0x28] sm:$0xf] 0
          %563 = vst [vmem:[#allocation3 + $0x2c] sm:$0x1] 0
          %564 = vst [vmem:[#allocation3 + $0x30] sm:$0xf] 0
          %565 = vst [vmem:[#allocation3 + $0x34] sm:$0x1] 0
          %566 = vst [vmem:[#allocation3 + $0x38] sm:$0xf] 0
          %567 = vst [vmem:[#allocation3 + $0x3c] sm:$0x1] 0
          %568 = vst [vmem:[#allocation3 + $0x40] sm:$0xf] 0
          %569 = vst [vmem:[#allocation3 + $0x44] sm:$0x1] 0
          %570 = vst [vmem:[#allocation3 + $0x48] sm:$0xf] 0
          %571 = vst [vmem:[#allocation3 + $0x4c] sm:$0x1] 0
          %572 = vst [vmem:[#allocation2] sm:$0xff] 0.0
          %573 = vst [vmem:[#allocation2 + $0x8] sm:$0xff] 0.0
          %574 = vst [vmem:[#allocation2 + $0x10] sm:$0xff] 0.0
          %575 = vst [vmem:[#allocation2 + $0x18] sm:$0xff] 0.0
          %576 = vst [vmem:[#allocation2 + $0x20] sm:$0xff] 0.0
          %577 = vst [vmem:[#allocation2 + $0x28] sm:$0xff] 0.0
          %578 = vst [vmem:[#allocation2 + $0x30] sm:$0xff] 0.0
          %579 = vst [vmem:[#allocation2 + $0x38] sm:$0xff] 0.0
        $region88: #{tpu_custom_call.1} parent=63 // pred_fallthru
          _
        %s580 = sadd.s32 %s35, 1
        %p581 = scmp.lt.s32.totalorder %s580, 4
        // Predicated region
        $region89: #{tpu_custom_call.1} parent=63 // pred_check
          %p582 = pneg %p581
        $region90: #{tpu_custom_call.1} parent=63 // pred_check_branch
          %584 = sbr.rel (%p582) target = $region92
        $region91: #{tpu_custom_call.1} parent=63 // pred_region
          %p585 = scmp.lt.s32.totalorder %s580, 0
          %s586 = ssub.s32 0, %s580
          %s587 = scalar_select %p585, %s586, %s580
          %s588 = sdiv.u32.pop %s587, 3
          %s589 = srem.u32.pop %s587, 3
          %s590 = ssub.s32 0, %s589
          %s591 = scalar_select %p585, %s590, %s589
          %s592 = smul.u32 %s591, 64
          %s593 = scalar_lea.vmem [#allocation2], %s592
          %594 = vst [vmem:[%s593] sm:$0xff] 0.0
          %595 = vst [vmem:[%s593 + $0x8] sm:$0xff] 0.0
          %596 = vst [vmem:[%s593 + $0x10] sm:$0xff] 0.0
          %597 = vst [vmem:[%s593 + $0x18] sm:$0xff] 0.0
          %598 = vst [vmem:[%s593 + $0x20] sm:$0xff] 0.0
          %599 = vst [vmem:[%s593 + $0x28] sm:$0xff] 0.0
          %600 = vst [vmem:[%s593 + $0x30] sm:$0xff] 0.0
          %601 = vst [vmem:[%s593 + $0x38] sm:$0xff] 0.0
        $region92: #{tpu_custom_call.1} parent=63 // pred_fallthru
          _
        %p602 = scmp.lt.s32.totalorder %s35, 4
        // Predicated region
        $region93: #{tpu_custom_call.1} parent=63 // pred_check
          %p603 = pneg %p602
        $region94: #{tpu_custom_call.1} parent=63 // pred_check_branch
          %605 = sbr.rel (%p603) target = $region96
        $region95: #{tpu_custom_call.1} parent=63 // pred_region
          %v606 = vld [vmem:[%s469] sm:$0xf]
          %v607 = vld [vmem:[%s469 + $0x4] sm:$0xf]
          %v608 = vld [vmem:[%s469 + $0x8] sm:$0xf]
          %v609 = vld [vmem:[%s469 + $0xc] sm:$0xf]
          %v610 = vld [vmem:[%s469 + $0x10] sm:$0xf]
          %v611 = vld [vmem:[%s469 + $0x14] sm:$0xf]
          %v612 = vld [vmem:[%s469 + $0x18] sm:$0xf]
          %v613 = vld [vmem:[%s469 + $0x1c] sm:$0xf]
          %v614 = vld [vmem:[#allocation7] sm:$0xf]
          %v615 = vld [vmem:[#allocation7 + $0x4] sm:$0xf]
          %v624 = vunpack.c.l.b16 %v606
          %v625 = vunpack.c.l.b16 %v607
          %v626 = vunpack.c.l.b16 %v608
          %v627 = vunpack.c.l.b16 %v609
          %v628 = vunpack.c.l.b16 %v610
          %v629 = vunpack.c.l.b16 %v611
          %v630 = vunpack.c.l.b16 %v612
          %v631 = vunpack.c.l.b16 %v613
          %v632 = vpack.c.b16 %v625, %v624
          %v633 = vpack.c.b16 %v627, %v626
          %v634 = vpack.c.b16 %v629, %v628
          %v635 = vpack.c.b16 %v631, %v630
          %v638 = vunpack.c.l.b16 %v614
          %v639 = vunpack.c.l.b16 %v615
          %v640 = vpack.c.b16 %v639, %v638
          %vm642 = vcmask 130048
          %v644 = vsel %vm642, %v632, 0
          %v647 = vsel %vm642, %v633, 0
          %v650 = vsel %vm642, %v634, 0
          %v653 = vsel %vm642, %v635, 0
          %655 = vmatpush.bf16.msra.mxu0 0
          %656 = vmatpush.bf16.msra.mxu0 0
          %657 = vmatpush.bf16.msra.mxu0 0
          %658 = vmatpush.bf16.msra.mxu0 0
          %659 = vmatpush.bf16.msra.mxu0 0
          %660 = vmatpush.bf16.msra.mxu0 0
          %661 = vmatpush.bf16.msra.mxu0 0
          %662 = vmatpush.bf16.msra.mxu0 %v640
          %663 = vmatmul.bf16.gmra.mxu0 %v644
          %v664 = vpop.f32.mrf.mxu0
          %v665 = vadd.f32 0.0, %v664
          %v666 = vpop.f32.mrf.mxu0
          %v667 = vadd.f32 0.0, %v666
          %668 = vmatmul.bf16.gmra.mxu0 %v647
          %v669 = vpop.f32.mrf.mxu0
          %v670 = vadd.f32 0.0, %v669
          %v671 = vpop.f32.mrf.mxu0
          %v672 = vadd.f32 0.0, %v671
          %673 = vmatmul.bf16.gmra.mxu0 %v650
          %v674 = vpop.f32.mrf.mxu0
          %v675 = vadd.f32 0.0, %v674
          %v676 = vpop.f32.mrf.mxu0
          %v677 = vadd.f32 0.0, %v676
          %678 = vmatmul.bf16.gmra.mxu0 %v653
          %v679 = vpop.f32.mrf.mxu0
          %v680 = vadd.f32 0.0, %v679
          %v681 = vpop.f32.mrf.mxu0
          %v682 = vadd.f32 0.0, %v681
          %683 = vdwg.mxu0
          %v684 = vld [vmem:[%s2] sm:$0x1]
          %v686 = vperm.slane %v684, 0
          %v688 = vmul.f32 %v665, %v686
          %v689 = vmul.f32 %v667, %v686
          %v690 = vmul.f32 %v670, %v686
          %v691 = vmul.f32 %v672, %v686
          %v692 = vmul.f32 %v675, %v686
          %v693 = vmul.f32 %v677, %v686
          %v694 = vmul.f32 %v680, %v686
          %v695 = vmul.f32 %v682, %v686
          %v696 = vld [vmem:[%s3] sm:$0x1]
          %v698 = vperm.slane %v696, 0
          %v700 = vadd.f32 %v688, %v698
          %v701 = vadd.f32 %v689, %v698
          %v702 = vadd.f32 %v690, %v698
          %v703 = vadd.f32 %v691, %v698
          %v704 = vadd.f32 %v692, %v698
          %v705 = vadd.f32 %v693, %v698
          %v706 = vadd.f32 %v694, %v698
          %v707 = vadd.f32 %v695, %v698
          %v708 = vmax.f32 %v700, 0.0
          %v709 = vmax.f32 %v701, 0.0
          %v710 = vmax.f32 %v702, 0.0
          %v711 = vmax.f32 %v703, 0.0
          %v712 = vmax.f32 %v704, 0.0
          %v713 = vmax.f32 %v705, 0.0
          %v714 = vmax.f32 %v706, 0.0
          %v715 = vmax.f32 %v707, 0.0
          %v716 = vpack.c.bf16 %v708, %v708
          %v717 = vpack.c.bf16 %v709, %v709
          %v718 = vpack.c.bf16 %v710, %v710
          %v719 = vpack.c.bf16 %v711, %v711
          %v720 = vpack.c.bf16 %v712, %v712
          %v721 = vpack.c.bf16 %v713, %v713
          %v722 = vpack.c.bf16 %v714, %v714
          %v723 = vpack.c.bf16 %v715, %v715
          %v725 = vshrl.u32 %v716, 16
          %v727 = vrot.slane %v725, 7
          %v728 = vshll.u32 %v716, 16
          %v730 = vor.u32 %v727, %v728
          %v731 = vrot.slane %v727, 4
          %v733 = vshrl.u32 %v717, 16
          %v735 = vrot.slane %v733, 7
          %v736 = vshll.u32 %v717, 16
          %v738 = vor.u32 %v735, %v736
          %v739 = vrot.slane %v735, 4
          %v741 = vshrl.u32 %v718, 16
          %v743 = vrot.slane %v741, 7
          %v744 = vshll.u32 %v718, 16
          %v746 = vor.u32 %v743, %v744
          %v747 = vrot.slane %v743, 4
          %v749 = vshrl.u32 %v719, 16
          %v751 = vrot.slane %v749, 7
          %v752 = vshll.u32 %v719, 16
          %v754 = vor.u32 %v751, %v752
          %v755 = vrot.slane %v751, 4
          %v757 = vshrl.u32 %v720, 16
          %v759 = vrot.slane %v757, 7
          %v760 = vshll.u32 %v720, 16
          %v762 = vor.u32 %v759, %v760
          %v763 = vrot.slane %v759, 4
          %v765 = vshrl.u32 %v721, 16
          %v767 = vrot.slane %v765, 7
          %v768 = vshll.u32 %v721, 16
          %v770 = vor.u32 %v767, %v768
          %v771 = vrot.slane %v767, 4
          %v773 = vshrl.u32 %v722, 16
          %v775 = vrot.slane %v773, 7
          %v776 = vshll.u32 %v722, 16
          %v778 = vor.u32 %v775, %v776
          %v779 = vrot.slane %v775, 4
          %v781 = vshrl.u32 %v723, 16
          %v783 = vrot.slane %v781, 7
          %v784 = vshll.u32 %v723, 16
          %v786 = vor.u32 %v783, %v784
          %v787 = vrot.slane %v783, 4
          %s804 = scalar_lea.vmem [#allocation3], 8
          %vm805 = vcmask 1043456
          %vm806 = vsmask.f32 7938
          %vm807 = vmand %vm805, %vm806
          %v808 = vld [vmem:[%s804] sm:$0xf]
          %v809 = vsel %vm807, %v730, %v808
          %810 = vst [vmem:[%s804] sm:$0xf] %v809
          %vm811 = vcmask 1040384
          %vm812 = vsmask.f32 256
          %vm813 = vmand %vm811, %vm812
          %v814 = vld [vmem:[%s804 + $0x4] sm:$0x1]
          %v815 = vsel %vm813, %v731, %v814
          %816 = vst [vmem:[%s804 + $0x4] sm:$0x1] %v815
          %v817 = vld [vmem:[%s804 + $0x8] sm:$0xf]
          %v818 = vsel %vm807, %v738, %v817
          %819 = vst [vmem:[%s804 + $0x8] sm:$0xf] %v818
          %v820 = vld [vmem:[%s804 + $0xc] sm:$0x1]
          %v821 = vsel %vm813, %v739, %v820
          %822 = vst [vmem:[%s804 + $0xc] sm:$0x1] %v821
          %v823 = vld [vmem:[%s804 + $0x10] sm:$0xf]
          %v824 = vsel %vm807, %v746, %v823
          %825 = vst [vmem:[%s804 + $0x10] sm:$0xf] %v824
          %v826 = vld [vmem:[%s804 + $0x14] sm:$0x1]
          %v827 = vsel %vm813, %v747, %v826
          %828 = vst [vmem:[%s804 + $0x14] sm:$0x1] %v827
          %v829 = vld [vmem:[%s804 + $0x18] sm:$0xf]
          %v830 = vsel %vm807, %v754, %v829
          %831 = vst [vmem:[%s804 + $0x18] sm:$0xf] %v830
          %v832 = vld [vmem:[%s804 + $0x1c] sm:$0x1]
          %v833 = vsel %vm813, %v755, %v832
          %834 = vst [vmem:[%s804 + $0x1c] sm:$0x1] %v833
          %v835 = vld [vmem:[%s804 + $0x20] sm:$0xf]
          %v836 = vsel %vm807, %v762, %v835
          %837 = vst [vmem:[%s804 + $0x20] sm:$0xf] %v836
          %v838 = vld [vmem:[%s804 + $0x24] sm:$0x1]
          %v839 = vsel %vm813, %v763, %v838
          %840 = vst [vmem:[%s804 + $0x24] sm:$0x1] %v839
          %v841 = vld [vmem:[%s804 + $0x28] sm:$0xf]
          %v842 = vsel %vm807, %v770, %v841
          %843 = vst [vmem:[%s804 + $0x28] sm:$0xf] %v842
          %v844 = vld [vmem:[%s804 + $0x2c] sm:$0x1]
          %v845 = vsel %vm813, %v771, %v844
          %846 = vst [vmem:[%s804 + $0x2c] sm:$0x1] %v845
          %v847 = vld [vmem:[%s804 + $0x30] sm:$0xf]
          %v848 = vsel %vm807, %v778, %v847
          %849 = vst [vmem:[%s804 + $0x30] sm:$0xf] %v848
          %v850 = vld [vmem:[%s804 + $0x34] sm:$0x1]
          %v851 = vsel %vm813, %v779, %v850
          %852 = vst [vmem:[%s804 + $0x34] sm:$0x1] %v851
          %v853 = vld [vmem:[%s804 + $0x38] sm:$0xf]
          %v854 = vsel %vm807, %v786, %v853
          %855 = vst [vmem:[%s804 + $0x38] sm:$0xf] %v854
          %v856 = vld [vmem:[%s804 + $0x3c] sm:$0x1]
          %v857 = vsel %vm813, %v787, %v856
          %858 = vst [vmem:[%s804 + $0x3c] sm:$0x1] %v857
          %v859 = vld [vmem:[#allocation3] sm:$0xf]
          %v860 = vld [vmem:[#allocation3 + $0x8] sm:$0xf]
          %v861 = vld [vmem:[#allocation3 + $0x10] sm:$0xf]
          %v862 = vld [vmem:[#allocation3 + $0x18] sm:$0xf]
          %v863 = vld [vmem:[#allocation3 + $0x20] sm:$0xf]
          %v864 = vld [vmem:[#allocation3 + $0x28] sm:$0xf]
          %v865 = vld [vmem:[#allocation3 + $0x30] sm:$0xf]
          %v866 = vld [vmem:[#allocation3 + $0x38] sm:$0xf]
          %v867 = vld [vmem:[#allocation3 + $0x4] sm:$0x1]
          %v868 = vld [vmem:[#allocation3 + $0xc] sm:$0x1]
          %v869 = vld [vmem:[#allocation3 + $0x14] sm:$0x1]
          %v870 = vld [vmem:[#allocation3 + $0x1c] sm:$0x1]
          %v871 = vld [vmem:[#allocation3 + $0x24] sm:$0x1]
          %v872 = vld [vmem:[#allocation3 + $0x2c] sm:$0x1]
          %v873 = vld [vmem:[#allocation3 + $0x34] sm:$0x1]
          %v874 = vld [vmem:[#allocation3 + $0x3c] sm:$0x1]
          %v875 = vld [vmem:[#allocation3] sm:$0xe]
          %v876 = vld [vmem:[#allocation3 + $0x8] sm:$0xe]
          %v877 = vld [vmem:[#allocation3 + $0x10] sm:$0xe]
          %v878 = vld [vmem:[#allocation3 + $0x18] sm:$0xe]
          %v879 = vld [vmem:[#allocation3 + $0x20] sm:$0xe]
          %v880 = vld [vmem:[#allocation3 + $0x28] sm:$0xe]
          %v881 = vld [vmem:[#allocation3 + $0x30] sm:$0xe]
          %v882 = vld [vmem:[#allocation3 + $0x38] sm:$0xe]
          %v899 = vunpack.c.l.b16 %v859
          %v900 = vunpack.c.l.b16 %v867
          %v901 = vunpack.c.l.b16 %v860
          %v902 = vunpack.c.l.b16 %v868
          %v903 = vunpack.c.l.b16 %v861
          %v904 = vunpack.c.l.b16 %v869
          %v905 = vunpack.c.l.b16 %v862
          %v906 = vunpack.c.l.b16 %v870
          %v907 = vunpack.c.l.b16 %v863
          %v908 = vunpack.c.l.b16 %v871
          %v909 = vunpack.c.l.b16 %v864
          %v910 = vunpack.c.l.b16 %v872
          %v911 = vunpack.c.l.b16 %v865
          %v912 = vunpack.c.l.b16 %v873
          %v913 = vunpack.c.l.b16 %v866
          %v914 = vunpack.c.l.b16 %v874
          %v915 = vpack.c.b16 %v900, %v899
          %v916 = vpack.c.b16 %v902, %v901
          %v917 = vpack.c.b16 %v904, %v903
          %v918 = vpack.c.b16 %v906, %v905
          %v919 = vpack.c.b16 %v908, %v907
          %v920 = vpack.c.b16 %v910, %v909
          %v921 = vpack.c.b16 %v912, %v911
          %v922 = vpack.c.b16 %v914, %v913
          %v924 = vshrl.u32 %v915, 16
          %v926 = vshll.u32 %v915, 16
          %v928 = vrot.slane %v926, 1
          %v929 = vor.u32 %v924, %v928
          %v931 = vshrl.u32 %v916, 16
          %v933 = vshll.u32 %v916, 16
          %v935 = vrot.slane %v933, 1
          %v936 = vor.u32 %v931, %v935
          %v938 = vshrl.u32 %v917, 16
          %v940 = vshll.u32 %v917, 16
          %v942 = vrot.slane %v940, 1
          %v943 = vor.u32 %v938, %v942
          %v945 = vshrl.u32 %v918, 16
          %v947 = vshll.u32 %v918, 16
          %v949 = vrot.slane %v947, 1
          %v950 = vor.u32 %v945, %v949
          %v952 = vshrl.u32 %v919, 16
          %v954 = vshll.u32 %v919, 16
          %v956 = vrot.slane %v954, 1
          %v957 = vor.u32 %v952, %v956
          %v959 = vshrl.u32 %v920, 16
          %v961 = vshll.u32 %v920, 16
          %v963 = vrot.slane %v961, 1
          %v964 = vor.u32 %v959, %v963
          %v966 = vshrl.u32 %v921, 16
          %v968 = vshll.u32 %v921, 16
          %v970 = vrot.slane %v968, 1
          %v971 = vor.u32 %v966, %v970
          %v973 = vshrl.u32 %v922, 16
          %v975 = vshll.u32 %v922, 16
          %v977 = vrot.slane %v975, 1
          %v978 = vor.u32 %v973, %v977
          %v987 = vunpack.c.l.b16 %v875
          %v988 = vunpack.c.l.b16 %v876
          %v989 = vunpack.c.l.b16 %v877
          %v990 = vunpack.c.l.b16 %v878
          %v991 = vunpack.c.l.b16 %v879
          %v992 = vunpack.c.l.b16 %v880
          %v993 = vunpack.c.l.b16 %v881
          %v994 = vunpack.c.l.b16 %v882
          %v995 = vpack.c.b16 %v900, %v987
          %v996 = vpack.c.b16 %v902, %v988
          %v997 = vpack.c.b16 %v904, %v989
          %v998 = vpack.c.b16 %v906, %v990
          %v999 = vpack.c.b16 %v908, %v991
          %v1000 = vpack.c.b16 %v910, %v992
          %v1001 = vpack.c.b16 %v912, %v993
          %v1002 = vpack.c.b16 %v914, %v994
          %v1003 = vrot.slane %v995, 1
          %v1004 = vrot.slane %v996, 1
          %v1005 = vrot.slane %v997, 1
          %v1006 = vrot.slane %v998, 1
          %v1007 = vrot.slane %v999, 1
          %v1008 = vrot.slane %v1000, 1
          %v1009 = vrot.slane %v1001, 1
          %v1010 = vrot.slane %v1002, 1
          %v1011 = vunpack.c.l.b16 %v929
          %v1012 = vunpack.c.l.b16 %v1003
          %v1013 = vunpack.c.l.b16 %v936
          %v1014 = vunpack.c.l.b16 %v1004
          %v1015 = vunpack.c.l.b16 %v943
          %v1016 = vunpack.c.l.b16 %v1005
          %v1017 = vunpack.c.l.b16 %v950
          %v1018 = vunpack.c.l.b16 %v1006
          %v1019 = vunpack.c.l.b16 %v957
          %v1020 = vunpack.c.l.b16 %v1007
          %v1021 = vunpack.c.l.b16 %v964
          %v1022 = vunpack.c.l.b16 %v1008
          %v1023 = vunpack.c.l.b16 %v971
          %v1024 = vunpack.c.l.b16 %v1009
          %v1025 = vunpack.c.l.b16 %v978
          %v1026 = vunpack.c.l.b16 %v1010
          %v1027 = vld [vmem:[%s804] sm:$0xf]
          %v1028 = vld [vmem:[%s804 + $0x8] sm:$0xf]
          %v1029 = vld [vmem:[%s804 + $0x10] sm:$0xf]
          %v1030 = vld [vmem:[%s804 + $0x18] sm:$0xf]
          %v1031 = vld [vmem:[%s804 + $0x20] sm:$0xf]
          %v1032 = vld [vmem:[%s804 + $0x28] sm:$0xf]
          %v1033 = vld [vmem:[%s804 + $0x30] sm:$0xf]
          %v1034 = vld [vmem:[%s804 + $0x38] sm:$0xf]
          %v1035 = vld [vmem:[%s804 + $0x4] sm:$0x1]
          %v1036 = vld [vmem:[%s804 + $0xc] sm:$0x1]
          %v1037 = vld [vmem:[%s804 + $0x14] sm:$0x1]
          %v1038 = vld [vmem:[%s804 + $0x1c] sm:$0x1]
          %v1039 = vld [vmem:[%s804 + $0x24] sm:$0x1]
          %v1040 = vld [vmem:[%s804 + $0x2c] sm:$0x1]
          %v1041 = vld [vmem:[%s804 + $0x34] sm:$0x1]
          %v1042 = vld [vmem:[%s804 + $0x3c] sm:$0x1]
          %v1043 = vld [vmem:[%s804] sm:$0xe]
          %v1044 = vld [vmem:[%s804 + $0x8] sm:$0xe]
          %v1045 = vld [vmem:[%s804 + $0x10] sm:$0xe]
          %v1046 = vld [vmem:[%s804 + $0x18] sm:$0xe]
          %v1047 = vld [vmem:[%s804 + $0x20] sm:$0xe]
          %v1048 = vld [vmem:[%s804 + $0x28] sm:$0xe]
          %v1049 = vld [vmem:[%s804 + $0x30] sm:$0xe]
          %v1050 = vld [vmem:[%s804 + $0x38] sm:$0xe]
          %v1067 = vunpack.c.l.b16 %v1027
          %v1068 = vunpack.c.l.b16 %v1035
          %v1069 = vunpack.c.l.b16 %v1028
          %v1070 = vunpack.c.l.b16 %v1036
          %v1071 = vunpack.c.l.b16 %v1029
          %v1072 = vunpack.c.l.b16 %v1037
          %v1073 = vunpack.c.l.b16 %v1030
          %v1074 = vunpack.c.l.b16 %v1038
          %v1075 = vunpack.c.l.b16 %v1031
          %v1076 = vunpack.c.l.b16 %v1039
          %v1077 = vunpack.c.l.b16 %v1032
          %v1078 = vunpack.c.l.b16 %v1040
          %v1079 = vunpack.c.l.b16 %v1033
          %v1080 = vunpack.c.l.b16 %v1041
          %v1081 = vunpack.c.l.b16 %v1034
          %v1082 = vunpack.c.l.b16 %v1042
          %v1083 = vpack.c.b16 %v1068, %v1067
          %v1084 = vpack.c.b16 %v1070, %v1069
          %v1085 = vpack.c.b16 %v1072, %v1071
          %v1086 = vpack.c.b16 %v1074, %v1073
          %v1087 = vpack.c.b16 %v1076, %v1075
          %v1088 = vpack.c.b16 %v1078, %v1077
          %v1089 = vpack.c.b16 %v1080, %v1079
          %v1090 = vpack.c.b16 %v1082, %v1081
          %v1092 = vshrl.u32 %v1083, 16
          %v1094 = vshll.u32 %v1083, 16
          %v1096 = vrot.slane %v1094, 1
          %v1097 = vor.u32 %v1092, %v1096
          %v1099 = vshrl.u32 %v1084, 16
          %v1101 = vshll.u32 %v1084, 16
          %v1103 = vrot.slane %v1101, 1
          %v1104 = vor.u32 %v1099, %v1103
          %v1106 = vshrl.u32 %v1085, 16
          %v1108 = vshll.u32 %v1085, 16
          %v1110 = vrot.slane %v1108, 1
          %v1111 = vor.u32 %v1106, %v1110
          %v1113 = vshrl.u32 %v1086, 16
          %v1115 = vshll.u32 %v1086, 16
          %v1117 = vrot.slane %v1115, 1
          %v1118 = vor.u32 %v1113, %v1117
          %v1120 = vshrl.u32 %v1087, 16
          %v1122 = vshll.u32 %v1087, 16
          %v1124 = vrot.slane %v1122, 1
          %v1125 = vor.u32 %v1120, %v1124
          %v1127 = vshrl.u32 %v1088, 16
          %v1129 = vshll.u32 %v1088, 16
          %v1131 = vrot.slane %v1129, 1
          %v1132 = vor.u32 %v1127, %v1131
          %v1134 = vshrl.u32 %v1089, 16
          %v1136 = vshll.u32 %v1089, 16
          %v1138 = vrot.slane %v1136, 1
          %v1139 = vor.u32 %v1134, %v1138
          %v1141 = vshrl.u32 %v1090, 16
          %v1143 = vshll.u32 %v1090, 16
          %v1145 = vrot.slane %v1143, 1
          %v1146 = vor.u32 %v1141, %v1145
          %v1155 = vunpack.c.l.b16 %v1043
          %v1156 = vunpack.c.l.b16 %v1044
          %v1157 = vunpack.c.l.b16 %v1045
          %v1158 = vunpack.c.l.b16 %v1046
          %v1159 = vunpack.c.l.b16 %v1047
          %v1160 = vunpack.c.l.b16 %v1048
          %v1161 = vunpack.c.l.b16 %v1049
          %v1162 = vunpack.c.l.b16 %v1050
          %v1163 = vpack.c.b16 %v1068, %v1155
          %v1164 = vpack.c.b16 %v1070, %v1156
          %v1165 = vpack.c.b16 %v1072, %v1157
          %v1166 = vpack.c.b16 %v1074, %v1158
          %v1167 = vpack.c.b16 %v1076, %v1159
          %v1168 = vpack.c.b16 %v1078, %v1160
          %v1169 = vpack.c.b16 %v1080, %v1161
          %v1170 = vpack.c.b16 %v1082, %v1162
          %v1171 = vrot.slane %v1163, 1
          %v1172 = vrot.slane %v1164, 1
          %v1173 = vrot.slane %v1165, 1
          %v1174 = vrot.slane %v1166, 1
          %v1175 = vrot.slane %v1167, 1
          %v1176 = vrot.slane %v1168, 1
          %v1177 = vrot.slane %v1169, 1
          %v1178 = vrot.slane %v1170, 1
          %v1179 = vunpack.c.l.b16 %v1097
          %v1180 = vunpack.c.l.b16 %v1171
          %v1181 = vunpack.c.l.b16 %v1104
          %v1182 = vunpack.c.l.b16 %v1172
          %v1183 = vunpack.c.l.b16 %v1111
          %v1184 = vunpack.c.l.b16 %v1173
          %v1185 = vunpack.c.l.b16 %v1118
          %v1186 = vunpack.c.l.b16 %v1174
          %v1187 = vunpack.c.l.b16 %v1125
          %v1188 = vunpack.c.l.b16 %v1175
          %v1189 = vunpack.c.l.b16 %v1132
          %v1190 = vunpack.c.l.b16 %v1176
          %v1191 = vunpack.c.l.b16 %v1139
          %v1192 = vunpack.c.l.b16 %v1177
          %v1193 = vunpack.c.l.b16 %v1146
          %v1194 = vunpack.c.l.b16 %v1178
          %s1195 = scalar_lea.vmem [#allocation3], 16
          %v1196 = vld [vmem:[%s1195] sm:$0xf]
          %v1197 = vld [vmem:[%s1195 + $0x8] sm:$0xf]
          %v1198 = vld [vmem:[%s1195 + $0x10] sm:$0xf]
          %v1199 = vld [vmem:[%s1195 + $0x18] sm:$0xf]
          %v1200 = vld [vmem:[%s1195 + $0x20] sm:$0xf]
          %v1201 = vld [vmem:[%s1195 + $0x28] sm:$0xf]
          %v1202 = vld [vmem:[%s1195 + $0x30] sm:$0xf]
          %v1203 = vld [vmem:[%s1195 + $0x38] sm:$0xf]
          %v1204 = vld [vmem:[%s1195 + $0x4] sm:$0x1]
          %v1205 = vld [vmem:[%s1195 + $0xc] sm:$0x1]
          %v1206 = vld [vmem:[%s1195 + $0x14] sm:$0x1]
          %v1207 = vld [vmem:[%s1195 + $0x1c] sm:$0x1]
          %v1208 = vld [vmem:[%s1195 + $0x24] sm:$0x1]
          %v1209 = vld [vmem:[%s1195 + $0x2c] sm:$0x1]
          %v1210 = vld [vmem:[%s1195 + $0x34] sm:$0x1]
          %v1211 = vld [vmem:[%s1195 + $0x3c] sm:$0x1]
          %v1212 = vld [vmem:[%s1195] sm:$0xe]
          %v1213 = vld [vmem:[%s1195 + $0x8] sm:$0xe]
          %v1214 = vld [vmem:[%s1195 + $0x10] sm:$0xe]
          %v1215 = vld [vmem:[%s1195 + $0x18] sm:$0xe]
          %v1216 = vld [vmem:[%s1195 + $0x20] sm:$0xe]
          %v1217 = vld [vmem:[%s1195 + $0x28] sm:$0xe]
          %v1218 = vld [vmem:[%s1195 + $0x30] sm:$0xe]
          %v1219 = vld [vmem:[%s1195 + $0x38] sm:$0xe]
          %v1236 = vunpack.c.l.b16 %v1196
          %v1237 = vunpack.c.l.b16 %v1204
          %v1238 = vunpack.c.l.b16 %v1197
          %v1239 = vunpack.c.l.b16 %v1205
          %v1240 = vunpack.c.l.b16 %v1198
          %v1241 = vunpack.c.l.b16 %v1206
          %v1242 = vunpack.c.l.b16 %v1199
          %v1243 = vunpack.c.l.b16 %v1207
          %v1244 = vunpack.c.l.b16 %v1200
          %v1245 = vunpack.c.l.b16 %v1208
          %v1246 = vunpack.c.l.b16 %v1201
          %v1247 = vunpack.c.l.b16 %v1209
          %v1248 = vunpack.c.l.b16 %v1202
          %v1249 = vunpack.c.l.b16 %v1210
          %v1250 = vunpack.c.l.b16 %v1203
          %v1251 = vunpack.c.l.b16 %v1211
          %v1252 = vpack.c.b16 %v1237, %v1236
          %v1253 = vpack.c.b16 %v1239, %v1238
          %v1254 = vpack.c.b16 %v1241, %v1240
          %v1255 = vpack.c.b16 %v1243, %v1242
          %v1256 = vpack.c.b16 %v1245, %v1244
          %v1257 = vpack.c.b16 %v1247, %v1246
          %v1258 = vpack.c.b16 %v1249, %v1248
          %v1259 = vpack.c.b16 %v1251, %v1250
          %v1261 = vshrl.u32 %v1252, 16
          %v1263 = vshll.u32 %v1252, 16
          %v1265 = vrot.slane %v1263, 1
          %v1266 = vor.u32 %v1261, %v1265
          %v1268 = vshrl.u32 %v1253, 16
          %v1270 = vshll.u32 %v1253, 16
          %v1272 = vrot.slane %v1270, 1
          %v1273 = vor.u32 %v1268, %v1272
          %v1275 = vshrl.u32 %v1254, 16
          %v1277 = vshll.u32 %v1254, 16
          %v1279 = vrot.slane %v1277, 1
          %v1280 = vor.u32 %v1275, %v1279
          %v1282 = vshrl.u32 %v1255, 16
          %v1284 = vshll.u32 %v1255, 16
          %v1286 = vrot.slane %v1284, 1
          %v1287 = vor.u32 %v1282, %v1286
          %v1289 = vshrl.u32 %v1256, 16
          %v1291 = vshll.u32 %v1256, 16
          %v1293 = vrot.slane %v1291, 1
          %v1294 = vor.u32 %v1289, %v1293
          %v1296 = vshrl.u32 %v1257, 16
          %v1298 = vshll.u32 %v1257, 16
          %v1300 = vrot.slane %v1298, 1
          %v1301 = vor.u32 %v1296, %v1300
          %v1303 = vshrl.u32 %v1258, 16
          %v1305 = vshll.u32 %v1258, 16
          %v1307 = vrot.slane %v1305, 1
          %v1308 = vor.u32 %v1303, %v1307
          %v1310 = vshrl.u32 %v1259, 16
          %v1312 = vshll.u32 %v1259, 16
          %v1314 = vrot.slane %v1312, 1
          %v1315 = vor.u32 %v1310, %v1314
          %v1324 = vunpack.c.l.b16 %v1212
          %v1325 = vunpack.c.l.b16 %v1213
          %v1326 = vunpack.c.l.b16 %v1214
          %v1327 = vunpack.c.l.b16 %v1215
          %v1328 = vunpack.c.l.b16 %v1216
          %v1329 = vunpack.c.l.b16 %v1217
          %v1330 = vunpack.c.l.b16 %v1218
          %v1331 = vunpack.c.l.b16 %v1219
          %v1332 = vpack.c.b16 %v1237, %v1324
          %v1333 = vpack.c.b16 %v1239, %v1325
          %v1334 = vpack.c.b16 %v1241, %v1326
          %v1335 = vpack.c.b16 %v1243, %v1327
          %v1336 = vpack.c.b16 %v1245, %v1328
          %v1337 = vpack.c.b16 %v1247, %v1329
          %v1338 = vpack.c.b16 %v1249, %v1330
          %v1339 = vpack.c.b16 %v1251, %v1331
          %v1340 = vrot.slane %v1332, 1
          %v1341 = vrot.slane %v1333, 1
          %v1342 = vrot.slane %v1334, 1
          %v1343 = vrot.slane %v1335, 1
          %v1344 = vrot.slane %v1336, 1
          %v1345 = vrot.slane %v1337, 1
          %v1346 = vrot.slane %v1338, 1
          %v1347 = vrot.slane %v1339, 1
          %v1348 = vunpack.c.l.b16 %v1266
          %v1349 = vunpack.c.l.b16 %v1340
          %v1350 = vunpack.c.l.b16 %v1273
          %v1351 = vunpack.c.l.b16 %v1341
          %v1352 = vunpack.c.l.b16 %v1280
          %v1353 = vunpack.c.l.b16 %v1342
          %v1354 = vunpack.c.l.b16 %v1287
          %v1355 = vunpack.c.l.b16 %v1343
          %v1356 = vunpack.c.l.b16 %v1294
          %v1357 = vunpack.c.l.b16 %v1344
          %v1358 = vunpack.c.l.b16 %v1301
          %v1359 = vunpack.c.l.b16 %v1345
          %v1360 = vunpack.c.l.b16 %v1308
          %v1361 = vunpack.c.l.b16 %v1346
          %v1362 = vunpack.c.l.b16 %v1315
          %v1363 = vunpack.c.l.b16 %v1347
          %p1364 = scmp.ge.s32.totalorder %s580, 0
          %p1365 = pnand %p1364, %p581
          %p1366 = pneg %p1365
          // Predicated region
          $region97: #{tpu_custom_call.1} parent=95 // pred_check
            _
          $region98: #{tpu_custom_call.1} parent=95 // pred_check_branch
            %1368 = sbr.rel (%p1365) target = $region100
          $region99: #{tpu_custom_call.1} parent=95 // pred_region
            %v1369 = vld [vmem:[#allocation9] sm:$0xf]
            %v1370 = vld [vmem:[#allocation9 + $0x4] sm:$0xf]
            %v1371 = vld [vmem:[#allocation9 + $0x8] sm:$0xf]
            %v1372 = vld [vmem:[#allocation9 + $0xc] sm:$0xf]
            %v1373 = vld [vmem:[#allocation9 + $0x10] sm:$0xf]
            %v1374 = vld [vmem:[#allocation9 + $0x14] sm:$0xf]
            %v1375 = vld [vmem:[#allocation9 + $0x18] sm:$0xf]
            %v1376 = vld [vmem:[#allocation9 + $0x1c] sm:$0xf]
            %v1377 = vld [vmem:[#allocation9 + $0x20] sm:$0xf]
            %v1378 = vld [vmem:[#allocation9 + $0x24] sm:$0xf]
            %v1379 = vld [vmem:[#allocation9 + $0x28] sm:$0xf]
            %v1380 = vld [vmem:[#allocation9 + $0x2c] sm:$0xf]
            %v1381 = vld [vmem:[#allocation9 + $0x30] sm:$0xf]
            %v1382 = vld [vmem:[#allocation9 + $0x34] sm:$0xf]
            %v1383 = vld [vmem:[#allocation9 + $0x38] sm:$0xf]
            %v1384 = vld [vmem:[#allocation9 + $0x3c] sm:$0xf]
            %v1385 = vld [vmem:[#allocation9 + $0x40] sm:$0xf]
            %v1386 = vld [vmem:[#allocation9 + $0x44] sm:$0xf]
            %v1387 = vld [vmem:[#allocation9 + $0x48] sm:$0xf]
            %v1388 = vld [vmem:[#allocation9 + $0x4c] sm:$0xf]
            %v1389 = vld [vmem:[#allocation9 + $0x50] sm:$0xf]
            %v1390 = vld [vmem:[#allocation9 + $0x54] sm:$0xf]
            %v1391 = vld [vmem:[#allocation9 + $0x58] sm:$0xf]
            %v1392 = vld [vmem:[#allocation9 + $0x5c] sm:$0xf]
            %v1393 = vld [vmem:[#allocation9 + $0x60] sm:$0xf]
            %v1394 = vld [vmem:[#allocation9 + $0x64] sm:$0xf]
            %v1395 = vld [vmem:[#allocation9 + $0x68] sm:$0xf]
            %v1396 = vld [vmem:[#allocation9 + $0x6c] sm:$0xf]
            %v1397 = vld [vmem:[#allocation9 + $0x70] sm:$0xf]
            %v1398 = vld [vmem:[#allocation9 + $0x74] sm:$0xf]
            %v1399 = vld [vmem:[#allocation9 + $0x78] sm:$0xf]
            %v1400 = vld [vmem:[#allocation9 + $0x7c] sm:$0xf]
            %v1401 = vld [vmem:[#allocation9 + $0x80] sm:$0xf]
            %v1402 = vld [vmem:[#allocation9 + $0x84] sm:$0xf]
            %v1403 = vld [vmem:[#allocation9 + $0x88] sm:$0xf]
            %v1404 = vld [vmem:[#allocation9 + $0x8c] sm:$0xf]
            %v1405 = vld [vmem:[#allocation9 + $0x90] sm:$0xf]
            %v1406 = vld [vmem:[#allocation9 + $0x94] sm:$0xf]
            %v1407 = vld [vmem:[#allocation9 + $0x98] sm:$0xf]
            %v1408 = vld [vmem:[#allocation9 + $0x9c] sm:$0xf]
            %v1409 = vld [vmem:[#allocation9 + $0xa0] sm:$0xf]
            %v1410 = vld [vmem:[#allocation9 + $0xa4] sm:$0xf]
            %v1411 = vld [vmem:[#allocation9 + $0xa8] sm:$0xf]
            %v1412 = vld [vmem:[#allocation9 + $0xac] sm:$0xf]
            %v1413 = vld [vmem:[#allocation9 + $0xb0] sm:$0xf]
            %v1414 = vld [vmem:[#allocation9 + $0xb4] sm:$0xf]
            %v1415 = vld [vmem:[#allocation9 + $0xb8] sm:$0xf]
            %v1416 = vld [vmem:[#allocation9 + $0xbc] sm:$0xf]
            %s1417 = scalar_lea.vmem [#allocation9], 192
            %v1418 = vld [vmem:[%s1417] sm:$0xf]
            %v1419 = vld [vmem:[%s1417 + $0x4] sm:$0xf]
            %v1420 = vld [vmem:[%s1417 + $0x8] sm:$0xf]
            %v1421 = vld [vmem:[%s1417 + $0xc] sm:$0xf]
            %v1422 = vld [vmem:[%s1417 + $0x10] sm:$0xf]
            %v1423 = vld [vmem:[%s1417 + $0x14] sm:$0xf]
            %v1424 = vld [vmem:[%s1417 + $0x18] sm:$0xf]
            %v1425 = vld [vmem:[%s1417 + $0x1c] sm:$0xf]
            %v1426 = vld [vmem:[%s1417 + $0x20] sm:$0xf]
            %v1427 = vld [vmem:[%s1417 + $0x24] sm:$0xf]
            %v1428 = vld [vmem:[%s1417 + $0x28] sm:$0xf]
            %v1429 = vld [vmem:[%s1417 + $0x2c] sm:$0xf]
            %v1430 = vld [vmem:[%s1417 + $0x30] sm:$0xf]
            %v1431 = vld [vmem:[%s1417 + $0x34] sm:$0xf]
            %v1432 = vld [vmem:[%s1417 + $0x38] sm:$0xf]
            %v1433 = vld [vmem:[%s1417 + $0x3c] sm:$0xf]
            %v1434 = vld [vmem:[%s1417 + $0x40] sm:$0xf]
            %v1435 = vld [vmem:[%s1417 + $0x44] sm:$0xf]
            %v1436 = vld [vmem:[%s1417 + $0x48] sm:$0xf]
            %v1437 = vld [vmem:[%s1417 + $0x4c] sm:$0xf]
            %v1438 = vld [vmem:[%s1417 + $0x50] sm:$0xf]
            %v1439 = vld [vmem:[%s1417 + $0x54] sm:$0xf]
            %v1440 = vld [vmem:[%s1417 + $0x58] sm:$0xf]
            %v1441 = vld [vmem:[%s1417 + $0x5c] sm:$0xf]
            %v1442 = vld [vmem:[%s1417 + $0x60] sm:$0xf]
            %v1443 = vld [vmem:[%s1417 + $0x64] sm:$0xf]
            %v1444 = vld [vmem:[%s1417 + $0x68] sm:$0xf]
            %v1445 = vld [vmem:[%s1417 + $0x6c] sm:$0xf]
            %v1446 = vld [vmem:[%s1417 + $0x70] sm:$0xf]
            %v1447 = vld [vmem:[%s1417 + $0x74] sm:$0xf]
            %v1448 = vld [vmem:[%s1417 + $0x78] sm:$0xf]
            %v1449 = vld [vmem:[%s1417 + $0x7c] sm:$0xf]
            %v1450 = vld [vmem:[%s1417 + $0x80] sm:$0xf]
            %v1451 = vld [vmem:[%s1417 + $0x84] sm:$0xf]
            %v1452 = vld [vmem:[%s1417 + $0x88] sm:$0xf]
            %v1453 = vld [vmem:[%s1417 + $0x8c] sm:$0xf]
            %v1454 = vld [vmem:[%s1417 + $0x90] sm:$0xf]
            %v1455 = vld [vmem:[%s1417 + $0x94] sm:$0xf]
            %v1456 = vld [vmem:[%s1417 + $0x98] sm:$0xf]
            %v1457 = vld [vmem:[%s1417 + $0x9c] sm:$0xf]
            %v1458 = vld [vmem:[%s1417 + $0xa0] sm:$0xf]
            %v1459 = vld [vmem:[%s1417 + $0xa4] sm:$0xf]
            %v1460 = vld [vmem:[%s1417 + $0xa8] sm:$0xf]
            %v1461 = vld [vmem:[%s1417 + $0xac] sm:$0xf]
            %v1462 = vld [vmem:[%s1417 + $0xb0] sm:$0xf]
            %v1463 = vld [vmem:[%s1417 + $0xb4] sm:$0xf]
            %v1464 = vld [vmem:[%s1417 + $0xb8] sm:$0xf]
            %v1465 = vld [vmem:[%s1417 + $0xbc] sm:$0xf]
            %v1466 = vpack.c.b16 %v1069, %v1067
            %v1467 = vpack.c.b16 %v1181, %v1179
            %v1468 = vpack.c.b16 %v1182, %v1180
            %v1469 = vpack.c.b16 %v1073, %v1071
            %v1470 = vpack.c.b16 %v1185, %v1183
            %v1471 = vpack.c.b16 %v1186, %v1184
            %v1472 = vpack.c.b16 %v1077, %v1075
            %v1473 = vpack.c.b16 %v1189, %v1187
            %v1474 = vpack.c.b16 %v1190, %v1188
            %v1475 = vpack.c.b16 %v1081, %v1079
            %v1476 = vpack.c.b16 %v1193, %v1191
            %v1477 = vpack.c.b16 %v1194, %v1192
            %v1538 = vunpack.c.l.b16 %v1418
            %v1539 = vunpack.c.l.b16 %v1419
            %v1540 = vunpack.c.l.b16 %v1420
            %v1541 = vunpack.c.l.b16 %v1421
            %v1542 = vunpack.c.l.b16 %v1422
            %v1543 = vunpack.c.l.b16 %v1423
            %v1544 = vunpack.c.l.b16 %v1424
            %v1545 = vunpack.c.l.b16 %v1425
            %v1546 = vunpack.c.l.b16 %v1426
            %v1547 = vunpack.c.l.b16 %v1427
            %v1548 = vunpack.c.l.b16 %v1428
            %v1549 = vunpack.c.l.b16 %v1429
            %v1550 = vunpack.c.l.b16 %v1430
            %v1551 = vunpack.c.l.b16 %v1431
            %v1552 = vunpack.c.l.b16 %v1432
            %v1553 = vunpack.c.l.b16 %v1433
            %v1554 = vunpack.c.l.b16 %v1434
            %v1555 = vunpack.c.l.b16 %v1435
            %v1556 = vunpack.c.l.b16 %v1436
            %v1557 = vunpack.c.l.b16 %v1437
            %v1558 = vunpack.c.l.b16 %v1438
            %v1559 = vunpack.c.l.b16 %v1439
            %v1560 = vunpack.c.l.b16 %v1440
            %v1561 = vunpack.c.l.b16 %v1441
            %v1562 = vunpack.c.l.b16 %v1442
            %v1563 = vunpack.c.l.b16 %v1443
            %v1564 = vunpack.c.l.b16 %v1444
            %v1565 = vunpack.c.l.b16 %v1445
            %v1566 = vunpack.c.l.b16 %v1446
            %v1567 = vunpack.c.l.b16 %v1447
            %v1568 = vunpack.c.l.b16 %v1448
            %v1569 = vunpack.c.l.b16 %v1449
            %v1570 = vunpack.c.l.b16 %v1450
            %v1571 = vunpack.c.l.b16 %v1451
            %v1572 = vunpack.c.l.b16 %v1452
            %v1573 = vunpack.c.l.b16 %v1453
            %v1574 = vunpack.c.l.b16 %v1454
            %v1575 = vunpack.c.l.b16 %v1455
            %v1576 = vunpack.c.l.b16 %v1456
            %v1577 = vunpack.c.l.b16 %v1457
            %v1578 = vunpack.c.l.b16 %v1458
            %v1579 = vunpack.c.l.b16 %v1459
            %v1580 = vunpack.c.l.b16 %v1460
            %v1581 = vunpack.c.l.b16 %v1461
            %v1582 = vunpack.c.l.b16 %v1462
            %v1583 = vunpack.c.l.b16 %v1463
            %v1584 = vunpack.c.l.b16 %v1464
            %v1585 = vunpack.c.l.b16 %v1465
            %v1586 = vpack.c.b16 %v1539, %v1538
            %v1587 = vpack.c.b16 %v1541, %v1540
            %v1588 = vpack.c.b16 %v1543, %v1542
            %v1589 = vpack.c.b16 %v1545, %v1544
            %v1590 = vpack.c.b16 %v1547, %v1546
            %v1591 = vpack.c.b16 %v1549, %v1548
            %v1592 = vpack.c.b16 %v1551, %v1550
            %v1593 = vpack.c.b16 %v1553, %v1552
            %v1594 = vpack.c.b16 %v1555, %v1554
            %v1595 = vpack.c.b16 %v1557, %v1556
            %v1596 = vpack.c.b16 %v1559, %v1558
            %v1597 = vpack.c.b16 %v1561, %v1560
            %v1598 = vpack.c.b16 %v1563, %v1562
            %v1599 = vpack.c.b16 %v1565, %v1564
            %v1600 = vpack.c.b16 %v1567, %v1566
            %v1601 = vpack.c.b16 %v1569, %v1568
            %v1602 = vpack.c.b16 %v1571, %v1570
            %v1603 = vpack.c.b16 %v1573, %v1572
            %v1604 = vpack.c.b16 %v1575, %v1574
            %v1605 = vpack.c.b16 %v1577, %v1576
            %v1606 = vpack.c.b16 %v1579, %v1578
            %v1607 = vpack.c.b16 %v1581, %v1580
            %v1608 = vpack.c.b16 %v1583, %v1582
            %v1609 = vpack.c.b16 %v1585, %v1584
            %1634 = vmatpush.bf16.msra.mxu0 %v1593
            %1635 = vmatpush.bf16.msra.mxu0 %v1592
            %1636 = vmatpush.bf16.msra.mxu0 %v1591
            %1637 = vmatpush.bf16.msra.mxu0 %v1590
            %1638 = vmatpush.bf16.msra.mxu0 %v1589
            %1639 = vmatpush.bf16.msra.mxu0 %v1588
            %1640 = vmatpush.bf16.msra.mxu0 %v1587
            %1641 = vmatpush.bf16.msra.mxu0 %v1586
            %1642 = vmatmul.bf16.gmra.mxu0 %v1466
            %v1643 = vpop.f32.mrf.mxu0
            %v1644 = vadd.f32 0.0, %v1643
            %v1645 = vpop.f32.mrf.mxu0
            %v1646 = vadd.f32 0.0, %v1645
            %1647 = vmatmul.bf16.gmra.mxu0 %v1469
            %v1648 = vpop.f32.mrf.mxu0
            %v1649 = vadd.f32 0.0, %v1648
            %v1650 = vpop.f32.mrf.mxu0
            %v1651 = vadd.f32 0.0, %v1650
            %1652 = vmatmul.bf16.gmra.mxu0 %v1472
            %v1653 = vpop.f32.mrf.mxu0
            %v1654 = vadd.f32 0.0, %v1653
            %v1655 = vpop.f32.mrf.mxu0
            %v1656 = vadd.f32 0.0, %v1655
            %1657 = vmatmul.bf16.gmra.mxu0 %v1475
            %v1658 = vpop.f32.mrf.mxu0
            %v1659 = vadd.f32 0.0, %v1658
            %v1660 = vpop.f32.mrf.mxu0
            %v1661 = vadd.f32 0.0, %v1660
            %1662 = vdwg.mxu0
            %1663 = vmatpush.bf16.msra.mxu0 %v1601
            %1664 = vmatpush.bf16.msra.mxu0 %v1600
            %1665 = vmatpush.bf16.msra.mxu0 %v1599
            %1666 = vmatpush.bf16.msra.mxu0 %v1598
            %1667 = vmatpush.bf16.msra.mxu0 %v1597
            %1668 = vmatpush.bf16.msra.mxu0 %v1596
            %1669 = vmatpush.bf16.msra.mxu0 %v1595
            %1670 = vmatpush.bf16.msra.mxu0 %v1594
            %1671 = vmatmul.bf16.gmra.mxu0 %v1467
            %v1672 = vpop.f32.mrf.mxu0
            %v1673 = vadd.f32 %v1644, %v1672
            %v1674 = vpop.f32.mrf.mxu0
            %v1675 = vadd.f32 %v1646, %v1674
            %1676 = vmatmul.bf16.gmra.mxu0 %v1470
            %v1677 = vpop.f32.mrf.mxu0
            %v1678 = vadd.f32 %v1649, %v1677
            %v1679 = vpop.f32.mrf.mxu0
            %v1680 = vadd.f32 %v1651, %v1679
            %1681 = vmatmul.bf16.gmra.mxu0 %v1473
            %v1682 = vpop.f32.mrf.mxu0
            %v1683 = vadd.f32 %v1654, %v1682
            %v1684 = vpop.f32.mrf.mxu0
            %v1685 = vadd.f32 %v1656, %v1684
            %1686 = vmatmul.bf16.gmra.mxu0 %v1476
            %v1687 = vpop.f32.mrf.mxu0
            %v1688 = vadd.f32 %v1659, %v1687
            %v1689 = vpop.f32.mrf.mxu0
            %v1690 = vadd.f32 %v1661, %v1689
            %1691 = vdwg.mxu0
            %1692 = vmatpush.bf16.msra.mxu0 %v1609
            %1693 = vmatpush.bf16.msra.mxu0 %v1608
            %1694 = vmatpush.bf16.msra.mxu0 %v1607
            %1695 = vmatpush.bf16.msra.mxu0 %v1606
            %1696 = vmatpush.bf16.msra.mxu0 %v1605
            %1697 = vmatpush.bf16.msra.mxu0 %v1604
            %1698 = vmatpush.bf16.msra.mxu0 %v1603
            %1699 = vmatpush.bf16.msra.mxu0 %v1602
            %1700 = vmatmul.bf16.gmra.mxu0 %v1468
            %v1701 = vpop.f32.mrf.mxu0
            %v1702 = vadd.f32 %v1673, %v1701
            %v1703 = vpop.f32.mrf.mxu0
            %v1704 = vadd.f32 %v1675, %v1703
            %1705 = vmatmul.bf16.gmra.mxu0 %v1471
            %v1706 = vpop.f32.mrf.mxu0
            %v1707 = vadd.f32 %v1678, %v1706
            %v1708 = vpop.f32.mrf.mxu0
            %v1709 = vadd.f32 %v1680, %v1708
            %1710 = vmatmul.bf16.gmra.mxu0 %v1474
            %v1711 = vpop.f32.mrf.mxu0
            %v1712 = vadd.f32 %v1683, %v1711
            %v1713 = vpop.f32.mrf.mxu0
            %v1714 = vadd.f32 %v1685, %v1713
            %1715 = vmatmul.bf16.gmra.mxu0 %v1477
            %v1716 = vpop.f32.mrf.mxu0
            %v1717 = vadd.f32 %v1688, %v1716
            %v1718 = vpop.f32.mrf.mxu0
            %v1719 = vadd.f32 %v1690, %v1718
            %1720 = vdwg.mxu0
            %v1721 = vpack.c.b16 %v901, %v899
            %v1722 = vpack.c.b16 %v1013, %v1011
            %v1723 = vpack.c.b16 %v1014, %v1012
            %v1724 = vpack.c.b16 %v905, %v903
            %v1725 = vpack.c.b16 %v1017, %v1015
            %v1726 = vpack.c.b16 %v1018, %v1016
            %v1727 = vpack.c.b16 %v909, %v907
            %v1728 = vpack.c.b16 %v1021, %v1019
            %v1729 = vpack.c.b16 %v1022, %v1020
            %v1730 = vpack.c.b16 %v913, %v911
            %v1731 = vpack.c.b16 %v1025, %v1023
            %v1732 = vpack.c.b16 %v1026, %v1024
            %v1793 = vunpack.c.l.b16 %v1369
            %v1794 = vunpack.c.l.b16 %v1370
            %v1795 = vunpack.c.l.b16 %v1371
            %v1796 = vunpack.c.l.b16 %v1372
            %v1797 = vunpack.c.l.b16 %v1373
            %v1798 = vunpack.c.l.b16 %v1374
            %v1799 = vunpack.c.l.b16 %v1375
            %v1800 = vunpack.c.l.b16 %v1376
            %v1801 = vunpack.c.l.b16 %v1377
            %v1802 = vunpack.c.l.b16 %v1378
            %v1803 = vunpack.c.l.b16 %v1379
            %v1804 = vunpack.c.l.b16 %v1380
            %v1805 = vunpack.c.l.b16 %v1381
            %v1806 = vunpack.c.l.b16 %v1382
            %v1807 = vunpack.c.l.b16 %v1383
            %v1808 = vunpack.c.l.b16 %v1384
            %v1809 = vunpack.c.l.b16 %v1385
            %v1810 = vunpack.c.l.b16 %v1386
            %v1811 = vunpack.c.l.b16 %v1387
            %v1812 = vunpack.c.l.b16 %v1388
            %v1813 = vunpack.c.l.b16 %v1389
            %v1814 = vunpack.c.l.b16 %v1390
            %v1815 = vunpack.c.l.b16 %v1391
            %v1816 = vunpack.c.l.b16 %v1392
            %v1817 = vunpack.c.l.b16 %v1393
            %v1818 = vunpack.c.l.b16 %v1394
            %v1819 = vunpack.c.l.b16 %v1395
            %v1820 = vunpack.c.l.b16 %v1396
            %v1821 = vunpack.c.l.b16 %v1397
            %v1822 = vunpack.c.l.b16 %v1398
            %v1823 = vunpack.c.l.b16 %v1399
            %v1824 = vunpack.c.l.b16 %v1400
            %v1825 = vunpack.c.l.b16 %v1401
            %v1826 = vunpack.c.l.b16 %v1402
            %v1827 = vunpack.c.l.b16 %v1403
            %v1828 = vunpack.c.l.b16 %v1404
            %v1829 = vunpack.c.l.b16 %v1405
            %v1830 = vunpack.c.l.b16 %v1406
            %v1831 = vunpack.c.l.b16 %v1407
            %v1832 = vunpack.c.l.b16 %v1408
            %v1833 = vunpack.c.l.b16 %v1409
            %v1834 = vunpack.c.l.b16 %v1410
            %v1835 = vunpack.c.l.b16 %v1411
            %v1836 = vunpack.c.l.b16 %v1412
            %v1837 = vunpack.c.l.b16 %v1413
            %v1838 = vunpack.c.l.b16 %v1414
            %v1839 = vunpack.c.l.b16 %v1415
            %v1840 = vunpack.c.l.b16 %v1416
            %v1841 = vpack.c.b16 %v1794, %v1793
            %v1842 = vpack.c.b16 %v1796, %v1795
            %v1843 = vpack.c.b16 %v1798, %v1797
            %v1844 = vpack.c.b16 %v1800, %v1799
            %v1845 = vpack.c.b16 %v1802, %v1801
            %v1846 = vpack.c.b16 %v1804, %v1803
            %v1847 = vpack.c.b16 %v1806, %v1805
            %v1848 = vpack.c.b16 %v1808, %v1807
            %v1849 = vpack.c.b16 %v1810, %v1809
            %v1850 = vpack.c.b16 %v1812, %v1811
            %v1851 = vpack.c.b16 %v1814, %v1813
            %v1852 = vpack.c.b16 %v1816, %v1815
            %v1853 = vpack.c.b16 %v1818, %v1817
            %v1854 = vpack.c.b16 %v1820, %v1819
            %v1855 = vpack.c.b16 %v1822, %v1821
            %v1856 = vpack.c.b16 %v1824, %v1823
            %v1857 = vpack.c.b16 %v1826, %v1825
            %v1858 = vpack.c.b16 %v1828, %v1827
            %v1859 = vpack.c.b16 %v1830, %v1829
            %v1860 = vpack.c.b16 %v1832, %v1831
            %v1861 = vpack.c.b16 %v1834, %v1833
            %v1862 = vpack.c.b16 %v1836, %v1835
            %v1863 = vpack.c.b16 %v1838, %v1837
            %v1864 = vpack.c.b16 %v1840, %v1839
            %1889 = vmatpush.bf16.msra.mxu0 %v1848
            %1890 = vmatpush.bf16.msra.mxu0 %v1847
            %1891 = vmatpush.bf16.msra.mxu0 %v1846
            %1892 = vmatpush.bf16.msra.mxu0 %v1845
            %1893 = vmatpush.bf16.msra.mxu0 %v1844
            %1894 = vmatpush.bf16.msra.mxu0 %v1843
            %1895 = vmatpush.bf16.msra.mxu0 %v1842
            %1896 = vmatpush.bf16.msra.mxu0 %v1841
            %1897 = vmatmul.bf16.gmra.mxu0 %v1721
            %v1898 = vpop.f32.mrf.mxu0
            %v1899 = vadd.f32 %v1702, %v1898
            %v1900 = vpop.f32.mrf.mxu0
            %v1901 = vadd.f32 %v1704, %v1900
            %1902 = vmatmul.bf16.gmra.mxu0 %v1724
            %v1903 = vpop.f32.mrf.mxu0
            %v1904 = vadd.f32 %v1707, %v1903
            %v1905 = vpop.f32.mrf.mxu0
            %v1906 = vadd.f32 %v1709, %v1905
            %1907 = vmatmul.bf16.gmra.mxu0 %v1727
            %v1908 = vpop.f32.mrf.mxu0
            %v1909 = vadd.f32 %v1712, %v1908
            %v1910 = vpop.f32.mrf.mxu0
            %v1911 = vadd.f32 %v1714, %v1910
            %1912 = vmatmul.bf16.gmra.mxu0 %v1730
            %v1913 = vpop.f32.mrf.mxu0
            %v1914 = vadd.f32 %v1717, %v1913
            %v1915 = vpop.f32.mrf.mxu0
            %v1916 = vadd.f32 %v1719, %v1915
            %1917 = vdwg.mxu0
            %1918 = vmatpush.bf16.msra.mxu0 %v1856
            %1919 = vmatpush.bf16.msra.mxu0 %v1855
            %1920 = vmatpush.bf16.msra.mxu0 %v1854
            %1921 = vmatpush.bf16.msra.mxu0 %v1853
            %1922 = vmatpush.bf16.msra.mxu0 %v1852
            %1923 = vmatpush.bf16.msra.mxu0 %v1851
            %1924 = vmatpush.bf16.msra.mxu0 %v1850
            %1925 = vmatpush.bf16.msra.mxu0 %v1849
            %1926 = vmatmul.bf16.gmra.mxu0 %v1722
            %v1927 = vpop.f32.mrf.mxu0
            %v1928 = vadd.f32 %v1899, %v1927
            %v1929 = vpop.f32.mrf.mxu0
            %v1930 = vadd.f32 %v1901, %v1929
            %1931 = vmatmul.bf16.gmra.mxu0 %v1725
            %v1932 = vpop.f32.mrf.mxu0
            %v1933 = vadd.f32 %v1904, %v1932
            %v1934 = vpop.f32.mrf.mxu0
            %v1935 = vadd.f32 %v1906, %v1934
            %1936 = vmatmul.bf16.gmra.mxu0 %v1728
            %v1937 = vpop.f32.mrf.mxu0
            %v1938 = vadd.f32 %v1909, %v1937
            %v1939 = vpop.f32.mrf.mxu0
            %v1940 = vadd.f32 %v1911, %v1939
            %1941 = vmatmul.bf16.gmra.mxu0 %v1731
            %v1942 = vpop.f32.mrf.mxu0
            %v1943 = vadd.f32 %v1914, %v1942
            %v1944 = vpop.f32.mrf.mxu0
            %v1945 = vadd.f32 %v1916, %v1944
            %1946 = vdwg.mxu0
            %1947 = vmatpush.bf16.msra.mxu0 %v1864
            %1948 = vmatpush.bf16.msra.mxu0 %v1863
            %1949 = vmatpush.bf16.msra.mxu0 %v1862
            %1950 = vmatpush.bf16.msra.mxu0 %v1861
            %1951 = vmatpush.bf16.msra.mxu0 %v1860
            %1952 = vmatpush.bf16.msra.mxu0 %v1859
            %1953 = vmatpush.bf16.msra.mxu0 %v1858
            %1954 = vmatpush.bf16.msra.mxu0 %v1857
            %1955 = vmatmul.bf16.gmra.mxu0 %v1723
            %v1956 = vpop.f32.mrf.mxu0
            %v1957 = vadd.f32 %v1928, %v1956
            %v1958 = vpop.f32.mrf.mxu0
            %v1959 = vadd.f32 %v1930, %v1958
            %1960 = vmatmul.bf16.gmra.mxu0 %v1726
            %v1961 = vpop.f32.mrf.mxu0
            %v1962 = vadd.f32 %v1933, %v1961
            %v1963 = vpop.f32.mrf.mxu0
            %v1964 = vadd.f32 %v1935, %v1963
            %1965 = vmatmul.bf16.gmra.mxu0 %v1729
            %v1966 = vpop.f32.mrf.mxu0
            %v1967 = vadd.f32 %v1938, %v1966
            %v1968 = vpop.f32.mrf.mxu0
            %v1969 = vadd.f32 %v1940, %v1968
            %1970 = vmatmul.bf16.gmra.mxu0 %v1732
            %v1971 = vpop.f32.mrf.mxu0
            %v1972 = vadd.f32 %v1943, %v1971
            %v1973 = vpop.f32.mrf.mxu0
            %v1974 = vadd.f32 %v1945, %v1973
            %1975 = vdwg.mxu0
            %s1976 = scalar_lea.vmem [#allocation9], 384
            %v1977 = vld [vmem:[%s1976] sm:$0xf]
            %v1978 = vld [vmem:[%s1976 + $0x4] sm:$0xf]
            %v1979 = vld [vmem:[%s1976 + $0x8] sm:$0xf]
            %v1980 = vld [vmem:[%s1976 + $0xc] sm:$0xf]
            %v1981 = vld [vmem:[%s1976 + $0x10] sm:$0xf]
            %v1982 = vld [vmem:[%s1976 + $0x14] sm:$0xf]
            %v1983 = vld [vmem:[%s1976 + $0x18] sm:$0xf]
            %v1984 = vld [vmem:[%s1976 + $0x1c] sm:$0xf]
            %v1985 = vld [vmem:[%s1976 + $0x20] sm:$0xf]
            %v1986 = vld [vmem:[%s1976 + $0x24] sm:$0xf]
            %v1987 = vld [vmem:[%s1976 + $0x28] sm:$0xf]
            %v1988 = vld [vmem:[%s1976 + $0x2c] sm:$0xf]
            %v1989 = vld [vmem:[%s1976 + $0x30] sm:$0xf]
            %v1990 = vld [vmem:[%s1976 + $0x34] sm:$0xf]
            %v1991 = vld [vmem:[%s1976 + $0x38] sm:$0xf]
            %v1992 = vld [vmem:[%s1976 + $0x3c] sm:$0xf]
            %v1993 = vld [vmem:[%s1976 + $0x40] sm:$0xf]
            %v1994 = vld [vmem:[%s1976 + $0x44] sm:$0xf]
            %v1995 = vld [vmem:[%s1976 + $0x48] sm:$0xf]
            %v1996 = vld [vmem:[%s1976 + $0x4c] sm:$0xf]
            %v1997 = vld [vmem:[%s1976 + $0x50] sm:$0xf]
            %v1998 = vld [vmem:[%s1976 + $0x54] sm:$0xf]
            %v1999 = vld [vmem:[%s1976 + $0x58] sm:$0xf]
            %v2000 = vld [vmem:[%s1976 + $0x5c] sm:$0xf]
            %v2001 = vld [vmem:[%s1976 + $0x60] sm:$0xf]
            %v2002 = vld [vmem:[%s1976 + $0x64] sm:$0xf]
            %v2003 = vld [vmem:[%s1976 + $0x68] sm:$0xf]
            %v2004 = vld [vmem:[%s1976 + $0x6c] sm:$0xf]
            %v2005 = vld [vmem:[%s1976 + $0x70] sm:$0xf]
            %v2006 = vld [vmem:[%s1976 + $0x74] sm:$0xf]
            %v2007 = vld [vmem:[%s1976 + $0x78] sm:$0xf]
            %v2008 = vld [vmem:[%s1976 + $0x7c] sm:$0xf]
            %v2009 = vld [vmem:[%s1976 + $0x80] sm:$0xf]
            %v2010 = vld [vmem:[%s1976 + $0x84] sm:$0xf]
            %v2011 = vld [vmem:[%s1976 + $0x88] sm:$0xf]
            %v2012 = vld [vmem:[%s1976 + $0x8c] sm:$0xf]
            %v2013 = vld [vmem:[%s1976 + $0x90] sm:$0xf]
            %v2014 = vld [vmem:[%s1976 + $0x94] sm:$0xf]
            %v2015 = vld [vmem:[%s1976 + $0x98] sm:$0xf]
            %v2016 = vld [vmem:[%s1976 + $0x9c] sm:$0xf]
            %v2017 = vld [vmem:[%s1976 + $0xa0] sm:$0xf]
            %v2018 = vld [vmem:[%s1976 + $0xa4] sm:$0xf]
            %v2019 = vld [vmem:[%s1976 + $0xa8] sm:$0xf]
            %v2020 = vld [vmem:[%s1976 + $0xac] sm:$0xf]
            %v2021 = vld [vmem:[%s1976 + $0xb0] sm:$0xf]
            %v2022 = vld [vmem:[%s1976 + $0xb4] sm:$0xf]
            %v2023 = vld [vmem:[%s1976 + $0xb8] sm:$0xf]
            %v2024 = vld [vmem:[%s1976 + $0xbc] sm:$0xf]
            %v2025 = vpack.c.b16 %v1238, %v1236
            %v2026 = vpack.c.b16 %v1350, %v1348
            %v2027 = vpack.c.b16 %v1351, %v1349
            %v2028 = vpack.c.b16 %v1242, %v1240
            %v2029 = vpack.c.b16 %v1354, %v1352
            %v2030 = vpack.c.b16 %v1355, %v1353
            %v2031 = vpack.c.b16 %v1246, %v1244
            %v2032 = vpack.c.b16 %v1358, %v1356
            %v2033 = vpack.c.b16 %v1359, %v1357
            %v2034 = vpack.c.b16 %v1250, %v1248
            %v2035 = vpack.c.b16 %v1362, %v1360
            %v2036 = vpack.c.b16 %v1363, %v1361
            %v2097 = vunpack.c.l.b16 %v1977
            %v2098 = vunpack.c.l.b16 %v1978
            %v2099 = vunpack.c.l.b16 %v1979
            %v2100 = vunpack.c.l.b16 %v1980
            %v2101 = vunpack.c.l.b16 %v1981
            %v2102 = vunpack.c.l.b16 %v1982
            %v2103 = vunpack.c.l.b16 %v1983
            %v2104 = vunpack.c.l.b16 %v1984
            %v2105 = vunpack.c.l.b16 %v1985
            %v2106 = vunpack.c.l.b16 %v1986
            %v2107 = vunpack.c.l.b16 %v1987
            %v2108 = vunpack.c.l.b16 %v1988
            %v2109 = vunpack.c.l.b16 %v1989
            %v2110 = vunpack.c.l.b16 %v1990
            %v2111 = vunpack.c.l.b16 %v1991
            %v2112 = vunpack.c.l.b16 %v1992
            %v2113 = vunpack.c.l.b16 %v1993
            %v2114 = vunpack.c.l.b16 %v1994
            %v2115 = vunpack.c.l.b16 %v1995
            %v2116 = vunpack.c.l.b16 %v1996
            %v2117 = vunpack.c.l.b16 %v1997
            %v2118 = vunpack.c.l.b16 %v1998
            %v2119 = vunpack.c.l.b16 %v1999
            %v2120 = vunpack.c.l.b16 %v2000
            %v2121 = vunpack.c.l.b16 %v2001
            %v2122 = vunpack.c.l.b16 %v2002
            %v2123 = vunpack.c.l.b16 %v2003
            %v2124 = vunpack.c.l.b16 %v2004
            %v2125 = vunpack.c.l.b16 %v2005
            %v2126 = vunpack.c.l.b16 %v2006
            %v2127 = vunpack.c.l.b16 %v2007
            %v2128 = vunpack.c.l.b16 %v2008
            %v2129 = vunpack.c.l.b16 %v2009
            %v2130 = vunpack.c.l.b16 %v2010
            %v2131 = vunpack.c.l.b16 %v2011
            %v2132 = vunpack.c.l.b16 %v2012
            %v2133 = vunpack.c.l.b16 %v2013
            %v2134 = vunpack.c.l.b16 %v2014
            %v2135 = vunpack.c.l.b16 %v2015
            %v2136 = vunpack.c.l.b16 %v2016
            %v2137 = vunpack.c.l.b16 %v2017
            %v2138 = vunpack.c.l.b16 %v2018
            %v2139 = vunpack.c.l.b16 %v2019
            %v2140 = vunpack.c.l.b16 %v2020
            %v2141 = vunpack.c.l.b16 %v2021
            %v2142 = vunpack.c.l.b16 %v2022
            %v2143 = vunpack.c.l.b16 %v2023
            %v2144 = vunpack.c.l.b16 %v2024
            %v2145 = vpack.c.b16 %v2098, %v2097
            %v2146 = vpack.c.b16 %v2100, %v2099
            %v2147 = vpack.c.b16 %v2102, %v2101
            %v2148 = vpack.c.b16 %v2104, %v2103
            %v2149 = vpack.c.b16 %v2106, %v2105
            %v2150 = vpack.c.b16 %v2108, %v2107
            %v2151 = vpack.c.b16 %v2110, %v2109
            %v2152 = vpack.c.b16 %v2112, %v2111
            %v2153 = vpack.c.b16 %v2114, %v2113
            %v2154 = vpack.c.b16 %v2116, %v2115
            %v2155 = vpack.c.b16 %v2118, %v2117
            %v2156 = vpack.c.b16 %v2120, %v2119
            %v2157 = vpack.c.b16 %v2122, %v2121
            %v2158 = vpack.c.b16 %v2124, %v2123
            %v2159 = vpack.c.b16 %v2126, %v2125
            %v2160 = vpack.c.b16 %v2128, %v2127
            %v2161 = vpack.c.b16 %v2130, %v2129
            %v2162 = vpack.c.b16 %v2132, %v2131
            %v2163 = vpack.c.b16 %v2134, %v2133
            %v2164 = vpack.c.b16 %v2136, %v2135
            %v2165 = vpack.c.b16 %v2138, %v2137
            %v2166 = vpack.c.b16 %v2140, %v2139
            %v2167 = vpack.c.b16 %v2142, %v2141
            %v2168 = vpack.c.b16 %v2144, %v2143
            %2193 = vmatpush.bf16.msra.mxu0 %v2152
            %2194 = vmatpush.bf16.msra.mxu0 %v2151
            %2195 = vmatpush.bf16.msra.mxu0 %v2150
            %2196 = vmatpush.bf16.msra.mxu0 %v2149
            %2197 = vmatpush.bf16.msra.mxu0 %v2148
            %2198 = vmatpush.bf16.msra.mxu0 %v2147
            %2199 = vmatpush.bf16.msra.mxu0 %v2146
            %2200 = vmatpush.bf16.msra.mxu0 %v2145
            %2201 = vmatmul.bf16.gmra.mxu0 %v2025
            %v2202 = vpop.f32.mrf.mxu0
            %v2203 = vadd.f32 0.0, %v2202
            %v2204 = vpop.f32.mrf.mxu0
            %v2205 = vadd.f32 0.0, %v2204
            %2206 = vmatmul.bf16.gmra.mxu0 %v2028
            %v2207 = vpop.f32.mrf.mxu0
            %v2208 = vadd.f32 0.0, %v2207
            %v2209 = vpop.f32.mrf.mxu0
            %v2210 = vadd.f32 0.0, %v2209
            %2211 = vmatmul.bf16.gmra.mxu0 %v2031
            %v2212 = vpop.f32.mrf.mxu0
            %v2213 = vadd.f32 0.0, %v2212
            %v2214 = vpop.f32.mrf.mxu0
            %v2215 = vadd.f32 0.0, %v2214
            %2216 = vmatmul.bf16.gmra.mxu0 %v2034
            %v2217 = vpop.f32.mrf.mxu0
            %v2218 = vadd.f32 0.0, %v2217
            %v2219 = vpop.f32.mrf.mxu0
            %v2220 = vadd.f32 0.0, %v2219
            %2221 = vdwg.mxu0
            %2222 = vmatpush.bf16.msra.mxu0 %v2160
            %2223 = vmatpush.bf16.msra.mxu0 %v2159
            %2224 = vmatpush.bf16.msra.mxu0 %v2158
            %2225 = vmatpush.bf16.msra.mxu0 %v2157
            %2226 = vmatpush.bf16.msra.mxu0 %v2156
            %2227 = vmatpush.bf16.msra.mxu0 %v2155
            %2228 = vmatpush.bf16.msra.mxu0 %v2154
            %2229 = vmatpush.bf16.msra.mxu0 %v2153
            %2230 = vmatmul.bf16.gmra.mxu0 %v2026
            %v2231 = vpop.f32.mrf.mxu0
            %v2232 = vadd.f32 %v2203, %v2231
            %v2233 = vpop.f32.mrf.mxu0
            %v2234 = vadd.f32 %v2205, %v2233
            %2235 = vmatmul.bf16.gmra.mxu0 %v2029
            %v2236 = vpop.f32.mrf.mxu0
            %v2237 = vadd.f32 %v2208, %v2236
            %v2238 = vpop.f32.mrf.mxu0
            %v2239 = vadd.f32 %v2210, %v2238
            %2240 = vmatmul.bf16.gmra.mxu0 %v2032
            %v2241 = vpop.f32.mrf.mxu0
            %v2242 = vadd.f32 %v2213, %v2241
            %v2243 = vpop.f32.mrf.mxu0
            %v2244 = vadd.f32 %v2215, %v2243
            %2245 = vmatmul.bf16.gmra.mxu0 %v2035
            %v2246 = vpop.f32.mrf.mxu0
            %v2247 = vadd.f32 %v2218, %v2246
            %v2248 = vpop.f32.mrf.mxu0
            %v2249 = vadd.f32 %v2220, %v2248
            %2250 = vdwg.mxu0
            %2251 = vmatpush.bf16.msra.mxu0 %v2168
            %2252 = vmatpush.bf16.msra.mxu0 %v2167
            %2253 = vmatpush.bf16.msra.mxu0 %v2166
            %2254 = vmatpush.bf16.msra.mxu0 %v2165
            %2255 = vmatpush.bf16.msra.mxu0 %v2164
            %2256 = vmatpush.bf16.msra.mxu0 %v2163
            %2257 = vmatpush.bf16.msra.mxu0 %v2162
            %2258 = vmatpush.bf16.msra.mxu0 %v2161
            %2259 = vmatmul.bf16.gmra.mxu0 %v2027
            %v2260 = vpop.f32.mrf.mxu0
            %v2261 = vadd.f32 %v2232, %v2260
            %v2262 = vpop.f32.mrf.mxu0
            %v2263 = vadd.f32 %v2234, %v2262
            %2264 = vmatmul.bf16.gmra.mxu0 %v2030
            %v2265 = vpop.f32.mrf.mxu0
            %v2266 = vadd.f32 %v2237, %v2265
            %v2267 = vpop.f32.mrf.mxu0
            %v2268 = vadd.f32 %v2239, %v2267
            %2269 = vmatmul.bf16.gmra.mxu0 %v2033
            %v2270 = vpop.f32.mrf.mxu0
            %v2271 = vadd.f32 %v2242, %v2270
            %v2272 = vpop.f32.mrf.mxu0
            %v2273 = vadd.f32 %v2244, %v2272
            %2274 = vmatmul.bf16.gmra.mxu0 %v2036
            %v2275 = vpop.f32.mrf.mxu0
            %v2276 = vadd.f32 %v2247, %v2275
            %v2277 = vpop.f32.mrf.mxu0
            %v2278 = vadd.f32 %v2249, %v2277
            %2279 = vdwg.mxu0
            %v2280 = vadd.f32 %v1957, %v2261
            %v2281 = vadd.f32 %v1959, %v2263
            %v2282 = vadd.f32 %v1962, %v2266
            %v2283 = vadd.f32 %v1964, %v2268
            %v2284 = vadd.f32 %v1967, %v2271
            %v2285 = vadd.f32 %v1969, %v2273
            %v2286 = vadd.f32 %v1972, %v2276
            %v2287 = vadd.f32 %v1974, %v2278
            %p2288 = scmp.lt.s32.totalorder %s580, 0
            %s2289 = ssub.s32 0, %s580
            %s2290 = scalar_select %p2288, %s2289, %s580
            %s2291 = sdiv.u32.pop %s2290, 3
            %s2292 = srem.u32.pop %s2290, 3
            %s2293 = ssub.s32 0, %s2292
            %s2294 = scalar_select %p2288, %s2293, %s2292
            %s2295 = smul.u32 %s2294, 64
            %s2296 = scalar_lea.vmem [#allocation2], %s2295
            %v2297 = vld [vmem:[%s2296] sm:$0xff]
            %v2298 = vld [vmem:[%s2296 + $0x8] sm:$0xff]
            %v2299 = vld [vmem:[%s2296 + $0x10] sm:$0xff]
            %v2300 = vld [vmem:[%s2296 + $0x18] sm:$0xff]
            %v2301 = vld [vmem:[%s2296 + $0x20] sm:$0xff]
            %v2302 = vld [vmem:[%s2296 + $0x28] sm:$0xff]
            %v2303 = vld [vmem:[%s2296 + $0x30] sm:$0xff]
            %v2304 = vld [vmem:[%s2296 + $0x38] sm:$0xff]
            %v2305 = vadd.f32 %v2297, %v2280
            %v2306 = vadd.f32 %v2298, %v2281
            %v2307 = vadd.f32 %v2299, %v2282
            %v2308 = vadd.f32 %v2300, %v2283
            %v2309 = vadd.f32 %v2301, %v2284
            %v2310 = vadd.f32 %v2302, %v2285
            %v2311 = vadd.f32 %v2303, %v2286
            %v2312 = vadd.f32 %v2304, %v2287
            %2313 = vst [vmem:[%s2296] sm:$0xff] %v2305
            %2314 = vst [vmem:[%s2296 + $0x8] sm:$0xff] %v2306
            %2315 = vst [vmem:[%s2296 + $0x10] sm:$0xff] %v2307
            %2316 = vst [vmem:[%s2296 + $0x18] sm:$0xff] %v2308
            %2317 = vst [vmem:[%s2296 + $0x20] sm:$0xff] %v2309
            %2318 = vst [vmem:[%s2296 + $0x28] sm:$0xff] %v2310
            %2319 = vst [vmem:[%s2296 + $0x30] sm:$0xff] %v2311
            %2320 = vst [vmem:[%s2296 + $0x38] sm:$0xff] %v2312
          $region100: #{tpu_custom_call.1} parent=95 // pred_fallthru
            _
          %p2321 = scmp.ge.s32.totalorder %s35, 0
          // Predicated region
          $region101: #{tpu_custom_call.1} parent=95 // pred_check
            %p2322 = pneg %p2321
          $region102: #{tpu_custom_call.1} parent=95 // pred_check_branch
            %2324 = sbr.rel (%p2322) target = $region104
          $region103: #{tpu_custom_call.1} parent=95 // pred_region
            %s2325 = scalar_lea.vmem [#allocation9], 576
            %v2326 = vld [vmem:[%s2325] sm:$0xf]
            %v2327 = vld [vmem:[%s2325 + $0x4] sm:$0xf]
            %v2328 = vld [vmem:[%s2325 + $0x8] sm:$0xf]
            %v2329 = vld [vmem:[%s2325 + $0xc] sm:$0xf]
            %v2330 = vld [vmem:[%s2325 + $0x10] sm:$0xf]
            %v2331 = vld [vmem:[%s2325 + $0x14] sm:$0xf]
            %v2332 = vld [vmem:[%s2325 + $0x18] sm:$0xf]
            %v2333 = vld [vmem:[%s2325 + $0x1c] sm:$0xf]
            %v2334 = vld [vmem:[%s2325 + $0x20] sm:$0xf]
            %v2335 = vld [vmem:[%s2325 + $0x24] sm:$0xf]
            %v2336 = vld [vmem:[%s2325 + $0x28] sm:$0xf]
            %v2337 = vld [vmem:[%s2325 + $0x2c] sm:$0xf]
            %v2338 = vld [vmem:[%s2325 + $0x30] sm:$0xf]
            %v2339 = vld [vmem:[%s2325 + $0x34] sm:$0xf]
            %v2340 = vld [vmem:[%s2325 + $0x38] sm:$0xf]
            %v2341 = vld [vmem:[%s2325 + $0x3c] sm:$0xf]
            %v2342 = vld [vmem:[%s2325 + $0x40] sm:$0xf]
            %v2343 = vld [vmem:[%s2325 + $0x44] sm:$0xf]
            %v2344 = vld [vmem:[%s2325 + $0x48] sm:$0xf]
            %v2345 = vld [vmem:[%s2325 + $0x4c] sm:$0xf]
            %v2346 = vld [vmem:[%s2325 + $0x50] sm:$0xf]
            %v2347 = vld [vmem:[%s2325 + $0x54] sm:$0xf]
            %v2348 = vld [vmem:[%s2325 + $0x58] sm:$0xf]
            %v2349 = vld [vmem:[%s2325 + $0x5c] sm:$0xf]
            %v2350 = vld [vmem:[%s2325 + $0x60] sm:$0xf]
            %v2351 = vld [vmem:[%s2325 + $0x64] sm:$0xf]
            %v2352 = vld [vmem:[%s2325 + $0x68] sm:$0xf]
            %v2353 = vld [vmem:[%s2325 + $0x6c] sm:$0xf]
            %v2354 = vld [vmem:[%s2325 + $0x70] sm:$0xf]
            %v2355 = vld [vmem:[%s2325 + $0x74] sm:$0xf]
            %v2356 = vld [vmem:[%s2325 + $0x78] sm:$0xf]
            %v2357 = vld [vmem:[%s2325 + $0x7c] sm:$0xf]
            %v2358 = vld [vmem:[%s2325 + $0x80] sm:$0xf]
            %v2359 = vld [vmem:[%s2325 + $0x84] sm:$0xf]
            %v2360 = vld [vmem:[%s2325 + $0x88] sm:$0xf]
            %v2361 = vld [vmem:[%s2325 + $0x8c] sm:$0xf]
            %v2362 = vld [vmem:[%s2325 + $0x90] sm:$0xf]
            %v2363 = vld [vmem:[%s2325 + $0x94] sm:$0xf]
            %v2364 = vld [vmem:[%s2325 + $0x98] sm:$0xf]
            %v2365 = vld [vmem:[%s2325 + $0x9c] sm:$0xf]
            %v2366 = vld [vmem:[%s2325 + $0xa0] sm:$0xf]
            %v2367 = vld [vmem:[%s2325 + $0xa4] sm:$0xf]
            %v2368 = vld [vmem:[%s2325 + $0xa8] sm:$0xf]
            %v2369 = vld [vmem:[%s2325 + $0xac] sm:$0xf]
            %v2370 = vld [vmem:[%s2325 + $0xb0] sm:$0xf]
            %v2371 = vld [vmem:[%s2325 + $0xb4] sm:$0xf]
            %v2372 = vld [vmem:[%s2325 + $0xb8] sm:$0xf]
            %v2373 = vld [vmem:[%s2325 + $0xbc] sm:$0xf]
            %s2374 = scalar_lea.vmem [#allocation9], 768
            %v2375 = vld [vmem:[%s2374] sm:$0xf]
            %v2376 = vld [vmem:[%s2374 + $0x4] sm:$0xf]
            %v2377 = vld [vmem:[%s2374 + $0x8] sm:$0xf]
            %v2378 = vld [vmem:[%s2374 + $0xc] sm:$0xf]
            %v2379 = vld [vmem:[%s2374 + $0x10] sm:$0xf]
            %v2380 = vld [vmem:[%s2374 + $0x14] sm:$0xf]
            %v2381 = vld [vmem:[%s2374 + $0x18] sm:$0xf]
            %v2382 = vld [vmem:[%s2374 + $0x1c] sm:$0xf]
            %v2383 = vld [vmem:[%s2374 + $0x20] sm:$0xf]
            %v2384 = vld [vmem:[%s2374 + $0x24] sm:$0xf]
            %v2385 = vld [vmem:[%s2374 + $0x28] sm:$0xf]
            %v2386 = vld [vmem:[%s2374 + $0x2c] sm:$0xf]
            %v2387 = vld [vmem:[%s2374 + $0x30] sm:$0xf]
            %v2388 = vld [vmem:[%s2374 + $0x34] sm:$0xf]
            %v2389 = vld [vmem:[%s2374 + $0x38] sm:$0xf]
            %v2390 = vld [vmem:[%s2374 + $0x3c] sm:$0xf]
            %v2391 = vld [vmem:[%s2374 + $0x40] sm:$0xf]
            %v2392 = vld [vmem:[%s2374 + $0x44] sm:$0xf]
            %v2393 = vld [vmem:[%s2374 + $0x48] sm:$0xf]
            %v2394 = vld [vmem:[%s2374 + $0x4c] sm:$0xf]
            %v2395 = vld [vmem:[%s2374 + $0x50] sm:$0xf]
            %v2396 = vld [vmem:[%s2374 + $0x54] sm:$0xf]
            %v2397 = vld [vmem:[%s2374 + $0x58] sm:$0xf]
            %v2398 = vld [vmem:[%s2374 + $0x5c] sm:$0xf]
            %v2399 = vld [vmem:[%s2374 + $0x60] sm:$0xf]
            %v2400 = vld [vmem:[%s2374 + $0x64] sm:$0xf]
            %v2401 = vld [vmem:[%s2374 + $0x68] sm:$0xf]
            %v2402 = vld [vmem:[%s2374 + $0x6c] sm:$0xf]
            %v2403 = vld [vmem:[%s2374 + $0x70] sm:$0xf]
            %v2404 = vld [vmem:[%s2374 + $0x74] sm:$0xf]
            %v2405 = vld [vmem:[%s2374 + $0x78] sm:$0xf]
            %v2406 = vld [vmem:[%s2374 + $0x7c] sm:$0xf]
            %v2407 = vld [vmem:[%s2374 + $0x80] sm:$0xf]
            %v2408 = vld [vmem:[%s2374 + $0x84] sm:$0xf]
            %v2409 = vld [vmem:[%s2374 + $0x88] sm:$0xf]
            %v2410 = vld [vmem:[%s2374 + $0x8c] sm:$0xf]
            %v2411 = vld [vmem:[%s2374 + $0x90] sm:$0xf]
            %v2412 = vld [vmem:[%s2374 + $0x94] sm:$0xf]
            %v2413 = vld [vmem:[%s2374 + $0x98] sm:$0xf]
            %v2414 = vld [vmem:[%s2374 + $0x9c] sm:$0xf]
            %v2415 = vld [vmem:[%s2374 + $0xa0] sm:$0xf]
            %v2416 = vld [vmem:[%s2374 + $0xa4] sm:$0xf]
            %v2417 = vld [vmem:[%s2374 + $0xa8] sm:$0xf]
            %v2418 = vld [vmem:[%s2374 + $0xac] sm:$0xf]
            %v2419 = vld [vmem:[%s2374 + $0xb0] sm:$0xf]
            %v2420 = vld [vmem:[%s2374 + $0xb4] sm:$0xf]
            %v2421 = vld [vmem:[%s2374 + $0xb8] sm:$0xf]
            %v2422 = vld [vmem:[%s2374 + $0xbc] sm:$0xf]
            %v2423 = vpack.c.b16 %v1069, %v1067
            %v2424 = vpack.c.b16 %v1181, %v1179
            %v2425 = vpack.c.b16 %v1182, %v1180
            %v2426 = vpack.c.b16 %v1073, %v1071
            %v2427 = vpack.c.b16 %v1185, %v1183
            %v2428 = vpack.c.b16 %v1186, %v1184
            %v2429 = vpack.c.b16 %v1077, %v1075
            %v2430 = vpack.c.b16 %v1189, %v1187
            %v2431 = vpack.c.b16 %v1190, %v1188
            %v2432 = vpack.c.b16 %v1081, %v1079
            %v2433 = vpack.c.b16 %v1193, %v1191
            %v2434 = vpack.c.b16 %v1194, %v1192
            %v2495 = vunpack.c.l.b16 %v2375
            %v2496 = vunpack.c.l.b16 %v2376
            %v2497 = vunpack.c.l.b16 %v2377
            %v2498 = vunpack.c.l.b16 %v2378
            %v2499 = vunpack.c.l.b16 %v2379
            %v2500 = vunpack.c.l.b16 %v2380
            %v2501 = vunpack.c.l.b16 %v2381
            %v2502 = vunpack.c.l.b16 %v2382
            %v2503 = vunpack.c.l.b16 %v2383
            %v2504 = vunpack.c.l.b16 %v2384
            %v2505 = vunpack.c.l.b16 %v2385
            %v2506 = vunpack.c.l.b16 %v2386
            %v2507 = vunpack.c.l.b16 %v2387
            %v2508 = vunpack.c.l.b16 %v2388
            %v2509 = vunpack.c.l.b16 %v2389
            %v2510 = vunpack.c.l.b16 %v2390
            %v2511 = vunpack.c.l.b16 %v2391
            %v2512 = vunpack.c.l.b16 %v2392
            %v2513 = vunpack.c.l.b16 %v2393
            %v2514 = vunpack.c.l.b16 %v2394
            %v2515 = vunpack.c.l.b16 %v2395
            %v2516 = vunpack.c.l.b16 %v2396
            %v2517 = vunpack.c.l.b16 %v2397
            %v2518 = vunpack.c.l.b16 %v2398
            %v2519 = vunpack.c.l.b16 %v2399
            %v2520 = vunpack.c.l.b16 %v2400
            %v2521 = vunpack.c.l.b16 %v2401
            %v2522 = vunpack.c.l.b16 %v2402
            %v2523 = vunpack.c.l.b16 %v2403
            %v2524 = vunpack.c.l.b16 %v2404
            %v2525 = vunpack.c.l.b16 %v2405
            %v2526 = vunpack.c.l.b16 %v2406
            %v2527 = vunpack.c.l.b16 %v2407
            %v2528 = vunpack.c.l.b16 %v2408
            %v2529 = vunpack.c.l.b16 %v2409
            %v2530 = vunpack.c.l.b16 %v2410
            %v2531 = vunpack.c.l.b16 %v2411
            %v2532 = vunpack.c.l.b16 %v2412
            %v2533 = vunpack.c.l.b16 %v2413
            %v2534 = vunpack.c.l.b16 %v2414
            %v2535 = vunpack.c.l.b16 %v2415
            %v2536 = vunpack.c.l.b16 %v2416
            %v2537 = vunpack.c.l.b16 %v2417
            %v2538 = vunpack.c.l.b16 %v2418
            %v2539 = vunpack.c.l.b16 %v2419
            %v2540 = vunpack.c.l.b16 %v2420
            %v2541 = vunpack.c.l.b16 %v2421
            %v2542 = vunpack.c.l.b16 %v2422
            %v2543 = vpack.c.b16 %v2496, %v2495
            %v2544 = vpack.c.b16 %v2498, %v2497
            %v2545 = vpack.c.b16 %v2500, %v2499
            %v2546 = vpack.c.b16 %v2502, %v2501
            %v2547 = vpack.c.b16 %v2504, %v2503
            %v2548 = vpack.c.b16 %v2506, %v2505
            %v2549 = vpack.c.b16 %v2508, %v2507
            %v2550 = vpack.c.b16 %v2510, %v2509
            %v2551 = vpack.c.b16 %v2512, %v2511
            %v2552 = vpack.c.b16 %v2514, %v2513
            %v2553 = vpack.c.b16 %v2516, %v2515
            %v2554 = vpack.c.b16 %v2518, %v2517
            %v2555 = vpack.c.b16 %v2520, %v2519
            %v2556 = vpack.c.b16 %v2522, %v2521
            %v2557 = vpack.c.b16 %v2524, %v2523
            %v2558 = vpack.c.b16 %v2526, %v2525
            %v2559 = vpack.c.b16 %v2528, %v2527
            %v2560 = vpack.c.b16 %v2530, %v2529
            %v2561 = vpack.c.b16 %v2532, %v2531
            %v2562 = vpack.c.b16 %v2534, %v2533
            %v2563 = vpack.c.b16 %v2536, %v2535
            %v2564 = vpack.c.b16 %v2538, %v2537
            %v2565 = vpack.c.b16 %v2540, %v2539
            %v2566 = vpack.c.b16 %v2542, %v2541
            %2591 = vmatpush.bf16.msra.mxu0 %v2550
            %2592 = vmatpush.bf16.msra.mxu0 %v2549
            %2593 = vmatpush.bf16.msra.mxu0 %v2548
            %2594 = vmatpush.bf16.msra.mxu0 %v2547
            %2595 = vmatpush.bf16.msra.mxu0 %v2546
            %2596 = vmatpush.bf16.msra.mxu0 %v2545
            %2597 = vmatpush.bf16.msra.mxu0 %v2544
            %2598 = vmatpush.bf16.msra.mxu0 %v2543
            %2599 = vmatmul.bf16.gmra.mxu0 %v2423
            %v2600 = vpop.f32.mrf.mxu0
            %v2601 = vadd.f32 0.0, %v2600
            %v2602 = vpop.f32.mrf.mxu0
            %v2603 = vadd.f32 0.0, %v2602
            %2604 = vmatmul.bf16.gmra.mxu0 %v2426
            %v2605 = vpop.f32.mrf.mxu0
            %v2606 = vadd.f32 0.0, %v2605
            %v2607 = vpop.f32.mrf.mxu0
            %v2608 = vadd.f32 0.0, %v2607
            %2609 = vmatmul.bf16.gmra.mxu0 %v2429
            %v2610 = vpop.f32.mrf.mxu0
            %v2611 = vadd.f32 0.0, %v2610
            %v2612 = vpop.f32.mrf.mxu0
            %v2613 = vadd.f32 0.0, %v2612
            %2614 = vmatmul.bf16.gmra.mxu0 %v2432
            %v2615 = vpop.f32.mrf.mxu0
            %v2616 = vadd.f32 0.0, %v2615
            %v2617 = vpop.f32.mrf.mxu0
            %v2618 = vadd.f32 0.0, %v2617
            %2619 = vdwg.mxu0
            %2620 = vmatpush.bf16.msra.mxu0 %v2558
            %2621 = vmatpush.bf16.msra.mxu0 %v2557
            %2622 = vmatpush.bf16.msra.mxu0 %v2556
            %2623 = vmatpush.bf16.msra.mxu0 %v2555
            %2624 = vmatpush.bf16.msra.mxu0 %v2554
            %2625 = vmatpush.bf16.msra.mxu0 %v2553
            %2626 = vmatpush.bf16.msra.mxu0 %v2552
            %2627 = vmatpush.bf16.msra.mxu0 %v2551
            %2628 = vmatmul.bf16.gmra.mxu0 %v2424
            %v2629 = vpop.f32.mrf.mxu0
            %v2630 = vadd.f32 %v2601, %v2629
            %v2631 = vpop.f32.mrf.mxu0
            %v2632 = vadd.f32 %v2603, %v2631
            %2633 = vmatmul.bf16.gmra.mxu0 %v2427
            %v2634 = vpop.f32.mrf.mxu0
            %v2635 = vadd.f32 %v2606, %v2634
            %v2636 = vpop.f32.mrf.mxu0
            %v2637 = vadd.f32 %v2608, %v2636
            %2638 = vmatmul.bf16.gmra.mxu0 %v2430
            %v2639 = vpop.f32.mrf.mxu0
            %v2640 = vadd.f32 %v2611, %v2639
            %v2641 = vpop.f32.mrf.mxu0
            %v2642 = vadd.f32 %v2613, %v2641
            %2643 = vmatmul.bf16.gmra.mxu0 %v2433
            %v2644 = vpop.f32.mrf.mxu0
            %v2645 = vadd.f32 %v2616, %v2644
            %v2646 = vpop.f32.mrf.mxu0
            %v2647 = vadd.f32 %v2618, %v2646
            %2648 = vdwg.mxu0
            %2649 = vmatpush.bf16.msra.mxu0 %v2566
            %2650 = vmatpush.bf16.msra.mxu0 %v2565
            %2651 = vmatpush.bf16.msra.mxu0 %v2564
            %2652 = vmatpush.bf16.msra.mxu0 %v2563
            %2653 = vmatpush.bf16.msra.mxu0 %v2562
            %2654 = vmatpush.bf16.msra.mxu0 %v2561
            %2655 = vmatpush.bf16.msra.mxu0 %v2560
            %2656 = vmatpush.bf16.msra.mxu0 %v2559
            %2657 = vmatmul.bf16.gmra.mxu0 %v2425
            %v2658 = vpop.f32.mrf.mxu0
            %v2659 = vadd.f32 %v2630, %v2658
            %v2660 = vpop.f32.mrf.mxu0
            %v2661 = vadd.f32 %v2632, %v2660
            %2662 = vmatmul.bf16.gmra.mxu0 %v2428
            %v2663 = vpop.f32.mrf.mxu0
            %v2664 = vadd.f32 %v2635, %v2663
            %v2665 = vpop.f32.mrf.mxu0
            %v2666 = vadd.f32 %v2637, %v2665
            %2667 = vmatmul.bf16.gmra.mxu0 %v2431
            %v2668 = vpop.f32.mrf.mxu0
            %v2669 = vadd.f32 %v2640, %v2668
            %v2670 = vpop.f32.mrf.mxu0
            %v2671 = vadd.f32 %v2642, %v2670
            %2672 = vmatmul.bf16.gmra.mxu0 %v2434
            %v2673 = vpop.f32.mrf.mxu0
            %v2674 = vadd.f32 %v2645, %v2673
            %v2675 = vpop.f32.mrf.mxu0
            %v2676 = vadd.f32 %v2647, %v2675
            %2677 = vdwg.mxu0
            %v2678 = vpack.c.b16 %v901, %v899
            %v2679 = vpack.c.b16 %v1013, %v1011
            %v2680 = vpack.c.b16 %v1014, %v1012
            %v2681 = vpack.c.b16 %v905, %v903
            %v2682 = vpack.c.b16 %v1017, %v1015
            %v2683 = vpack.c.b16 %v1018, %v1016
            %v2684 = vpack.c.b16 %v909, %v907
            %v2685 = vpack.c.b16 %v1021, %v1019
            %v2686 = vpack.c.b16 %v1022, %v1020
            %v2687 = vpack.c.b16 %v913, %v911
            %v2688 = vpack.c.b16 %v1025, %v1023
            %v2689 = vpack.c.b16 %v1026, %v1024
            %v2750 = vunpack.c.l.b16 %v2326
            %v2751 = vunpack.c.l.b16 %v2327
            %v2752 = vunpack.c.l.b16 %v2328
            %v2753 = vunpack.c.l.b16 %v2329
            %v2754 = vunpack.c.l.b16 %v2330
            %v2755 = vunpack.c.l.b16 %v2331
            %v2756 = vunpack.c.l.b16 %v2332
            %v2757 = vunpack.c.l.b16 %v2333
            %v2758 = vunpack.c.l.b16 %v2334
            %v2759 = vunpack.c.l.b16 %v2335
            %v2760 = vunpack.c.l.b16 %v2336
            %v2761 = vunpack.c.l.b16 %v2337
            %v2762 = vunpack.c.l.b16 %v2338
            %v2763 = vunpack.c.l.b16 %v2339
            %v2764 = vunpack.c.l.b16 %v2340
            %v2765 = vunpack.c.l.b16 %v2341
            %v2766 = vunpack.c.l.b16 %v2342
            %v2767 = vunpack.c.l.b16 %v2343
            %v2768 = vunpack.c.l.b16 %v2344
            %v2769 = vunpack.c.l.b16 %v2345
            %v2770 = vunpack.c.l.b16 %v2346
            %v2771 = vunpack.c.l.b16 %v2347
            %v2772 = vunpack.c.l.b16 %v2348
            %v2773 = vunpack.c.l.b16 %v2349
            %v2774 = vunpack.c.l.b16 %v2350
            %v2775 = vunpack.c.l.b16 %v2351
            %v2776 = vunpack.c.l.b16 %v2352
            %v2777 = vunpack.c.l.b16 %v2353
            %v2778 = vunpack.c.l.b16 %v2354
            %v2779 = vunpack.c.l.b16 %v2355
            %v2780 = vunpack.c.l.b16 %v2356
            %v2781 = vunpack.c.l.b16 %v2357
            %v2782 = vunpack.c.l.b16 %v2358
            %v2783 = vunpack.c.l.b16 %v2359
            %v2784 = vunpack.c.l.b16 %v2360
            %v2785 = vunpack.c.l.b16 %v2361
            %v2786 = vunpack.c.l.b16 %v2362
            %v2787 = vunpack.c.l.b16 %v2363
            %v2788 = vunpack.c.l.b16 %v2364
            %v2789 = vunpack.c.l.b16 %v2365
            %v2790 = vunpack.c.l.b16 %v2366
            %v2791 = vunpack.c.l.b16 %v2367
            %v2792 = vunpack.c.l.b16 %v2368
            %v2793 = vunpack.c.l.b16 %v2369
            %v2794 = vunpack.c.l.b16 %v2370
            %v2795 = vunpack.c.l.b16 %v2371
            %v2796 = vunpack.c.l.b16 %v2372
            %v2797 = vunpack.c.l.b16 %v2373
            %v2798 = vpack.c.b16 %v2751, %v2750
            %v2799 = vpack.c.b16 %v2753, %v2752
            %v2800 = vpack.c.b16 %v2755, %v2754
            %v2801 = vpack.c.b16 %v2757, %v2756
            %v2802 = vpack.c.b16 %v2759, %v2758
            %v2803 = vpack.c.b16 %v2761, %v2760
            %v2804 = vpack.c.b16 %v2763, %v2762
            %v2805 = vpack.c.b16 %v2765, %v2764
            %v2806 = vpack.c.b16 %v2767, %v2766
            %v2807 = vpack.c.b16 %v2769, %v2768
            %v2808 = vpack.c.b16 %v2771, %v2770
            %v2809 = vpack.c.b16 %v2773, %v2772
            %v2810 = vpack.c.b16 %v2775, %v2774
            %v2811 = vpack.c.b16 %v2777, %v2776
            %v2812 = vpack.c.b16 %v2779, %v2778
            %v2813 = vpack.c.b16 %v2781, %v2780
            %v2814 = vpack.c.b16 %v2783, %v2782
            %v2815 = vpack.c.b16 %v2785, %v2784
            %v2816 = vpack.c.b16 %v2787, %v2786
            %v2817 = vpack.c.b16 %v2789, %v2788
            %v2818 = vpack.c.b16 %v2791, %v2790
            %v2819 = vpack.c.b16 %v2793, %v2792
            %v2820 = vpack.c.b16 %v2795, %v2794
            %v2821 = vpack.c.b16 %v2797, %v2796
            %2846 = vmatpush.bf16.msra.mxu0 %v2805
            %2847 = vmatpush.bf16.msra.mxu0 %v2804
            %2848 = vmatpush.bf16.msra.mxu0 %v2803
            %2849 = vmatpush.bf16.msra.mxu0 %v2802
            %2850 = vmatpush.bf16.msra.mxu0 %v2801
            %2851 = vmatpush.bf16.msra.mxu0 %v2800
            %2852 = vmatpush.bf16.msra.mxu0 %v2799
            %2853 = vmatpush.bf16.msra.mxu0 %v2798
            %2854 = vmatmul.bf16.gmra.mxu0 %v2678
            %v2855 = vpop.f32.mrf.mxu0
            %v2856 = vadd.f32 %v2659, %v2855
            %v2857 = vpop.f32.mrf.mxu0
            %v2858 = vadd.f32 %v2661, %v2857
            %2859 = vmatmul.bf16.gmra.mxu0 %v2681
            %v2860 = vpop.f32.mrf.mxu0
            %v2861 = vadd.f32 %v2664, %v2860
            %v2862 = vpop.f32.mrf.mxu0
            %v2863 = vadd.f32 %v2666, %v2862
            %2864 = vmatmul.bf16.gmra.mxu0 %v2684
            %v2865 = vpop.f32.mrf.mxu0
            %v2866 = vadd.f32 %v2669, %v2865
            %v2867 = vpop.f32.mrf.mxu0
            %v2868 = vadd.f32 %v2671, %v2867
            %2869 = vmatmul.bf16.gmra.mxu0 %v2687
            %v2870 = vpop.f32.mrf.mxu0
            %v2871 = vadd.f32 %v2674, %v2870
            %v2872 = vpop.f32.mrf.mxu0
            %v2873 = vadd.f32 %v2676, %v2872
            %2874 = vdwg.mxu0
            %2875 = vmatpush.bf16.msra.mxu0 %v2813
            %2876 = vmatpush.bf16.msra.mxu0 %v2812
            %2877 = vmatpush.bf16.msra.mxu0 %v2811
            %2878 = vmatpush.bf16.msra.mxu0 %v2810
            %2879 = vmatpush.bf16.msra.mxu0 %v2809
            %2880 = vmatpush.bf16.msra.mxu0 %v2808
            %2881 = vmatpush.bf16.msra.mxu0 %v2807
            %2882 = vmatpush.bf16.msra.mxu0 %v2806
            %2883 = vmatmul.bf16.gmra.mxu0 %v2679
            %v2884 = vpop.f32.mrf.mxu0
            %v2885 = vadd.f32 %v2856, %v2884
            %v2886 = vpop.f32.mrf.mxu0
            %v2887 = vadd.f32 %v2858, %v2886
            %2888 = vmatmul.bf16.gmra.mxu0 %v2682
            %v2889 = vpop.f32.mrf.mxu0
            %v2890 = vadd.f32 %v2861, %v2889
            %v2891 = vpop.f32.mrf.mxu0
            %v2892 = vadd.f32 %v2863, %v2891
            %2893 = vmatmul.bf16.gmra.mxu0 %v2685
            %v2894 = vpop.f32.mrf.mxu0
            %v2895 = vadd.f32 %v2866, %v2894
            %v2896 = vpop.f32.mrf.mxu0
            %v2897 = vadd.f32 %v2868, %v2896
            %2898 = vmatmul.bf16.gmra.mxu0 %v2688
            %v2899 = vpop.f32.mrf.mxu0
            %v2900 = vadd.f32 %v2871, %v2899
            %v2901 = vpop.f32.mrf.mxu0
            %v2902 = vadd.f32 %v2873, %v2901
            %2903 = vdwg.mxu0
            %2904 = vmatpush.bf16.msra.mxu0 %v2821
            %2905 = vmatpush.bf16.msra.mxu0 %v2820
            %2906 = vmatpush.bf16.msra.mxu0 %v2819
            %2907 = vmatpush.bf16.msra.mxu0 %v2818
            %2908 = vmatpush.bf16.msra.mxu0 %v2817
            %2909 = vmatpush.bf16.msra.mxu0 %v2816
            %2910 = vmatpush.bf16.msra.mxu0 %v2815
            %2911 = vmatpush.bf16.msra.mxu0 %v2814
            %2912 = vmatmul.bf16.gmra.mxu0 %v2680
            %v2913 = vpop.f32.mrf.mxu0
            %v2914 = vadd.f32 %v2885, %v2913
            %v2915 = vpop.f32.mrf.mxu0
            %v2916 = vadd.f32 %v2887, %v2915
            %2917 = vmatmul.bf16.gmra.mxu0 %v2683
            %v2918 = vpop.f32.mrf.mxu0
            %v2919 = vadd.f32 %v2890, %v2918
            %v2920 = vpop.f32.mrf.mxu0
            %v2921 = vadd.f32 %v2892, %v2920
            %2922 = vmatmul.bf16.gmra.mxu0 %v2686
            %v2923 = vpop.f32.mrf.mxu0
            %v2924 = vadd.f32 %v2895, %v2923
            %v2925 = vpop.f32.mrf.mxu0
            %v2926 = vadd.f32 %v2897, %v2925
            %2927 = vmatmul.bf16.gmra.mxu0 %v2689
            %v2928 = vpop.f32.mrf.mxu0
            %v2929 = vadd.f32 %v2900, %v2928
            %v2930 = vpop.f32.mrf.mxu0
            %v2931 = vadd.f32 %v2902, %v2930
            %2932 = vdwg.mxu0
            %s2933 = scalar_lea.vmem [#allocation9], 960
            %v2934 = vld [vmem:[%s2933] sm:$0xf]
            %v2935 = vld [vmem:[%s2933 + $0x4] sm:$0xf]
            %v2936 = vld [vmem:[%s2933 + $0x8] sm:$0xf]
            %v2937 = vld [vmem:[%s2933 + $0xc] sm:$0xf]
            %v2938 = vld [vmem:[%s2933 + $0x10] sm:$0xf]
            %v2939 = vld [vmem:[%s2933 + $0x14] sm:$0xf]
            %v2940 = vld [vmem:[%s2933 + $0x18] sm:$0xf]
            %v2941 = vld [vmem:[%s2933 + $0x1c] sm:$0xf]
            %v2942 = vld [vmem:[%s2933 + $0x20] sm:$0xf]
            %v2943 = vld [vmem:[%s2933 + $0x24] sm:$0xf]
            %v2944 = vld [vmem:[%s2933 + $0x28] sm:$0xf]
            %v2945 = vld [vmem:[%s2933 + $0x2c] sm:$0xf]
            %v2946 = vld [vmem:[%s2933 + $0x30] sm:$0xf]
            %v2947 = vld [vmem:[%s2933 + $0x34] sm:$0xf]
            %v2948 = vld [vmem:[%s2933 + $0x38] sm:$0xf]
            %v2949 = vld [vmem:[%s2933 + $0x3c] sm:$0xf]
            %v2950 = vld [vmem:[%s2933 + $0x40] sm:$0xf]
            %v2951 = vld [vmem:[%s2933 + $0x44] sm:$0xf]
            %v2952 = vld [vmem:[%s2933 + $0x48] sm:$0xf]
            %v2953 = vld [vmem:[%s2933 + $0x4c] sm:$0xf]
            %v2954 = vld [vmem:[%s2933 + $0x50] sm:$0xf]
            %v2955 = vld [vmem:[%s2933 + $0x54] sm:$0xf]
            %v2956 = vld [vmem:[%s2933 + $0x58] sm:$0xf]
            %v2957 = vld [vmem:[%s2933 + $0x5c] sm:$0xf]
            %v2958 = vld [vmem:[%s2933 + $0x60] sm:$0xf]
            %v2959 = vld [vmem:[%s2933 + $0x64] sm:$0xf]
            %v2960 = vld [vmem:[%s2933 + $0x68] sm:$0xf]
            %v2961 = vld [vmem:[%s2933 + $0x6c] sm:$0xf]
            %v2962 = vld [vmem:[%s2933 + $0x70] sm:$0xf]
            %v2963 = vld [vmem:[%s2933 + $0x74] sm:$0xf]
            %v2964 = vld [vmem:[%s2933 + $0x78] sm:$0xf]
            %v2965 = vld [vmem:[%s2933 + $0x7c] sm:$0xf]
            %v2966 = vld [vmem:[%s2933 + $0x80] sm:$0xf]
            %v2967 = vld [vmem:[%s2933 + $0x84] sm:$0xf]
            %v2968 = vld [vmem:[%s2933 + $0x88] sm:$0xf]
            %v2969 = vld [vmem:[%s2933 + $0x8c] sm:$0xf]
            %v2970 = vld [vmem:[%s2933 + $0x90] sm:$0xf]
            %v2971 = vld [vmem:[%s2933 + $0x94] sm:$0xf]
            %v2972 = vld [vmem:[%s2933 + $0x98] sm:$0xf]
            %v2973 = vld [vmem:[%s2933 + $0x9c] sm:$0xf]
            %v2974 = vld [vmem:[%s2933 + $0xa0] sm:$0xf]
            %v2975 = vld [vmem:[%s2933 + $0xa4] sm:$0xf]
            %v2976 = vld [vmem:[%s2933 + $0xa8] sm:$0xf]
            %v2977 = vld [vmem:[%s2933 + $0xac] sm:$0xf]
            %v2978 = vld [vmem:[%s2933 + $0xb0] sm:$0xf]
            %v2979 = vld [vmem:[%s2933 + $0xb4] sm:$0xf]
            %v2980 = vld [vmem:[%s2933 + $0xb8] sm:$0xf]
            %v2981 = vld [vmem:[%s2933 + $0xbc] sm:$0xf]
            %v2982 = vpack.c.b16 %v1238, %v1236
            %v2983 = vpack.c.b16 %v1350, %v1348
            %v2984 = vpack.c.b16 %v1351, %v1349
            %v2985 = vpack.c.b16 %v1242, %v1240
            %v2986 = vpack.c.b16 %v1354, %v1352
            %v2987 = vpack.c.b16 %v1355, %v1353
            %v2988 = vpack.c.b16 %v1246, %v1244
            %v2989 = vpack.c.b16 %v1358, %v1356
            %v2990 = vpack.c.b16 %v1359, %v1357
            %v2991 = vpack.c.b16 %v1250, %v1248
            %v2992 = vpack.c.b16 %v1362, %v1360
            %v2993 = vpack.c.b16 %v1363, %v1361
            %v3054 = vunpack.c.l.b16 %v2934
            %v3055 = vunpack.c.l.b16 %v2935
            %v3056 = vunpack.c.l.b16 %v2936
            %v3057 = vunpack.c.l.b16 %v2937
            %v3058 = vunpack.c.l.b16 %v2938
            %v3059 = vunpack.c.l.b16 %v2939
            %v3060 = vunpack.c.l.b16 %v2940
            %v3061 = vunpack.c.l.b16 %v2941
            %v3062 = vunpack.c.l.b16 %v2942
            %v3063 = vunpack.c.l.b16 %v2943
            %v3064 = vunpack.c.l.b16 %v2944
            %v3065 = vunpack.c.l.b16 %v2945
            %v3066 = vunpack.c.l.b16 %v2946
            %v3067 = vunpack.c.l.b16 %v2947
            %v3068 = vunpack.c.l.b16 %v2948
            %v3069 = vunpack.c.l.b16 %v2949
            %v3070 = vunpack.c.l.b16 %v2950
            %v3071 = vunpack.c.l.b16 %v2951
            %v3072 = vunpack.c.l.b16 %v2952
            %v3073 = vunpack.c.l.b16 %v2953
            %v3074 = vunpack.c.l.b16 %v2954
            %v3075 = vunpack.c.l.b16 %v2955
            %v3076 = vunpack.c.l.b16 %v2956
            %v3077 = vunpack.c.l.b16 %v2957
            %v3078 = vunpack.c.l.b16 %v2958
            %v3079 = vunpack.c.l.b16 %v2959
            %v3080 = vunpack.c.l.b16 %v2960
            %v3081 = vunpack.c.l.b16 %v2961
            %v3082 = vunpack.c.l.b16 %v2962
            %v3083 = vunpack.c.l.b16 %v2963
            %v3084 = vunpack.c.l.b16 %v2964
            %v3085 = vunpack.c.l.b16 %v2965
            %v3086 = vunpack.c.l.b16 %v2966
            %v3087 = vunpack.c.l.b16 %v2967
            %v3088 = vunpack.c.l.b16 %v2968
            %v3089 = vunpack.c.l.b16 %v2969
            %v3090 = vunpack.c.l.b16 %v2970
            %v3091 = vunpack.c.l.b16 %v2971
            %v3092 = vunpack.c.l.b16 %v2972
            %v3093 = vunpack.c.l.b16 %v2973
            %v3094 = vunpack.c.l.b16 %v2974
            %v3095 = vunpack.c.l.b16 %v2975
            %v3096 = vunpack.c.l.b16 %v2976
            %v3097 = vunpack.c.l.b16 %v2977
            %v3098 = vunpack.c.l.b16 %v2978
            %v3099 = vunpack.c.l.b16 %v2979
            %v3100 = vunpack.c.l.b16 %v2980
            %v3101 = vunpack.c.l.b16 %v2981
            %v3102 = vpack.c.b16 %v3055, %v3054
            %v3103 = vpack.c.b16 %v3057, %v3056
            %v3104 = vpack.c.b16 %v3059, %v3058
            %v3105 = vpack.c.b16 %v3061, %v3060
            %v3106 = vpack.c.b16 %v3063, %v3062
            %v3107 = vpack.c.b16 %v3065, %v3064
            %v3108 = vpack.c.b16 %v3067, %v3066
            %v3109 = vpack.c.b16 %v3069, %v3068
            %v3110 = vpack.c.b16 %v3071, %v3070
            %v3111 = vpack.c.b16 %v3073, %v3072
            %v3112 = vpack.c.b16 %v3075, %v3074
            %v3113 = vpack.c.b16 %v3077, %v3076
            %v3114 = vpack.c.b16 %v3079, %v3078
            %v3115 = vpack.c.b16 %v3081, %v3080
            %v3116 = vpack.c.b16 %v3083, %v3082
            %v3117 = vpack.c.b16 %v3085, %v3084
            %v3118 = vpack.c.b16 %v3087, %v3086
            %v3119 = vpack.c.b16 %v3089, %v3088
            %v3120 = vpack.c.b16 %v3091, %v3090
            %v3121 = vpack.c.b16 %v3093, %v3092
            %v3122 = vpack.c.b16 %v3095, %v3094
            %v3123 = vpack.c.b16 %v3097, %v3096
            %v3124 = vpack.c.b16 %v3099, %v3098
            %v3125 = vpack.c.b16 %v3101, %v3100
            %3150 = vmatpush.bf16.msra.mxu0 %v3109
            %3151 = vmatpush.bf16.msra.mxu0 %v3108
            %3152 = vmatpush.bf16.msra.mxu0 %v3107
            %3153 = vmatpush.bf16.msra.mxu0 %v3106
            %3154 = vmatpush.bf16.msra.mxu0 %v3105
            %3155 = vmatpush.bf16.msra.mxu0 %v3104
            %3156 = vmatpush.bf16.msra.mxu0 %v3103
            %3157 = vmatpush.bf16.msra.mxu0 %v3102
            %3158 = vmatmul.bf16.gmra.mxu0 %v2982
            %v3159 = vpop.f32.mrf.mxu0
            %v3160 = vadd.f32 0.0, %v3159
            %v3161 = vpop.f32.mrf.mxu0
            %v3162 = vadd.f32 0.0, %v3161
            %3163 = vmatmul.bf16.gmra.mxu0 %v2985
            %v3164 = vpop.f32.mrf.mxu0
            %v3165 = vadd.f32 0.0, %v3164
            %v3166 = vpop.f32.mrf.mxu0
            %v3167 = vadd.f32 0.0, %v3166
            %3168 = vmatmul.bf16.gmra.mxu0 %v2988
            %v3169 = vpop.f32.mrf.mxu0
            %v3170 = vadd.f32 0.0, %v3169
            %v3171 = vpop.f32.mrf.mxu0
            %v3172 = vadd.f32 0.0, %v3171
            %3173 = vmatmul.bf16.gmra.mxu0 %v2991
            %v3174 = vpop.f32.mrf.mxu0
            %v3175 = vadd.f32 0.0, %v3174
            %v3176 = vpop.f32.mrf.mxu0
            %v3177 = vadd.f32 0.0, %v3176
            %3178 = vdwg.mxu0
            %3179 = vmatpush.bf16.msra.mxu0 %v3117
            %3180 = vmatpush.bf16.msra.mxu0 %v3116
            %3181 = vmatpush.bf16.msra.mxu0 %v3115
            %3182 = vmatpush.bf16.msra.mxu0 %v3114
            %3183 = vmatpush.bf16.msra.mxu0 %v3113
            %3184 = vmatpush.bf16.msra.mxu0 %v3112
            %3185 = vmatpush.bf16.msra.mxu0 %v3111
            %3186 = vmatpush.bf16.msra.mxu0 %v3110
            %3187 = vmatmul.bf16.gmra.mxu0 %v2983
            %v3188 = vpop.f32.mrf.mxu0
            %v3189 = vadd.f32 %v3160, %v3188
            %v3190 = vpop.f32.mrf.mxu0
            %v3191 = vadd.f32 %v3162, %v3190
            %3192 = vmatmul.bf16.gmra.mxu0 %v2986
            %v3193 = vpop.f32.mrf.mxu0
            %v3194 = vadd.f32 %v3165, %v3193
            %v3195 = vpop.f32.mrf.mxu0
            %v3196 = vadd.f32 %v3167, %v3195
            %3197 = vmatmul.bf16.gmra.mxu0 %v2989
            %v3198 = vpop.f32.mrf.mxu0
            %v3199 = vadd.f32 %v3170, %v3198
            %v3200 = vpop.f32.mrf.mxu0
            %v3201 = vadd.f32 %v3172, %v3200
            %3202 = vmatmul.bf16.gmra.mxu0 %v2992
            %v3203 = vpop.f32.mrf.mxu0
            %v3204 = vadd.f32 %v3175, %v3203
            %v3205 = vpop.f32.mrf.mxu0
            %v3206 = vadd.f32 %v3177, %v3205
            %3207 = vdwg.mxu0
            %3208 = vmatpush.bf16.msra.mxu0 %v3125
            %3209 = vmatpush.bf16.msra.mxu0 %v3124
            %3210 = vmatpush.bf16.msra.mxu0 %v3123
            %3211 = vmatpush.bf16.msra.mxu0 %v3122
            %3212 = vmatpush.bf16.msra.mxu0 %v3121
            %3213 = vmatpush.bf16.msra.mxu0 %v3120
            %3214 = vmatpush.bf16.msra.mxu0 %v3119
            %3215 = vmatpush.bf16.msra.mxu0 %v3118
            %3216 = vmatmul.bf16.gmra.mxu0 %v2984
            %v3217 = vpop.f32.mrf.mxu0
            %v3218 = vadd.f32 %v3189, %v3217
            %v3219 = vpop.f32.mrf.mxu0
            %v3220 = vadd.f32 %v3191, %v3219
            %3221 = vmatmul.bf16.gmra.mxu0 %v2987
            %v3222 = vpop.f32.mrf.mxu0
            %v3223 = vadd.f32 %v3194, %v3222
            %v3224 = vpop.f32.mrf.mxu0
            %v3225 = vadd.f32 %v3196, %v3224
            %3226 = vmatmul.bf16.gmra.mxu0 %v2990
            %v3227 = vpop.f32.mrf.mxu0
            %v3228 = vadd.f32 %v3199, %v3227
            %v3229 = vpop.f32.mrf.mxu0
            %v3230 = vadd.f32 %v3201, %v3229
            %3231 = vmatmul.bf16.gmra.mxu0 %v2993
            %v3232 = vpop.f32.mrf.mxu0
            %v3233 = vadd.f32 %v3204, %v3232
            %v3234 = vpop.f32.mrf.mxu0
            %v3235 = vadd.f32 %v3206, %v3234
            %3236 = vdwg.mxu0
            %v3237 = vadd.f32 %v2914, %v3218
            %v3238 = vadd.f32 %v2916, %v3220
            %v3239 = vadd.f32 %v2919, %v3223
            %v3240 = vadd.f32 %v2921, %v3225
            %v3241 = vadd.f32 %v2924, %v3228
            %v3242 = vadd.f32 %v2926, %v3230
            %v3243 = vadd.f32 %v2929, %v3233
            %v3244 = vadd.f32 %v2931, %v3235
            %p3245 = scmp.lt.s32.totalorder %s35, 0
            %s3246 = ssub.s32 0, %s35
            %s3247 = scalar_select %p3245, %s3246, %s35
            %s3248 = sdiv.u32.pop %s3247, 3
            %s3249 = srem.u32.pop %s3247, 3
            %s3250 = ssub.s32 0, %s3249
            %s3251 = scalar_select %p3245, %s3250, %s3249
            %s3252 = smul.u32 %s3251, 64
            %s3253 = scalar_lea.vmem [#allocation2], %s3252
            %v3254 = vld [vmem:[%s3253] sm:$0xff]
            %v3255 = vld [vmem:[%s3253 + $0x8] sm:$0xff]
            %v3256 = vld [vmem:[%s3253 + $0x10] sm:$0xff]
            %v3257 = vld [vmem:[%s3253 + $0x18] sm:$0xff]
            %v3258 = vld [vmem:[%s3253 + $0x20] sm:$0xff]
            %v3259 = vld [vmem:[%s3253 + $0x28] sm:$0xff]
            %v3260 = vld [vmem:[%s3253 + $0x30] sm:$0xff]
            %v3261 = vld [vmem:[%s3253 + $0x38] sm:$0xff]
            %v3262 = vadd.f32 %v3254, %v3237
            %v3263 = vadd.f32 %v3255, %v3238
            %v3264 = vadd.f32 %v3256, %v3239
            %v3265 = vadd.f32 %v3257, %v3240
            %v3266 = vadd.f32 %v3258, %v3241
            %v3267 = vadd.f32 %v3259, %v3242
            %v3268 = vadd.f32 %v3260, %v3243
            %v3269 = vadd.f32 %v3261, %v3244
            %3270 = vst [vmem:[%s3253] sm:$0xff] %v3262
            %3271 = vst [vmem:[%s3253 + $0x8] sm:$0xff] %v3263
            %3272 = vst [vmem:[%s3253 + $0x10] sm:$0xff] %v3264
            %3273 = vst [vmem:[%s3253 + $0x18] sm:$0xff] %v3265
            %3274 = vst [vmem:[%s3253 + $0x20] sm:$0xff] %v3266
            %3275 = vst [vmem:[%s3253 + $0x28] sm:$0xff] %v3267
            %3276 = vst [vmem:[%s3253 + $0x30] sm:$0xff] %v3268
            %3277 = vst [vmem:[%s3253 + $0x38] sm:$0xff] %v3269
          $region104: #{tpu_custom_call.1} parent=95 // pred_fallthru
            _
          %s3278 = sadd.s32 %s35, 4294967295
          %p3279 = scmp.ge.s32.totalorder %s3278, 0
          %p3280 = scmp.lt.s32.totalorder %s3278, 4
          %p3281 = pnand %p3279, %p3280
          %p3282 = pneg %p3281
          // Predicated region
          $region105: #{tpu_custom_call.1} parent=95 // pred_check
            _
          $region106: #{tpu_custom_call.1} parent=95 // pred_check_branch
            %3284 = sbr.rel (%p3281) target = $region108
          $region107: #{tpu_custom_call.1} parent=95 // pred_region
            %s3285 = scalar_lea.vmem [#allocation9], 1152
            %v3286 = vld [vmem:[%s3285] sm:$0xf]
            %v3287 = vld [vmem:[%s3285 + $0x4] sm:$0xf]
            %v3288 = vld [vmem:[%s3285 + $0x8] sm:$0xf]
            %v3289 = vld [vmem:[%s3285 + $0xc] sm:$0xf]
            %v3290 = vld [vmem:[%s3285 + $0x10] sm:$0xf]
            %v3291 = vld [vmem:[%s3285 + $0x14] sm:$0xf]
            %v3292 = vld [vmem:[%s3285 + $0x18] sm:$0xf]
            %v3293 = vld [vmem:[%s3285 + $0x1c] sm:$0xf]
            %v3294 = vld [vmem:[%s3285 + $0x20] sm:$0xf]
            %v3295 = vld [vmem:[%s3285 + $0x24] sm:$0xf]
            %v3296 = vld [vmem:[%s3285 + $0x28] sm:$0xf]
            %v3297 = vld [vmem:[%s3285 + $0x2c] sm:$0xf]
            %v3298 = vld [vmem:[%s3285 + $0x30] sm:$0xf]
            %v3299 = vld [vmem:[%s3285 + $0x34] sm:$0xf]
            %v3300 = vld [vmem:[%s3285 + $0x38] sm:$0xf]
            %v3301 = vld [vmem:[%s3285 + $0x3c] sm:$0xf]
            %v3302 = vld [vmem:[%s3285 + $0x40] sm:$0xf]
            %v3303 = vld [vmem:[%s3285 + $0x44] sm:$0xf]
            %v3304 = vld [vmem:[%s3285 + $0x48] sm:$0xf]
            %v3305 = vld [vmem:[%s3285 + $0x4c] sm:$0xf]
            %v3306 = vld [vmem:[%s3285 + $0x50] sm:$0xf]
            %v3307 = vld [vmem:[%s3285 + $0x54] sm:$0xf]
            %v3308 = vld [vmem:[%s3285 + $0x58] sm:$0xf]
            %v3309 = vld [vmem:[%s3285 + $0x5c] sm:$0xf]
            %v3310 = vld [vmem:[%s3285 + $0x60] sm:$0xf]
            %v3311 = vld [vmem:[%s3285 + $0x64] sm:$0xf]
            %v3312 = vld [vmem:[%s3285 + $0x68] sm:$0xf]
            %v3313 = vld [vmem:[%s3285 + $0x6c] sm:$0xf]
            %v3314 = vld [vmem:[%s3285 + $0x70] sm:$0xf]
            %v3315 = vld [vmem:[%s3285 + $0x74] sm:$0xf]
            %v3316 = vld [vmem:[%s3285 + $0x78] sm:$0xf]
            %v3317 = vld [vmem:[%s3285 + $0x7c] sm:$0xf]
            %v3318 = vld [vmem:[%s3285 + $0x80] sm:$0xf]
            %v3319 = vld [vmem:[%s3285 + $0x84] sm:$0xf]
            %v3320 = vld [vmem:[%s3285 + $0x88] sm:$0xf]
            %v3321 = vld [vmem:[%s3285 + $0x8c] sm:$0xf]
            %v3322 = vld [vmem:[%s3285 + $0x90] sm:$0xf]
            %v3323 = vld [vmem:[%s3285 + $0x94] sm:$0xf]
            %v3324 = vld [vmem:[%s3285 + $0x98] sm:$0xf]
            %v3325 = vld [vmem:[%s3285 + $0x9c] sm:$0xf]
            %v3326 = vld [vmem:[%s3285 + $0xa0] sm:$0xf]
            %v3327 = vld [vmem:[%s3285 + $0xa4] sm:$0xf]
            %v3328 = vld [vmem:[%s3285 + $0xa8] sm:$0xf]
            %v3329 = vld [vmem:[%s3285 + $0xac] sm:$0xf]
            %v3330 = vld [vmem:[%s3285 + $0xb0] sm:$0xf]
            %v3331 = vld [vmem:[%s3285 + $0xb4] sm:$0xf]
            %v3332 = vld [vmem:[%s3285 + $0xb8] sm:$0xf]
            %v3333 = vld [vmem:[%s3285 + $0xbc] sm:$0xf]
            %s3334 = scalar_lea.vmem [#allocation9], 1344
            %v3335 = vld [vmem:[%s3334] sm:$0xf]
            %v3336 = vld [vmem:[%s3334 + $0x4] sm:$0xf]
            %v3337 = vld [vmem:[%s3334 + $0x8] sm:$0xf]
            %v3338 = vld [vmem:[%s3334 + $0xc] sm:$0xf]
            %v3339 = vld [vmem:[%s3334 + $0x10] sm:$0xf]
            %v3340 = vld [vmem:[%s3334 + $0x14] sm:$0xf]
            %v3341 = vld [vmem:[%s3334 + $0x18] sm:$0xf]
            %v3342 = vld [vmem:[%s3334 + $0x1c] sm:$0xf]
            %v3343 = vld [vmem:[%s3334 + $0x20] sm:$0xf]
            %v3344 = vld [vmem:[%s3334 + $0x24] sm:$0xf]
            %v3345 = vld [vmem:[%s3334 + $0x28] sm:$0xf]
            %v3346 = vld [vmem:[%s3334 + $0x2c] sm:$0xf]
            %v3347 = vld [vmem:[%s3334 + $0x30] sm:$0xf]
            %v3348 = vld [vmem:[%s3334 + $0x34] sm:$0xf]
            %v3349 = vld [vmem:[%s3334 + $0x38] sm:$0xf]
            %v3350 = vld [vmem:[%s3334 + $0x3c] sm:$0xf]
            %v3351 = vld [vmem:[%s3334 + $0x40] sm:$0xf]
            %v3352 = vld [vmem:[%s3334 + $0x44] sm:$0xf]
            %v3353 = vld [vmem:[%s3334 + $0x48] sm:$0xf]
            %v3354 = vld [vmem:[%s3334 + $0x4c] sm:$0xf]
            %v3355 = vld [vmem:[%s3334 + $0x50] sm:$0xf]
            %v3356 = vld [vmem:[%s3334 + $0x54] sm:$0xf]
            %v3357 = vld [vmem:[%s3334 + $0x58] sm:$0xf]
            %v3358 = vld [vmem:[%s3334 + $0x5c] sm:$0xf]
            %v3359 = vld [vmem:[%s3334 + $0x60] sm:$0xf]
            %v3360 = vld [vmem:[%s3334 + $0x64] sm:$0xf]
            %v3361 = vld [vmem:[%s3334 + $0x68] sm:$0xf]
            %v3362 = vld [vmem:[%s3334 + $0x6c] sm:$0xf]
            %v3363 = vld [vmem:[%s3334 + $0x70] sm:$0xf]
            %v3364 = vld [vmem:[%s3334 + $0x74] sm:$0xf]
            %v3365 = vld [vmem:[%s3334 + $0x78] sm:$0xf]
            %v3366 = vld [vmem:[%s3334 + $0x7c] sm:$0xf]
            %v3367 = vld [vmem:[%s3334 + $0x80] sm:$0xf]
            %v3368 = vld [vmem:[%s3334 + $0x84] sm:$0xf]
            %v3369 = vld [vmem:[%s3334 + $0x88] sm:$0xf]
            %v3370 = vld [vmem:[%s3334 + $0x8c] sm:$0xf]
            %v3371 = vld [vmem:[%s3334 + $0x90] sm:$0xf]
            %v3372 = vld [vmem:[%s3334 + $0x94] sm:$0xf]
            %v3373 = vld [vmem:[%s3334 + $0x98] sm:$0xf]
            %v3374 = vld [vmem:[%s3334 + $0x9c] sm:$0xf]
            %v3375 = vld [vmem:[%s3334 + $0xa0] sm:$0xf]
            %v3376 = vld [vmem:[%s3334 + $0xa4] sm:$0xf]
            %v3377 = vld [vmem:[%s3334 + $0xa8] sm:$0xf]
            %v3378 = vld [vmem:[%s3334 + $0xac] sm:$0xf]
            %v3379 = vld [vmem:[%s3334 + $0xb0] sm:$0xf]
            %v3380 = vld [vmem:[%s3334 + $0xb4] sm:$0xf]
            %v3381 = vld [vmem:[%s3334 + $0xb8] sm:$0xf]
            %v3382 = vld [vmem:[%s3334 + $0xbc] sm:$0xf]
            %v3383 = vpack.c.b16 %v1069, %v1067
            %v3384 = vpack.c.b16 %v1181, %v1179
            %v3385 = vpack.c.b16 %v1182, %v1180
            %v3386 = vpack.c.b16 %v1073, %v1071
            %v3387 = vpack.c.b16 %v1185, %v1183
            %v3388 = vpack.c.b16 %v1186, %v1184
            %v3389 = vpack.c.b16 %v1077, %v1075
            %v3390 = vpack.c.b16 %v1189, %v1187
            %v3391 = vpack.c.b16 %v1190, %v1188
            %v3392 = vpack.c.b16 %v1081, %v1079
            %v3393 = vpack.c.b16 %v1193, %v1191
            %v3394 = vpack.c.b16 %v1194, %v1192
            %v3455 = vunpack.c.l.b16 %v3335
            %v3456 = vunpack.c.l.b16 %v3336
            %v3457 = vunpack.c.l.b16 %v3337
            %v3458 = vunpack.c.l.b16 %v3338
            %v3459 = vunpack.c.l.b16 %v3339
            %v3460 = vunpack.c.l.b16 %v3340
            %v3461 = vunpack.c.l.b16 %v3341
            %v3462 = vunpack.c.l.b16 %v3342
            %v3463 = vunpack.c.l.b16 %v3343
            %v3464 = vunpack.c.l.b16 %v3344
            %v3465 = vunpack.c.l.b16 %v3345
            %v3466 = vunpack.c.l.b16 %v3346
            %v3467 = vunpack.c.l.b16 %v3347
            %v3468 = vunpack.c.l.b16 %v3348
            %v3469 = vunpack.c.l.b16 %v3349
            %v3470 = vunpack.c.l.b16 %v3350
            %v3471 = vunpack.c.l.b16 %v3351
            %v3472 = vunpack.c.l.b16 %v3352
            %v3473 = vunpack.c.l.b16 %v3353
            %v3474 = vunpack.c.l.b16 %v3354
            %v3475 = vunpack.c.l.b16 %v3355
            %v3476 = vunpack.c.l.b16 %v3356
            %v3477 = vunpack.c.l.b16 %v3357
            %v3478 = vunpack.c.l.b16 %v3358
            %v3479 = vunpack.c.l.b16 %v3359
            %v3480 = vunpack.c.l.b16 %v3360
            %v3481 = vunpack.c.l.b16 %v3361
            %v3482 = vunpack.c.l.b16 %v3362
            %v3483 = vunpack.c.l.b16 %v3363
            %v3484 = vunpack.c.l.b16 %v3364
            %v3485 = vunpack.c.l.b16 %v3365
            %v3486 = vunpack.c.l.b16 %v3366
            %v3487 = vunpack.c.l.b16 %v3367
            %v3488 = vunpack.c.l.b16 %v3368
            %v3489 = vunpack.c.l.b16 %v3369
            %v3490 = vunpack.c.l.b16 %v3370
            %v3491 = vunpack.c.l.b16 %v3371
            %v3492 = vunpack.c.l.b16 %v3372
            %v3493 = vunpack.c.l.b16 %v3373
            %v3494 = vunpack.c.l.b16 %v3374
            %v3495 = vunpack.c.l.b16 %v3375
            %v3496 = vunpack.c.l.b16 %v3376
            %v3497 = vunpack.c.l.b16 %v3377
            %v3498 = vunpack.c.l.b16 %v3378
            %v3499 = vunpack.c.l.b16 %v3379
            %v3500 = vunpack.c.l.b16 %v3380
            %v3501 = vunpack.c.l.b16 %v3381
            %v3502 = vunpack.c.l.b16 %v3382
            %v3503 = vpack.c.b16 %v3456, %v3455
            %v3504 = vpack.c.b16 %v3458, %v3457
            %v3505 = vpack.c.b16 %v3460, %v3459
            %v3506 = vpack.c.b16 %v3462, %v3461
            %v3507 = vpack.c.b16 %v3464, %v3463
            %v3508 = vpack.c.b16 %v3466, %v3465
            %v3509 = vpack.c.b16 %v3468, %v3467
            %v3510 = vpack.c.b16 %v3470, %v3469
            %v3511 = vpack.c.b16 %v3472, %v3471
            %v3512 = vpack.c.b16 %v3474, %v3473
            %v3513 = vpack.c.b16 %v3476, %v3475
            %v3514 = vpack.c.b16 %v3478, %v3477
            %v3515 = vpack.c.b16 %v3480, %v3479
            %v3516 = vpack.c.b16 %v3482, %v3481
            %v3517 = vpack.c.b16 %v3484, %v3483
            %v3518 = vpack.c.b16 %v3486, %v3485
            %v3519 = vpack.c.b16 %v3488, %v3487
            %v3520 = vpack.c.b16 %v3490, %v3489
            %v3521 = vpack.c.b16 %v3492, %v3491
            %v3522 = vpack.c.b16 %v3494, %v3493
            %v3523 = vpack.c.b16 %v3496, %v3495
            %v3524 = vpack.c.b16 %v3498, %v3497
            %v3525 = vpack.c.b16 %v3500, %v3499
            %v3526 = vpack.c.b16 %v3502, %v3501
            %3551 = vmatpush.bf16.msra.mxu0 %v3510
            %3552 = vmatpush.bf16.msra.mxu0 %v3509
            %3553 = vmatpush.bf16.msra.mxu0 %v3508
            %3554 = vmatpush.bf16.msra.mxu0 %v3507
            %3555 = vmatpush.bf16.msra.mxu0 %v3506
            %3556 = vmatpush.bf16.msra.mxu0 %v3505
            %3557 = vmatpush.bf16.msra.mxu0 %v3504
            %3558 = vmatpush.bf16.msra.mxu0 %v3503
            %3559 = vmatmul.bf16.gmra.mxu0 %v3383
            %v3560 = vpop.f32.mrf.mxu0
            %v3561 = vadd.f32 0.0, %v3560
            %v3562 = vpop.f32.mrf.mxu0
            %v3563 = vadd.f32 0.0, %v3562
            %3564 = vmatmul.bf16.gmra.mxu0 %v3386
            %v3565 = vpop.f32.mrf.mxu0
            %v3566 = vadd.f32 0.0, %v3565
            %v3567 = vpop.f32.mrf.mxu0
            %v3568 = vadd.f32 0.0, %v3567
            %3569 = vmatmul.bf16.gmra.mxu0 %v3389
            %v3570 = vpop.f32.mrf.mxu0
            %v3571 = vadd.f32 0.0, %v3570
            %v3572 = vpop.f32.mrf.mxu0
            %v3573 = vadd.f32 0.0, %v3572
            %3574 = vmatmul.bf16.gmra.mxu0 %v3392
            %v3575 = vpop.f32.mrf.mxu0
            %v3576 = vadd.f32 0.0, %v3575
            %v3577 = vpop.f32.mrf.mxu0
            %v3578 = vadd.f32 0.0, %v3577
            %3579 = vdwg.mxu0
            %3580 = vmatpush.bf16.msra.mxu0 %v3518
            %3581 = vmatpush.bf16.msra.mxu0 %v3517
            %3582 = vmatpush.bf16.msra.mxu0 %v3516
            %3583 = vmatpush.bf16.msra.mxu0 %v3515
            %3584 = vmatpush.bf16.msra.mxu0 %v3514
            %3585 = vmatpush.bf16.msra.mxu0 %v3513
            %3586 = vmatpush.bf16.msra.mxu0 %v3512
            %3587 = vmatpush.bf16.msra.mxu0 %v3511
            %3588 = vmatmul.bf16.gmra.mxu0 %v3384
            %v3589 = vpop.f32.mrf.mxu0
            %v3590 = vadd.f32 %v3561, %v3589
            %v3591 = vpop.f32.mrf.mxu0
            %v3592 = vadd.f32 %v3563, %v3591
            %3593 = vmatmul.bf16.gmra.mxu0 %v3387
            %v3594 = vpop.f32.mrf.mxu0
            %v3595 = vadd.f32 %v3566, %v3594
            %v3596 = vpop.f32.mrf.mxu0
            %v3597 = vadd.f32 %v3568, %v3596
            %3598 = vmatmul.bf16.gmra.mxu0 %v3390
            %v3599 = vpop.f32.mrf.mxu0
            %v3600 = vadd.f32 %v3571, %v3599
            %v3601 = vpop.f32.mrf.mxu0
            %v3602 = vadd.f32 %v3573, %v3601
            %3603 = vmatmul.bf16.gmra.mxu0 %v3393
            %v3604 = vpop.f32.mrf.mxu0
            %v3605 = vadd.f32 %v3576, %v3604
            %v3606 = vpop.f32.mrf.mxu0
            %v3607 = vadd.f32 %v3578, %v3606
            %3608 = vdwg.mxu0
            %3609 = vmatpush.bf16.msra.mxu0 %v3526
            %3610 = vmatpush.bf16.msra.mxu0 %v3525
            %3611 = vmatpush.bf16.msra.mxu0 %v3524
            %3612 = vmatpush.bf16.msra.mxu0 %v3523
            %3613 = vmatpush.bf16.msra.mxu0 %v3522
            %3614 = vmatpush.bf16.msra.mxu0 %v3521
            %3615 = vmatpush.bf16.msra.mxu0 %v3520
            %3616 = vmatpush.bf16.msra.mxu0 %v3519
            %3617 = vmatmul.bf16.gmra.mxu0 %v3385
            %v3618 = vpop.f32.mrf.mxu0
            %v3619 = vadd.f32 %v3590, %v3618
            %v3620 = vpop.f32.mrf.mxu0
            %v3621 = vadd.f32 %v3592, %v3620
            %3622 = vmatmul.bf16.gmra.mxu0 %v3388
            %v3623 = vpop.f32.mrf.mxu0
            %v3624 = vadd.f32 %v3595, %v3623
            %v3625 = vpop.f32.mrf.mxu0
            %v3626 = vadd.f32 %v3597, %v3625
            %3627 = vmatmul.bf16.gmra.mxu0 %v3391
            %v3628 = vpop.f32.mrf.mxu0
            %v3629 = vadd.f32 %v3600, %v3628
            %v3630 = vpop.f32.mrf.mxu0
            %v3631 = vadd.f32 %v3602, %v3630
            %3632 = vmatmul.bf16.gmra.mxu0 %v3394
            %v3633 = vpop.f32.mrf.mxu0
            %v3634 = vadd.f32 %v3605, %v3633
            %v3635 = vpop.f32.mrf.mxu0
            %v3636 = vadd.f32 %v3607, %v3635
            %3637 = vdwg.mxu0
            %v3638 = vpack.c.b16 %v901, %v899
            %v3639 = vpack.c.b16 %v1013, %v1011
            %v3640 = vpack.c.b16 %v1014, %v1012
            %v3641 = vpack.c.b16 %v905, %v903
            %v3642 = vpack.c.b16 %v1017, %v1015
            %v3643 = vpack.c.b16 %v1018, %v1016
            %v3644 = vpack.c.b16 %v909, %v907
            %v3645 = vpack.c.b16 %v1021, %v1019
            %v3646 = vpack.c.b16 %v1022, %v1020
            %v3647 = vpack.c.b16 %v913, %v911
            %v3648 = vpack.c.b16 %v1025, %v1023
            %v3649 = vpack.c.b16 %v1026, %v1024
            %v3710 = vunpack.c.l.b16 %v3286
            %v3711 = vunpack.c.l.b16 %v3287
            %v3712 = vunpack.c.l.b16 %v3288
            %v3713 = vunpack.c.l.b16 %v3289
            %v3714 = vunpack.c.l.b16 %v3290
            %v3715 = vunpack.c.l.b16 %v3291
            %v3716 = vunpack.c.l.b16 %v3292
            %v3717 = vunpack.c.l.b16 %v3293
            %v3718 = vunpack.c.l.b16 %v3294
            %v3719 = vunpack.c.l.b16 %v3295
            %v3720 = vunpack.c.l.b16 %v3296
            %v3721 = vunpack.c.l.b16 %v3297
            %v3722 = vunpack.c.l.b16 %v3298
            %v3723 = vunpack.c.l.b16 %v3299
            %v3724 = vunpack.c.l.b16 %v3300
            %v3725 = vunpack.c.l.b16 %v3301
            %v3726 = vunpack.c.l.b16 %v3302
            %v3727 = vunpack.c.l.b16 %v3303
            %v3728 = vunpack.c.l.b16 %v3304
            %v3729 = vunpack.c.l.b16 %v3305
            %v3730 = vunpack.c.l.b16 %v3306
            %v3731 = vunpack.c.l.b16 %v3307
            %v3732 = vunpack.c.l.b16 %v3308
            %v3733 = vunpack.c.l.b16 %v3309
            %v3734 = vunpack.c.l.b16 %v3310
            %v3735 = vunpack.c.l.b16 %v3311
            %v3736 = vunpack.c.l.b16 %v3312
            %v3737 = vunpack.c.l.b16 %v3313
            %v3738 = vunpack.c.l.b16 %v3314
            %v3739 = vunpack.c.l.b16 %v3315
            %v3740 = vunpack.c.l.b16 %v3316
            %v3741 = vunpack.c.l.b16 %v3317
            %v3742 = vunpack.c.l.b16 %v3318
            %v3743 = vunpack.c.l.b16 %v3319
            %v3744 = vunpack.c.l.b16 %v3320
            %v3745 = vunpack.c.l.b16 %v3321
            %v3746 = vunpack.c.l.b16 %v3322
            %v3747 = vunpack.c.l.b16 %v3323
            %v3748 = vunpack.c.l.b16 %v3324
            %v3749 = vunpack.c.l.b16 %v3325
            %v3750 = vunpack.c.l.b16 %v3326
            %v3751 = vunpack.c.l.b16 %v3327
            %v3752 = vunpack.c.l.b16 %v3328
            %v3753 = vunpack.c.l.b16 %v3329
            %v3754 = vunpack.c.l.b16 %v3330
            %v3755 = vunpack.c.l.b16 %v3331
            %v3756 = vunpack.c.l.b16 %v3332
            %v3757 = vunpack.c.l.b16 %v3333
            %v3758 = vpack.c.b16 %v3711, %v3710
            %v3759 = vpack.c.b16 %v3713, %v3712
            %v3760 = vpack.c.b16 %v3715, %v3714
            %v3761 = vpack.c.b16 %v3717, %v3716
            %v3762 = vpack.c.b16 %v3719, %v3718
            %v3763 = vpack.c.b16 %v3721, %v3720
            %v3764 = vpack.c.b16 %v3723, %v3722
            %v3765 = vpack.c.b16 %v3725, %v3724
            %v3766 = vpack.c.b16 %v3727, %v3726
            %v3767 = vpack.c.b16 %v3729, %v3728
            %v3768 = vpack.c.b16 %v3731, %v3730
            %v3769 = vpack.c.b16 %v3733, %v3732
            %v3770 = vpack.c.b16 %v3735, %v3734
            %v3771 = vpack.c.b16 %v3737, %v3736
            %v3772 = vpack.c.b16 %v3739, %v3738
            %v3773 = vpack.c.b16 %v3741, %v3740
            %v3774 = vpack.c.b16 %v3743, %v3742
            %v3775 = vpack.c.b16 %v3745, %v3744
            %v3776 = vpack.c.b16 %v3747, %v3746
            %v3777 = vpack.c.b16 %v3749, %v3748
            %v3778 = vpack.c.b16 %v3751, %v3750
            %v3779 = vpack.c.b16 %v3753, %v3752
            %v3780 = vpack.c.b16 %v3755, %v3754
            %v3781 = vpack.c.b16 %v3757, %v3756
            %3806 = vmatpush.bf16.msra.mxu0 %v3765
            %3807 = vmatpush.bf16.msra.mxu0 %v3764
            %3808 = vmatpush.bf16.msra.mxu0 %v3763
            %3809 = vmatpush.bf16.msra.mxu0 %v3762
            %3810 = vmatpush.bf16.msra.mxu0 %v3761
            %3811 = vmatpush.bf16.msra.mxu0 %v3760
            %3812 = vmatpush.bf16.msra.mxu0 %v3759
            %3813 = vmatpush.bf16.msra.mxu0 %v3758
            %3814 = vmatmul.bf16.gmra.mxu0 %v3638
            %v3815 = vpop.f32.mrf.mxu0
            %v3816 = vadd.f32 %v3619, %v3815
            %v3817 = vpop.f32.mrf.mxu0
            %v3818 = vadd.f32 %v3621, %v3817
            %3819 = vmatmul.bf16.gmra.mxu0 %v3641
            %v3820 = vpop.f32.mrf.mxu0
            %v3821 = vadd.f32 %v3624, %v3820
            %v3822 = vpop.f32.mrf.mxu0
            %v3823 = vadd.f32 %v3626, %v3822
            %3824 = vmatmul.bf16.gmra.mxu0 %v3644
            %v3825 = vpop.f32.mrf.mxu0
            %v3826 = vadd.f32 %v3629, %v3825
            %v3827 = vpop.f32.mrf.mxu0
            %v3828 = vadd.f32 %v3631, %v3827
            %3829 = vmatmul.bf16.gmra.mxu0 %v3647
            %v3830 = vpop.f32.mrf.mxu0
            %v3831 = vadd.f32 %v3634, %v3830
            %v3832 = vpop.f32.mrf.mxu0
            %v3833 = vadd.f32 %v3636, %v3832
            %3834 = vdwg.mxu0
            %3835 = vmatpush.bf16.msra.mxu0 %v3773
            %3836 = vmatpush.bf16.msra.mxu0 %v3772
            %3837 = vmatpush.bf16.msra.mxu0 %v3771
            %3838 = vmatpush.bf16.msra.mxu0 %v3770
            %3839 = vmatpush.bf16.msra.mxu0 %v3769
            %3840 = vmatpush.bf16.msra.mxu0 %v3768
            %3841 = vmatpush.bf16.msra.mxu0 %v3767
            %3842 = vmatpush.bf16.msra.mxu0 %v3766
            %3843 = vmatmul.bf16.gmra.mxu0 %v3639
            %v3844 = vpop.f32.mrf.mxu0
            %v3845 = vadd.f32 %v3816, %v3844
            %v3846 = vpop.f32.mrf.mxu0
            %v3847 = vadd.f32 %v3818, %v3846
            %3848 = vmatmul.bf16.gmra.mxu0 %v3642
            %v3849 = vpop.f32.mrf.mxu0
            %v3850 = vadd.f32 %v3821, %v3849
            %v3851 = vpop.f32.mrf.mxu0
            %v3852 = vadd.f32 %v3823, %v3851
            %3853 = vmatmul.bf16.gmra.mxu0 %v3645
            %v3854 = vpop.f32.mrf.mxu0
            %v3855 = vadd.f32 %v3826, %v3854
            %v3856 = vpop.f32.mrf.mxu0
            %v3857 = vadd.f32 %v3828, %v3856
            %3858 = vmatmul.bf16.gmra.mxu0 %v3648
            %v3859 = vpop.f32.mrf.mxu0
            %v3860 = vadd.f32 %v3831, %v3859
            %v3861 = vpop.f32.mrf.mxu0
            %v3862 = vadd.f32 %v3833, %v3861
            %3863 = vdwg.mxu0
            %3864 = vmatpush.bf16.msra.mxu0 %v3781
            %3865 = vmatpush.bf16.msra.mxu0 %v3780
            %3866 = vmatpush.bf16.msra.mxu0 %v3779
            %3867 = vmatpush.bf16.msra.mxu0 %v3778
            %3868 = vmatpush.bf16.msra.mxu0 %v3777
            %3869 = vmatpush.bf16.msra.mxu0 %v3776
            %3870 = vmatpush.bf16.msra.mxu0 %v3775
            %3871 = vmatpush.bf16.msra.mxu0 %v3774
            %3872 = vmatmul.bf16.gmra.mxu0 %v3640
            %v3873 = vpop.f32.mrf.mxu0
            %v3874 = vadd.f32 %v3845, %v3873
            %v3875 = vpop.f32.mrf.mxu0
            %v3876 = vadd.f32 %v3847, %v3875
            %3877 = vmatmul.bf16.gmra.mxu0 %v3643
            %v3878 = vpop.f32.mrf.mxu0
            %v3879 = vadd.f32 %v3850, %v3878
            %v3880 = vpop.f32.mrf.mxu0
            %v3881 = vadd.f32 %v3852, %v3880
            %3882 = vmatmul.bf16.gmra.mxu0 %v3646
            %v3883 = vpop.f32.mrf.mxu0
            %v3884 = vadd.f32 %v3855, %v3883
            %v3885 = vpop.f32.mrf.mxu0
            %v3886 = vadd.f32 %v3857, %v3885
            %3887 = vmatmul.bf16.gmra.mxu0 %v3649
            %v3888 = vpop.f32.mrf.mxu0
            %v3889 = vadd.f32 %v3860, %v3888
            %v3890 = vpop.f32.mrf.mxu0
            %v3891 = vadd.f32 %v3862, %v3890
            %3892 = vdwg.mxu0
            %s3893 = scalar_lea.vmem [#allocation9], 1536
            %v3894 = vld [vmem:[%s3893] sm:$0xf]
            %v3895 = vld [vmem:[%s3893 + $0x4] sm:$0xf]
            %v3896 = vld [vmem:[%s3893 + $0x8] sm:$0xf]
            %v3897 = vld [vmem:[%s3893 + $0xc] sm:$0xf]
            %v3898 = vld [vmem:[%s3893 + $0x10] sm:$0xf]
            %v3899 = vld [vmem:[%s3893 + $0x14] sm:$0xf]
            %v3900 = vld [vmem:[%s3893 + $0x18] sm:$0xf]
            %v3901 = vld [vmem:[%s3893 + $0x1c] sm:$0xf]
            %v3902 = vld [vmem:[%s3893 + $0x20] sm:$0xf]
            %v3903 = vld [vmem:[%s3893 + $0x24] sm:$0xf]
            %v3904 = vld [vmem:[%s3893 + $0x28] sm:$0xf]
            %v3905 = vld [vmem:[%s3893 + $0x2c] sm:$0xf]
            %v3906 = vld [vmem:[%s3893 + $0x30] sm:$0xf]
            %v3907 = vld [vmem:[%s3893 + $0x34] sm:$0xf]
            %v3908 = vld [vmem:[%s3893 + $0x38] sm:$0xf]
            %v3909 = vld [vmem:[%s3893 + $0x3c] sm:$0xf]
            %v3910 = vld [vmem:[%s3893 + $0x40] sm:$0xf]
            %v3911 = vld [vmem:[%s3893 + $0x44] sm:$0xf]
            %v3912 = vld [vmem:[%s3893 + $0x48] sm:$0xf]
            %v3913 = vld [vmem:[%s3893 + $0x4c] sm:$0xf]
            %v3914 = vld [vmem:[%s3893 + $0x50] sm:$0xf]
            %v3915 = vld [vmem:[%s3893 + $0x54] sm:$0xf]
            %v3916 = vld [vmem:[%s3893 + $0x58] sm:$0xf]
            %v3917 = vld [vmem:[%s3893 + $0x5c] sm:$0xf]
            %v3918 = vld [vmem:[%s3893 + $0x60] sm:$0xf]
            %v3919 = vld [vmem:[%s3893 + $0x64] sm:$0xf]
            %v3920 = vld [vmem:[%s3893 + $0x68] sm:$0xf]
            %v3921 = vld [vmem:[%s3893 + $0x6c] sm:$0xf]
            %v3922 = vld [vmem:[%s3893 + $0x70] sm:$0xf]
            %v3923 = vld [vmem:[%s3893 + $0x74] sm:$0xf]
            %v3924 = vld [vmem:[%s3893 + $0x78] sm:$0xf]
            %v3925 = vld [vmem:[%s3893 + $0x7c] sm:$0xf]
            %v3926 = vld [vmem:[%s3893 + $0x80] sm:$0xf]
            %v3927 = vld [vmem:[%s3893 + $0x84] sm:$0xf]
            %v3928 = vld [vmem:[%s3893 + $0x88] sm:$0xf]
            %v3929 = vld [vmem:[%s3893 + $0x8c] sm:$0xf]
            %v3930 = vld [vmem:[%s3893 + $0x90] sm:$0xf]
            %v3931 = vld [vmem:[%s3893 + $0x94] sm:$0xf]
            %v3932 = vld [vmem:[%s3893 + $0x98] sm:$0xf]
            %v3933 = vld [vmem:[%s3893 + $0x9c] sm:$0xf]
            %v3934 = vld [vmem:[%s3893 + $0xa0] sm:$0xf]
            %v3935 = vld [vmem:[%s3893 + $0xa4] sm:$0xf]
            %v3936 = vld [vmem:[%s3893 + $0xa8] sm:$0xf]
            %v3937 = vld [vmem:[%s3893 + $0xac] sm:$0xf]
            %v3938 = vld [vmem:[%s3893 + $0xb0] sm:$0xf]
            %v3939 = vld [vmem:[%s3893 + $0xb4] sm:$0xf]
            %v3940 = vld [vmem:[%s3893 + $0xb8] sm:$0xf]
            %v3941 = vld [vmem:[%s3893 + $0xbc] sm:$0xf]
            %v3942 = vpack.c.b16 %v1238, %v1236
            %v3943 = vpack.c.b16 %v1350, %v1348
            %v3944 = vpack.c.b16 %v1351, %v1349
            %v3945 = vpack.c.b16 %v1242, %v1240
            %v3946 = vpack.c.b16 %v1354, %v1352
            %v3947 = vpack.c.b16 %v1355, %v1353
            %v3948 = vpack.c.b16 %v1246, %v1244
            %v3949 = vpack.c.b16 %v1358, %v1356
            %v3950 = vpack.c.b16 %v1359, %v1357
            %v3951 = vpack.c.b16 %v1250, %v1248
            %v3952 = vpack.c.b16 %v1362, %v1360
            %v3953 = vpack.c.b16 %v1363, %v1361
            %v4014 = vunpack.c.l.b16 %v3894
            %v4015 = vunpack.c.l.b16 %v3895
            %v4016 = vunpack.c.l.b16 %v3896
            %v4017 = vunpack.c.l.b16 %v3897
            %v4018 = vunpack.c.l.b16 %v3898
            %v4019 = vunpack.c.l.b16 %v3899
            %v4020 = vunpack.c.l.b16 %v3900
            %v4021 = vunpack.c.l.b16 %v3901
            %v4022 = vunpack.c.l.b16 %v3902
            %v4023 = vunpack.c.l.b16 %v3903
            %v4024 = vunpack.c.l.b16 %v3904
            %v4025 = vunpack.c.l.b16 %v3905
            %v4026 = vunpack.c.l.b16 %v3906
            %v4027 = vunpack.c.l.b16 %v3907
            %v4028 = vunpack.c.l.b16 %v3908
            %v4029 = vunpack.c.l.b16 %v3909
            %v4030 = vunpack.c.l.b16 %v3910
            %v4031 = vunpack.c.l.b16 %v3911
            %v4032 = vunpack.c.l.b16 %v3912
            %v4033 = vunpack.c.l.b16 %v3913
            %v4034 = vunpack.c.l.b16 %v3914
            %v4035 = vunpack.c.l.b16 %v3915
            %v4036 = vunpack.c.l.b16 %v3916
            %v4037 = vunpack.c.l.b16 %v3917
            %v4038 = vunpack.c.l.b16 %v3918
            %v4039 = vunpack.c.l.b16 %v3919
            %v4040 = vunpack.c.l.b16 %v3920
            %v4041 = vunpack.c.l.b16 %v3921
            %v4042 = vunpack.c.l.b16 %v3922
            %v4043 = vunpack.c.l.b16 %v3923
            %v4044 = vunpack.c.l.b16 %v3924
            %v4045 = vunpack.c.l.b16 %v3925
            %v4046 = vunpack.c.l.b16 %v3926
            %v4047 = vunpack.c.l.b16 %v3927
            %v4048 = vunpack.c.l.b16 %v3928
            %v4049 = vunpack.c.l.b16 %v3929
            %v4050 = vunpack.c.l.b16 %v3930
            %v4051 = vunpack.c.l.b16 %v3931
            %v4052 = vunpack.c.l.b16 %v3932
            %v4053 = vunpack.c.l.b16 %v3933
            %v4054 = vunpack.c.l.b16 %v3934
            %v4055 = vunpack.c.l.b16 %v3935
            %v4056 = vunpack.c.l.b16 %v3936
            %v4057 = vunpack.c.l.b16 %v3937
            %v4058 = vunpack.c.l.b16 %v3938
            %v4059 = vunpack.c.l.b16 %v3939
            %v4060 = vunpack.c.l.b16 %v3940
            %v4061 = vunpack.c.l.b16 %v3941
            %v4062 = vpack.c.b16 %v4015, %v4014
            %v4063 = vpack.c.b16 %v4017, %v4016
            %v4064 = vpack.c.b16 %v4019, %v4018
            %v4065 = vpack.c.b16 %v4021, %v4020
            %v4066 = vpack.c.b16 %v4023, %v4022
            %v4067 = vpack.c.b16 %v4025, %v4024
            %v4068 = vpack.c.b16 %v4027, %v4026
            %v4069 = vpack.c.b16 %v4029, %v4028
            %v4070 = vpack.c.b16 %v4031, %v4030
            %v4071 = vpack.c.b16 %v4033, %v4032
            %v4072 = vpack.c.b16 %v4035, %v4034
            %v4073 = vpack.c.b16 %v4037, %v4036
            %v4074 = vpack.c.b16 %v4039, %v4038
            %v4075 = vpack.c.b16 %v4041, %v4040
            %v4076 = vpack.c.b16 %v4043, %v4042
            %v4077 = vpack.c.b16 %v4045, %v4044
            %v4078 = vpack.c.b16 %v4047, %v4046
            %v4079 = vpack.c.b16 %v4049, %v4048
            %v4080 = vpack.c.b16 %v4051, %v4050
            %v4081 = vpack.c.b16 %v4053, %v4052
            %v4082 = vpack.c.b16 %v4055, %v4054
            %v4083 = vpack.c.b16 %v4057, %v4056
            %v4084 = vpack.c.b16 %v4059, %v4058
            %v4085 = vpack.c.b16 %v4061, %v4060
            %4110 = vmatpush.bf16.msra.mxu0 %v4069
            %4111 = vmatpush.bf16.msra.mxu0 %v4068
            %4112 = vmatpush.bf16.msra.mxu0 %v4067
            %4113 = vmatpush.bf16.msra.mxu0 %v4066
            %4114 = vmatpush.bf16.msra.mxu0 %v4065
            %4115 = vmatpush.bf16.msra.mxu0 %v4064
            %4116 = vmatpush.bf16.msra.mxu0 %v4063
            %4117 = vmatpush.bf16.msra.mxu0 %v4062
            %4118 = vmatmul.bf16.gmra.mxu0 %v3942
            %v4119 = vpop.f32.mrf.mxu0
            %v4120 = vadd.f32 0.0, %v4119
            %v4121 = vpop.f32.mrf.mxu0
            %v4122 = vadd.f32 0.0, %v4121
            %4123 = vmatmul.bf16.gmra.mxu0 %v3945
            %v4124 = vpop.f32.mrf.mxu0
            %v4125 = vadd.f32 0.0, %v4124
            %v4126 = vpop.f32.mrf.mxu0
            %v4127 = vadd.f32 0.0, %v4126
            %4128 = vmatmul.bf16.gmra.mxu0 %v3948
            %v4129 = vpop.f32.mrf.mxu0
            %v4130 = vadd.f32 0.0, %v4129
            %v4131 = vpop.f32.mrf.mxu0
            %v4132 = vadd.f32 0.0, %v4131
            %4133 = vmatmul.bf16.gmra.mxu0 %v3951
            %v4134 = vpop.f32.mrf.mxu0
            %v4135 = vadd.f32 0.0, %v4134
            %v4136 = vpop.f32.mrf.mxu0
            %v4137 = vadd.f32 0.0, %v4136
            %4138 = vdwg.mxu0
            %4139 = vmatpush.bf16.msra.mxu0 %v4077
            %4140 = vmatpush.bf16.msra.mxu0 %v4076
            %4141 = vmatpush.bf16.msra.mxu0 %v4075
            %4142 = vmatpush.bf16.msra.mxu0 %v4074
            %4143 = vmatpush.bf16.msra.mxu0 %v4073
            %4144 = vmatpush.bf16.msra.mxu0 %v4072
            %4145 = vmatpush.bf16.msra.mxu0 %v4071
            %4146 = vmatpush.bf16.msra.mxu0 %v4070
            %4147 = vmatmul.bf16.gmra.mxu0 %v3943
            %v4148 = vpop.f32.mrf.mxu0
            %v4149 = vadd.f32 %v4120, %v4148
            %v4150 = vpop.f32.mrf.mxu0
            %v4151 = vadd.f32 %v4122, %v4150
            %4152 = vmatmul.bf16.gmra.mxu0 %v3946
            %v4153 = vpop.f32.mrf.mxu0
            %v4154 = vadd.f32 %v4125, %v4153
            %v4155 = vpop.f32.mrf.mxu0
            %v4156 = vadd.f32 %v4127, %v4155
            %4157 = vmatmul.bf16.gmra.mxu0 %v3949
            %v4158 = vpop.f32.mrf.mxu0
            %v4159 = vadd.f32 %v4130, %v4158
            %v4160 = vpop.f32.mrf.mxu0
            %v4161 = vadd.f32 %v4132, %v4160
            %4162 = vmatmul.bf16.gmra.mxu0 %v3952
            %v4163 = vpop.f32.mrf.mxu0
            %v4164 = vadd.f32 %v4135, %v4163
            %v4165 = vpop.f32.mrf.mxu0
            %v4166 = vadd.f32 %v4137, %v4165
            %4167 = vdwg.mxu0
            %4168 = vmatpush.bf16.msra.mxu0 %v4085
            %4169 = vmatpush.bf16.msra.mxu0 %v4084
            %4170 = vmatpush.bf16.msra.mxu0 %v4083
            %4171 = vmatpush.bf16.msra.mxu0 %v4082
            %4172 = vmatpush.bf16.msra.mxu0 %v4081
            %4173 = vmatpush.bf16.msra.mxu0 %v4080
            %4174 = vmatpush.bf16.msra.mxu0 %v4079
            %4175 = vmatpush.bf16.msra.mxu0 %v4078
            %4176 = vmatmul.bf16.gmra.mxu0 %v3944
            %v4177 = vpop.f32.mrf.mxu0
            %v4178 = vadd.f32 %v4149, %v4177
            %v4179 = vpop.f32.mrf.mxu0
            %v4180 = vadd.f32 %v4151, %v4179
            %4181 = vmatmul.bf16.gmra.mxu0 %v3947
            %v4182 = vpop.f32.mrf.mxu0
            %v4183 = vadd.f32 %v4154, %v4182
            %v4184 = vpop.f32.mrf.mxu0
            %v4185 = vadd.f32 %v4156, %v4184
            %4186 = vmatmul.bf16.gmra.mxu0 %v3950
            %v4187 = vpop.f32.mrf.mxu0
            %v4188 = vadd.f32 %v4159, %v4187
            %v4189 = vpop.f32.mrf.mxu0
            %v4190 = vadd.f32 %v4161, %v4189
            %4191 = vmatmul.bf16.gmra.mxu0 %v3953
            %v4192 = vpop.f32.mrf.mxu0
            %v4193 = vadd.f32 %v4164, %v4192
            %v4194 = vpop.f32.mrf.mxu0
            %v4195 = vadd.f32 %v4166, %v4194
            %4196 = vdwg.mxu0
            %v4197 = vadd.f32 %v3874, %v4178
            %v4198 = vadd.f32 %v3876, %v4180
            %v4199 = vadd.f32 %v3879, %v4183
            %v4200 = vadd.f32 %v3881, %v4185
            %v4201 = vadd.f32 %v3884, %v4188
            %v4202 = vadd.f32 %v3886, %v4190
            %v4203 = vadd.f32 %v3889, %v4193
            %v4204 = vadd.f32 %v3891, %v4195
            %p4205 = scmp.lt.s32.totalorder %s3278, 0
            %s4206 = ssub.s32 0, %s3278
            %s4207 = scalar_select %p4205, %s4206, %s3278
            %s4208 = sdiv.u32.pop %s4207, 3
            %s4209 = srem.u32.pop %s4207, 3
            %s4210 = ssub.s32 0, %s4209
            %s4211 = scalar_select %p4205, %s4210, %s4209
            %s4212 = smul.u32 %s4211, 64
            %s4213 = scalar_lea.vmem [#allocation2], %s4212
            %v4214 = vld [vmem:[%s4213] sm:$0xff]
            %v4215 = vld [vmem:[%s4213 + $0x8] sm:$0xff]
            %v4216 = vld [vmem:[%s4213 + $0x10] sm:$0xff]
            %v4217 = vld [vmem:[%s4213 + $0x18] sm:$0xff]
            %v4218 = vld [vmem:[%s4213 + $0x20] sm:$0xff]
            %v4219 = vld [vmem:[%s4213 + $0x28] sm:$0xff]
            %v4220 = vld [vmem:[%s4213 + $0x30] sm:$0xff]
            %v4221 = vld [vmem:[%s4213 + $0x38] sm:$0xff]
            %v4222 = vadd.f32 %v4214, %v4197
            %v4223 = vadd.f32 %v4215, %v4198
            %v4224 = vadd.f32 %v4216, %v4199
            %v4225 = vadd.f32 %v4217, %v4200
            %v4226 = vadd.f32 %v4218, %v4201
            %v4227 = vadd.f32 %v4219, %v4202
            %v4228 = vadd.f32 %v4220, %v4203
            %v4229 = vadd.f32 %v4221, %v4204
            %4230 = vst [vmem:[%s4213] sm:$0xff] %v4222
            %4231 = vst [vmem:[%s4213 + $0x8] sm:$0xff] %v4223
            %4232 = vst [vmem:[%s4213 + $0x10] sm:$0xff] %v4224
            %4233 = vst [vmem:[%s4213 + $0x18] sm:$0xff] %v4225
            %4234 = vst [vmem:[%s4213 + $0x20] sm:$0xff] %v4226
            %4235 = vst [vmem:[%s4213 + $0x28] sm:$0xff] %v4227
            %4236 = vst [vmem:[%s4213 + $0x30] sm:$0xff] %v4228
            %4237 = vst [vmem:[%s4213 + $0x38] sm:$0xff] %v4229
          $region108: #{tpu_custom_call.1} parent=95 // pred_fallthru
            _
        $region96: #{tpu_custom_call.1} parent=63 // pred_fallthru
          _
        %p4238 = scmp.ge.s32.totalorder %s35, 1
        // Predicated region
        $region109: #{tpu_custom_call.1} parent=63 // pred_check
          %p4239 = pneg %p4238
        $region110: #{tpu_custom_call.1} parent=63 // pred_check_branch
          %4241 = sbr.rel (%p4239) target = $region112
        $region111: #{tpu_custom_call.1} parent=63 // pred_region
          %s4242 = ssub.s32 %s35, 1
          %p4243 = scmp.lt.s32.totalorder %s4242, 0
          %s4244 = ssub.s32 0, %s4242
          %s4245 = scalar_select %p4243, %s4244, %s4242
          %s4246 = sdiv.u32.pop %s4245, 3
          %s4247 = srem.u32.pop %s4245, 3
          %s4248 = ssub.s32 0, %s4247
          %s4249 = scalar_select %p4243, %s4248, %s4247
          %s4250 = smul.u32 %s4249, 64
          %s4251 = scalar_lea.vmem [#allocation2], %s4250
          %v4252 = vld [vmem:[%s4251] sm:$0xff]
          %v4253 = vld [vmem:[%s4251 + $0x8] sm:$0xff]
          %v4254 = vld [vmem:[%s4251 + $0x10] sm:$0xff]
          %v4255 = vld [vmem:[%s4251 + $0x18] sm:$0xff]
          %v4256 = vld [vmem:[%s4251 + $0x20] sm:$0xff]
          %v4257 = vld [vmem:[%s4251 + $0x28] sm:$0xff]
          %v4258 = vld [vmem:[%s4251 + $0x30] sm:$0xff]
          %v4259 = vld [vmem:[%s4251 + $0x38] sm:$0xff]
          %v4260 = vld [vmem:[%s5] sm:$0x1]
          %v4262 = vperm.slane %v4260, 0
          %v4264 = vmul.f32 %v4252, %v4262
          %v4265 = vmul.f32 %v4253, %v4262
          %v4266 = vmul.f32 %v4254, %v4262
          %v4267 = vmul.f32 %v4255, %v4262
          %v4268 = vmul.f32 %v4256, %v4262
          %v4269 = vmul.f32 %v4257, %v4262
          %v4270 = vmul.f32 %v4258, %v4262
          %v4271 = vmul.f32 %v4259, %v4262
          %v4272 = vld [vmem:[%s6] sm:$0x1]
          %v4274 = vperm.slane %v4272, 0
          %v4276 = vadd.f32 %v4264, %v4274
          %v4277 = vadd.f32 %v4265, %v4274
          %v4278 = vadd.f32 %v4266, %v4274
          %v4279 = vadd.f32 %v4267, %v4274
          %v4280 = vadd.f32 %v4268, %v4274
          %v4281 = vadd.f32 %v4269, %v4274
          %v4282 = vadd.f32 %v4270, %v4274
          %v4283 = vadd.f32 %v4271, %v4274
          %v4284 = vmax.f32 %v4276, 0.0
          %v4285 = vmax.f32 %v4277, 0.0
          %v4286 = vmax.f32 %v4278, 0.0
          %v4287 = vmax.f32 %v4279, 0.0
          %v4288 = vmax.f32 %v4280, 0.0
          %v4289 = vmax.f32 %v4281, 0.0
          %v4290 = vmax.f32 %v4282, 0.0
          %v4291 = vmax.f32 %v4283, 0.0
          %v4292 = vpack.c.bf16 %v4285, %v4284
          %v4293 = vpack.c.bf16 %v4287, %v4286
          %v4294 = vpack.c.bf16 %v4289, %v4288
          %v4295 = vpack.c.bf16 %v4291, %v4290
          %v4296 = vld [vmem:[#allocation10] sm:$0xf]
          %v4297 = vld [vmem:[#allocation10 + $0x4] sm:$0xf]
          %v4298 = vld [vmem:[#allocation10 + $0x8] sm:$0xf]
          %v4299 = vld [vmem:[#allocation10 + $0xc] sm:$0xf]
          %v4300 = vld [vmem:[#allocation10 + $0x10] sm:$0xf]
          %v4301 = vld [vmem:[#allocation10 + $0x14] sm:$0xf]
          %v4302 = vld [vmem:[#allocation10 + $0x18] sm:$0xf]
          %v4303 = vld [vmem:[#allocation10 + $0x1c] sm:$0xf]
          %v4304 = vld [vmem:[#allocation10 + $0x20] sm:$0xf]
          %v4305 = vld [vmem:[#allocation10 + $0x24] sm:$0xf]
          %v4306 = vld [vmem:[#allocation10 + $0x28] sm:$0xf]
          %v4307 = vld [vmem:[#allocation10 + $0x2c] sm:$0xf]
          %v4308 = vld [vmem:[#allocation10 + $0x30] sm:$0xf]
          %v4309 = vld [vmem:[#allocation10 + $0x34] sm:$0xf]
          %v4310 = vld [vmem:[#allocation10 + $0x38] sm:$0xf]
          %v4311 = vld [vmem:[#allocation10 + $0x3c] sm:$0xf]
          %v4328 = vunpack.c.l.b16 %v4296
          %v4329 = vunpack.c.l.b16 %v4297
          %v4330 = vunpack.c.l.b16 %v4298
          %v4331 = vunpack.c.l.b16 %v4299
          %v4332 = vunpack.c.l.b16 %v4300
          %v4333 = vunpack.c.l.b16 %v4301
          %v4334 = vunpack.c.l.b16 %v4302
          %v4335 = vunpack.c.l.b16 %v4303
          %v4336 = vunpack.c.l.b16 %v4304
          %v4337 = vunpack.c.l.b16 %v4305
          %v4338 = vunpack.c.l.b16 %v4306
          %v4339 = vunpack.c.l.b16 %v4307
          %v4340 = vunpack.c.l.b16 %v4308
          %v4341 = vunpack.c.l.b16 %v4309
          %v4342 = vunpack.c.l.b16 %v4310
          %v4343 = vunpack.c.l.b16 %v4311
          %v4344 = vpack.c.b16 %v4329, %v4328
          %v4345 = vpack.c.b16 %v4331, %v4330
          %v4346 = vpack.c.b16 %v4333, %v4332
          %v4347 = vpack.c.b16 %v4335, %v4334
          %v4348 = vpack.c.b16 %v4337, %v4336
          %v4349 = vpack.c.b16 %v4339, %v4338
          %v4350 = vpack.c.b16 %v4341, %v4340
          %v4351 = vpack.c.b16 %v4343, %v4342
          %4360 = vmatpush.bf16.msra.mxu0 %v4351
          %4361 = vmatpush.bf16.msra.mxu0 %v4350
          %4362 = vmatpush.bf16.msra.mxu0 %v4349
          %4363 = vmatpush.bf16.msra.mxu0 %v4348
          %4364 = vmatpush.bf16.msra.mxu0 %v4347
          %4365 = vmatpush.bf16.msra.mxu0 %v4346
          %4366 = vmatpush.bf16.msra.mxu0 %v4345
          %4367 = vmatpush.bf16.msra.mxu0 %v4344
          %4368 = vmatmul.bf16.gmra.mxu0 %v4292
          %v4369 = vpop.f32.mrf.mxu0
          %v4370 = vadd.f32 0.0, %v4369
          %v4371 = vpop.f32.mrf.mxu0
          %v4372 = vadd.f32 0.0, %v4371
          %4373 = vmatmul.bf16.gmra.mxu0 %v4293
          %v4374 = vpop.f32.mrf.mxu0
          %v4375 = vadd.f32 0.0, %v4374
          %v4376 = vpop.f32.mrf.mxu0
          %v4377 = vadd.f32 0.0, %v4376
          %4378 = vmatmul.bf16.gmra.mxu0 %v4294
          %v4379 = vpop.f32.mrf.mxu0
          %v4380 = vadd.f32 0.0, %v4379
          %v4381 = vpop.f32.mrf.mxu0
          %v4382 = vadd.f32 0.0, %v4381
          %4383 = vmatmul.bf16.gmra.mxu0 %v4295
          %v4384 = vpop.f32.mrf.mxu0
          %v4385 = vadd.f32 0.0, %v4384
          %v4386 = vpop.f32.mrf.mxu0
          %v4387 = vadd.f32 0.0, %v4386
          %4388 = vdwg.mxu0
          %v4389 = vld [vmem:[%s8] sm:$0x1]
          %v4391 = vperm.slane %v4389, 0
          %v4393 = vmul.f32 %v4370, %v4391
          %v4394 = vmul.f32 %v4372, %v4391
          %v4395 = vmul.f32 %v4375, %v4391
          %v4396 = vmul.f32 %v4377, %v4391
          %v4397 = vmul.f32 %v4380, %v4391
          %v4398 = vmul.f32 %v4382, %v4391
          %v4399 = vmul.f32 %v4385, %v4391
          %v4400 = vmul.f32 %v4387, %v4391
          %v4401 = vld [vmem:[%s9] sm:$0x1]
          %v4403 = vperm.slane %v4401, 0
          %v4405 = vadd.f32 %v4393, %v4403
          %v4406 = vadd.f32 %v4394, %v4403
          %v4407 = vadd.f32 %v4395, %v4403
          %v4408 = vadd.f32 %v4396, %v4403
          %v4409 = vadd.f32 %v4397, %v4403
          %v4410 = vadd.f32 %v4398, %v4403
          %v4411 = vadd.f32 %v4399, %v4403
          %v4412 = vadd.f32 %v4400, %v4403
          %v4413 = vld [vmem:[%s494] sm:$0xf]
          %v4414 = vld [vmem:[%s494 + $0x4] sm:$0xf]
          %v4415 = vld [vmem:[%s494 + $0x8] sm:$0xf]
          %v4416 = vld [vmem:[%s494 + $0xc] sm:$0xf]
          %v4417 = vld [vmem:[%s494 + $0x10] sm:$0xf]
          %v4418 = vld [vmem:[%s494 + $0x14] sm:$0xf]
          %v4419 = vld [vmem:[%s494 + $0x18] sm:$0xf]
          %v4420 = vld [vmem:[%s494 + $0x1c] sm:$0xf]
          %v4421 = vunpack.c.l.bf16 %v4413
          %v4422 = vunpack.c.l.bf16 %v4414
          %v4423 = vunpack.c.l.bf16 %v4415
          %v4424 = vunpack.c.l.bf16 %v4416
          %v4425 = vunpack.c.l.bf16 %v4417
          %v4426 = vunpack.c.l.bf16 %v4418
          %v4427 = vunpack.c.l.bf16 %v4419
          %v4428 = vunpack.c.l.bf16 %v4420
          %v4429 = vadd.f32 %v4405, %v4421
          %v4430 = vadd.f32 %v4406, %v4422
          %v4431 = vadd.f32 %v4407, %v4423
          %v4432 = vadd.f32 %v4408, %v4424
          %v4433 = vadd.f32 %v4409, %v4425
          %v4434 = vadd.f32 %v4410, %v4426
          %v4435 = vadd.f32 %v4411, %v4427
          %v4436 = vadd.f32 %v4412, %v4428
          %v4437 = vmax.f32 %v4429, 0.0
          %v4438 = vmax.f32 %v4430, 0.0
          %v4439 = vmax.f32 %v4431, 0.0
          %v4440 = vmax.f32 %v4432, 0.0
          %v4441 = vmax.f32 %v4433, 0.0
          %v4442 = vmax.f32 %v4434, 0.0
          %v4443 = vmax.f32 %v4435, 0.0
          %v4444 = vmax.f32 %v4436, 0.0
          %v4445 = vpack.c.bf16 %v4437, %v4437
          %v4446 = vpack.c.bf16 %v4438, %v4438
          %v4447 = vpack.c.bf16 %v4439, %v4439
          %v4448 = vpack.c.bf16 %v4440, %v4440
          %v4449 = vpack.c.bf16 %v4441, %v4441
          %v4450 = vpack.c.bf16 %v4442, %v4442
          %v4451 = vpack.c.bf16 %v4443, %v4443
          %v4452 = vpack.c.bf16 %v4444, %v4444
          %4453 = vst [vmem:[%s538] sm:$0xf] %v4445
          %4454 = vst [vmem:[%s538 + $0x4] sm:$0xf] %v4446
          %4455 = vst [vmem:[%s538 + $0x8] sm:$0xf] %v4447
          %4456 = vst [vmem:[%s538 + $0xc] sm:$0xf] %v4448
          %4457 = vst [vmem:[%s538 + $0x10] sm:$0xf] %v4449
          %4458 = vst [vmem:[%s538 + $0x14] sm:$0xf] %v4450
          %4459 = vst [vmem:[%s538 + $0x18] sm:$0xf] %v4451
          %4460 = vst [vmem:[%s538 + $0x1c] sm:$0xf] %v4452
        $region112: #{tpu_custom_call.1} parent=63 // pred_fallthru
          _
        %s4461 = sand.u32 %s313, 1
        %s4462 = scalar_lea.sflag [#allocation6], %s4461
        %s4463 = sand.u32 %s313, 1
        %s4464 = smul.addr %s4463, 32
        %s4465 = scalar_lea.vmem [#allocation13], %s4464
        // Predicated region
        $region113: #{tpu_custom_call.1} parent=63 // pred_check
          %p4466 = pneg %p323
        $region114: #{tpu_custom_call.1} parent=63 // pred_check_branch
          %4468 = sbr.rel (%p4466) target = $region116
        $region115: #{tpu_custom_call.1} parent=63 // pred_region
          %s4469 = ssub.s32 %s35, 1
          %p4470 = scmp.gt.s32.totalorder %s4469, 0
          %s4471 = scalar_select %p4470, %s4469, 0
          %4473 = vsyncadd %s4462, 0
          %s4474 = smul.addr %s4471, 8
          %s4475 = smul.addr %s34, 32
          %s4476 = sadd.s32 %s4474, %s4475
          %s4477 = smul.addr %s4476, 4
          %s4478 = scalar_lea.hbm %s11, %s4477
          %s4479 = sshll.u32 %s4465, 4
          %s4480 = int_to_ptr.vmem [resolvable:$true] %s4479
          %s4481 = sshll.u32 %s4478, 4
          %s4482 = int_to_ptr.hbm [resolvable:$true] %s4481
          %4487 = dma.vmem_to_hbm [thread:$0]  %s4480, 512, %s4482, %s4462, 64, 64, 4
        $region116: #{tpu_custom_call.1} parent=63 // pred_fallthru
          _
      $region64: #{tpu_custom_call.1} parent=5 // pred_fallthru
        _
      %p4488 = scmp.le.s32.totalorder 2, %s25
      // Predicated region
      $region117: #{tpu_custom_call.1} parent=5 // pred_check
        %p4489 = pneg %p4488
      $region118: #{tpu_custom_call.1} parent=5 // pred_check_branch
        %4491 = sbr.rel (%p4489) target = $region120
      $region119: #{tpu_custom_call.1} parent=5 // pred_region
        %s4492 = ssub.s32 %s25, 2
        // Predicated region
        $region121: #{tpu_custom_call.1} parent=119 // pred_check
          %p4493 = pneg %p329
        $region122: #{tpu_custom_call.1} parent=119 // pred_check_branch
          %4495 = sbr.rel (%p4493) target = $region124
        $region123: #{tpu_custom_call.1} parent=119 // pred_region
          %s4496 = sand.u32 %s314, 1
          %s4497 = scalar_lea.sflag [#allocation6], %s4496
          %s4498 = sand.u32 %s314, 1
          %s4499 = smul.addr %s4498, 32
          %s4500 = scalar_lea.vmem [#allocation13], %s4499
          %4502 = dma.done %s4497, 512
        $region124: #{tpu_custom_call.1} parent=119 // pred_fallthru
          _
      $region120: #{tpu_custom_call.1} parent=5 // pred_fallthru
        _
    $region6: #{tpu_custom_call.1} parent=1 // loop_footer
      %s29 = sadd.s32 1, %s25
    $region7: #{tpu_custom_call.1} parent=1 // loop_footer_branch
      %24 = sbr.rel target = $region3
    $region8: #{tpu_custom_call.1} parent=1 // loop_exit
      _
    %4503 = vsyncpa [#allocation5], 1
    %s4504 = scalar_lea.sflag [#allocation5], 1
    %4505 = vsyncpa %s4504, 1
    %4506 = vsyncpa [#allocation8], 1
    %4507 = vsyncpa [#allocation11], 1
    %4508 = vsyncpa [#allocation6], 1
    %s4509 = scalar_lea.sflag [#allocation6], 1
    %4510 = vsyncpa %s4509, 1

</llo_original>
